<compile_context>
chip_gen: v5e
topology: v5e:2x2
jax: 0.10.0
libtpu: 0.0.40
codegen_flags: <defaults>
</compile_context>

<pallas_src>
import functools
import math

import jax
import jax.numpy as jnp
from jax.experimental import pallas as pl
from jax.experimental.pallas import tpu as pltpu

_BN_EPS = 1e-5


def _conv_stats_kernel(p_ref, w_ref, raw_ref, sum_ref, sq_ref):
    """One N-row tile: conv as a single MXU contraction + per-channel sum/sumsq.

    p_ref:   (tile_n, k*k*Cin)  bf16  im2col patch rows
    w_ref:   (k*k*Cin, Cout)    bf16  packed conv weight
    raw_ref: (tile_n, Cout)     f32   pre-BN conv output tile (streamed out)
    sum_ref: (1, Cout)          f32   resident accumulator: global channel sum
    sq_ref:  (1, Cout)          f32   resident accumulator: global sum of squares
    """
    @pl.when(pl.program_id(0) == 0)
    def _init():
        sum_ref[...] = jnp.zeros_like(sum_ref)
        sq_ref[...] = jnp.zeros_like(sq_ref)

    acc = jnp.dot(p_ref[...], w_ref[...], preferred_element_type=jnp.float32)
    raw_ref[...] = acc
    sum_ref[...] += jnp.sum(acc, axis=0, keepdims=True)
    sq_ref[...] += jnp.sum(acc * acc, axis=0, keepdims=True)


def _bn_relu_kernel(n_total, raw_ref, sum_ref, sq_ref, g_ref, b_ref, o_ref):
    """BatchNorm (training-mode batch stats, biased var) + ReLU on one N-row tile.

    scale/shift are per-channel vectors computed once per tile (hoisted out of the
    big elementwise apply); rsqrt goes to the EUP slot.
    """
    inv_n = 1.0 / float(n_total)
    mean = sum_ref[...] * inv_n
    var = jnp.maximum(sq_ref[...] * inv_n - mean * mean, 0.0)
    scale = g_ref[...] * jax.lax.rsqrt(var + _BN_EPS)
    shift = b_ref[...] - mean * scale
    o_ref[...] = jnp.maximum(raw_ref[...] * scale + shift, 0.0)


def _pick_tile_n(n, target):
    """Largest divisor of n that is <= target and a multiple of 8 (or n itself)."""
    if n <= target:
        return n
    for t in range(target, 7, -1):
        if n % t == 0 and t % 8 == 0:
            return t
    return n


def conv_bn_relu(x_nhwc, w_packed, gamma, beta, k, *, tile_n=256):
    """ConvX: kxk conv (stride 1, pad k//2, no bias) + BN(train) + ReLU.

    x_nhwc: (B, H, W, Cin) f32.  Returns (B, H, W, Cout) f32.
    """
    B, H, W, Cin = x_nhwc.shape
    KK, Cout = w_packed.shape
    assert KK == k * k * Cin
    N = B * H * W
    pad = k // 2

    # Wrapper glue (XLA, fused): lane-concatenated im2col rows in bf16 so the
    # kernel sees one wide contraction K = k*k*Cin.
    xb = x_nhwc.astype(jnp.bfloat16)
    if k == 1:
        patches = xb.reshape(N, Cin)
    else:
        xp = jnp.pad(xb, ((0, 0), (pad, pad), (pad, pad), (0, 0)))
        cols = [xp[:, dy:dy + H, dx:dx + W, :] for dy in range(k) for dx in range(k)]
        patches = jnp.concatenate(cols, axis=-1).reshape(N, KK)
        # TODO(synk): build these taps in-kernel from a halo'd tile to avoid the
        # k*k-inflated HBM slab.

    tn = _pick_tile_n(N, tile_n)
    grid = (N // tn,)

    # Pass A: conv (single bf16 contraction, f32 acc) + global channel sum/sumsq.
    raw, csum, csq = pl.pallas_call(
        _conv_stats_kernel,
        grid=grid,
        in_specs=[
            pl.BlockSpec((tn, KK), lambda i: (i, 0)),
            pl.BlockSpec((KK, Cout), lambda i: (0, 0)),
        ],
        out_specs=[
            pl.BlockSpec((tn, Cout), lambda i: (i, 0)),
            pl.BlockSpec((1, Cout), lambda i: (0, 0)),
            pl.BlockSpec((1, Cout), lambda i: (0, 0)),
        ],
        out_shape=[
            jax.ShapeDtypeStruct((N, Cout), jnp.float32),
            jax.ShapeDtypeStruct((1, Cout), jnp.float32),
            jax.ShapeDtypeStruct((1, Cout), jnp.float32),
        ],
        compiler_params=pltpu.CompilerParams(
            # N axis carries the BN sum/sumsq accumulators -> must stay arbitrary.
            dimension_semantics=("arbitrary",),
            vmem_limit_bytes=32 * 1024 * 1024,
        ),
    )(patches, w_packed)

    # Pass B: fold stats into per-channel scale/shift, apply + ReLU (parallel axis).
    out = pl.pallas_call(
        functools.partial(_bn_relu_kernel, N),
        grid=grid,
        in_specs=[
            pl.BlockSpec((tn, Cout), lambda i: (i, 0)),
            pl.BlockSpec((1, Cout), lambda i: (0, 0)),
            pl.BlockSpec((1, Cout), lambda i: (0, 0)),
            pl.BlockSpec((1, Cout), lambda i: (0, 0)),
            pl.BlockSpec((1, Cout), lambda i: (0, 0)),
        ],
        out_specs=pl.BlockSpec((tn, Cout), lambda i: (i, 0)),
        out_shape=jax.ShapeDtypeStruct((N, Cout), jnp.float32),
        compiler_params=pltpu.CompilerParams(
            dimension_semantics=("parallel",),
            vmem_limit_bytes=32 * 1024 * 1024,
        ),
    )(raw, csum, csq, gamma, beta)

    return out.reshape(B, H, W, Cout)


def init_convx_params(key, k, cin, cout):
    kw, kg, kb = jax.random.split(key, 3)
    # Conv weight packed as (k*k*cin, cout); row index = (dy*k + dx)*cin + ci,
    # i.e. W_packed[(dy*k+dx)*cin + ci, co] == W_torch[co, ci, dy, dx].
    w = jax.random.normal(kw, (k * k * cin, cout), jnp.float32) / math.sqrt(k * k * cin)
    gamma = jax.random.uniform(kg, (1, cout), jnp.float32, 0.5, 1.5)
    beta = 0.1 * jax.random.normal(kb, (1, cout), jnp.float32)
    return {"w": w.astype(jnp.bfloat16), "gamma": gamma, "beta": beta}


def init_cat_bottleneck(key, in_planes, out_planes, block_num=3):
    assert block_num == 3, "this script implements the default block_num=3 config"
    n = out_planes // 2
    k0, k1, k2 = jax.random.split(key, 3)
    return [
        init_convx_params(k0, 1, in_planes, n),                      # ConvX(in, n, k=1)
        init_convx_params(k1, 3, n, out_planes // 4),                # ConvX(n, out/4, k=3)
        init_convx_params(k2, 3, out_planes // 4, out_planes // 4),  # ConvX(out/4, out/4, k=3)
    ]


def cat_bottleneck_forward(x_nchw, params):
    """CatBottleneck.forward for stride=1, block_num=3.  I/O layout: NCHW."""
    x = jnp.transpose(x_nchw, (0, 2, 3, 1))           # NCHW -> NHWC (boundary only)
    ks = (1, 3, 3)
    out1 = conv_bn_relu(x, params[0]["w"], params[0]["gamma"], params[0]["beta"], ks[0])
    out2 = conv_bn_relu(out1, params[1]["w"], params[1]["gamma"], params[1]["beta"], ks[1])
    out3 = conv_bn_relu(out2, params[2]["w"], params[2]["gamma"], params[2]["beta"], ks[2])
    # torch.concat([out1, out2, out3], dim=1)  == channel concat in NHWC
    out = jnp.concatenate([out1, out2, out3], axis=-1)
    return jnp.transpose(out, (0, 3, 1, 2))           # NHWC -> NCHW


if __name__ == "__main__":
    key = jax.random.PRNGKey(0)
    kx, kp = jax.random.split(key)

    in_planes, out_planes = 4, 8          # n = 4, out/4 = 2 -> concat = 8 channels
    B, H, W = 2, 16, 16
    x = jax.random.normal(kx, (B, in_planes, H, W), jnp.float32)   # NCHW like PyTorch

    params = init_cat_bottleneck(kp, in_planes, out_planes, block_num=3)

    fwd = jax.jit(cat_bottleneck_forward)
    y = fwd(x, params)
    jax.block_until_ready(y)

    assert y.shape == (B, out_planes, H, W), y.shape
    assert bool(jnp.all(jnp.isfinite(y)))
    assert bool(jnp.all(y >= 0.0))        # ReLU output
    print("KERNEL_OK")
</pallas_src>

<mosaic_0001>
module attributes {stable_mosaic.version = 11 : i64} {
  func.func @_bn_relu_kernel(%arg0: i32, %arg1: memref<256x4xf32, #tpu.memory_space<vmem>>, %arg2: memref<1x4xf32, #tpu.memory_space<vmem>>, %arg3: memref<1x4xf32, #tpu.memory_space<vmem>>, %arg4: memref<1x4xf32, #tpu.memory_space<vmem>>, %arg5: memref<1x4xf32, #tpu.memory_space<vmem>>, %arg6: memref<256x4xf32, #tpu.memory_space<vmem>>) attributes {dimension_semantics = [#tpu.dimension_semantics<parallel>], iteration_bounds = array<i64: 2>, scalar_prefetch = 0 : i64, scratch_operands = 0 : i64, tpu.core_type = #tpu.core_type<tc>, window_params = [{transform_indices = @transform_0, window_bounds = array<i64: 256, 4>}, {pipeline_mode = #tpu.pipeline_mode<synchronous>, transform_indices = @transform_1, window_bounds = array<i64: 1, 4>}, {pipeline_mode = #tpu.pipeline_mode<synchronous>, transform_indices = @transform_2, window_bounds = array<i64: 1, 4>}, {pipeline_mode = #tpu.pipeline_mode<synchronous>, transform_indices = @transform_3, window_bounds = array<i64: 1, 4>}, {pipeline_mode = #tpu.pipeline_mode<synchronous>, transform_indices = @transform_4, window_bounds = array<i64: 1, 4>}, {transform_indices = @transform_5, window_bounds = array<i64: 256, 4>}]} {
    %c0 = arith.constant 0 : index
    %c0_0 = arith.constant 0 : index
    %0 = vector.load %arg2[%c0, %c0_0] : memref<1x4xf32, #tpu.memory_space<vmem>>, vector<1x4xf32>
    %cst = arith.constant 0.001953125 : f32
    %1 = vector.broadcast %cst : f32 to vector<1x4xf32>
    %2 = arith.mulf %0, %1 : vector<1x4xf32>
    %c0_1 = arith.constant 0 : index
    %c0_2 = arith.constant 0 : index
    %3 = vector.load %arg3[%c0_1, %c0_2] : memref<1x4xf32, #tpu.memory_space<vmem>>, vector<1x4xf32>
    %cst_3 = arith.constant 0.001953125 : f32
    %4 = vector.broadcast %cst_3 : f32 to vector<1x4xf32>
    %5 = arith.mulf %3, %4 : vector<1x4xf32>
    %6 = arith.mulf %2, %2 : vector<1x4xf32>
    %7 = arith.subf %5, %6 : vector<1x4xf32>
    %cst_4 = arith.constant 0.000000e+00 : f32
    %8 = vector.broadcast %cst_4 : f32 to vector<1x4xf32>
    %9 = arith.maximumf %7, %8 : vector<1x4xf32>
    %c0_5 = arith.constant 0 : index
    %c0_6 = arith.constant 0 : index
    %10 = vector.load %arg4[%c0_5, %c0_6] : memref<1x4xf32, #tpu.memory_space<vmem>>, vector<1x4xf32>
    %cst_7 = arith.constant 9.99999974E-6 : f32
    %11 = vector.broadcast %cst_7 : f32 to vector<1x4xf32>
    %12 = arith.addf %9, %11 : vector<1x4xf32>
    %13 = math.rsqrt %12 : vector<1x4xf32>
    %14 = arith.mulf %10, %13 : vector<1x4xf32>
    %c0_8 = arith.constant 0 : index
    %c0_9 = arith.constant 0 : index
    %15 = vector.load %arg5[%c0_8, %c0_9] : memref<1x4xf32, #tpu.memory_space<vmem>>, vector<1x4xf32>
    %16 = arith.mulf %2, %14 : vector<1x4xf32>
    %17 = arith.subf %15, %16 : vector<1x4xf32>
    %c0_10 = arith.constant 0 : index
    %c0_11 = arith.constant 0 : index
    %18 = vector.load %arg1[%c0_10, %c0_11] : memref<256x4xf32, #tpu.memory_space<vmem>>, vector<256x4xf32>
    %19 = vector.broadcast %14 : vector<1x4xf32> to vector<256x4xf32>
    %20 = arith.mulf %18, %19 : vector<256x4xf32>
    %21 = vector.broadcast %17 : vector<1x4xf32> to vector<256x4xf32>
    %22 = arith.addf %20, %21 : vector<256x4xf32>
    %cst_12 = arith.constant 0.000000e+00 : f32
    %23 = vector.broadcast %cst_12 : f32 to vector<256x4xf32>
    %24 = arith.maximumf %22, %23 : vector<256x4xf32>
    %c0_13 = arith.constant 0 : index
    %c0_14 = arith.constant 0 : index
    %25 = vector.load %arg6[%c0_13, %c0_14] : memref<256x4xf32, #tpu.memory_space<vmem>>, vector<256x4xf32>
    tpu.vector_store %arg6[%c0_13, %c0_14], %24 {strides = array<i32>} : memref<256x4xf32, #tpu.memory_space<vmem>>, vector<256x4xf32>,
    return
  }
  func.func @transform_0(%arg0: i32) -> (i32, i32) {
    %c0_i32 = arith.constant 0 : i32
    %c0_i32_0 = arith.constant 0 : i32
    return %arg0, %c0_i32 : i32, i32
  }
  func.func @transform_1(%arg0: i32) -> (i32, i32) {
    %c0_i32 = arith.constant 0 : i32
    %c0_i32_0 = arith.constant 0 : i32
    %c0_i32_1 = arith.constant 0 : i32
    return %c0_i32, %c0_i32_0 : i32, i32
  }
  func.func @transform_2(%arg0: i32) -> (i32, i32) {
    %c0_i32 = arith.constant 0 : i32
    %c0_i32_0 = arith.constant 0 : i32
    %c0_i32_1 = arith.constant 0 : i32
    return %c0_i32, %c0_i32_0 : i32, i32
  }
  func.func @transform_3(%arg0: i32) -> (i32, i32) {
    %c0_i32 = arith.constant 0 : i32
    %c0_i32_0 = arith.constant 0 : i32
    %c0_i32_1 = arith.constant 0 : i32
    return %c0_i32, %c0_i32_0 : i32, i32
  }
  func.func @transform_4(%arg0: i32) -> (i32, i32) {
    %c0_i32 = arith.constant 0 : i32
    %c0_i32_0 = arith.constant 0 : i32
    %c0_i32_1 = arith.constant 0 : i32
    return %c0_i32, %c0_i32_0 : i32, i32
  }
  func.func @transform_5(%arg0: i32) -> (i32, i32) {
    %c0_i32 = arith.constant 0 : i32
    %c0_i32_0 = arith.constant 0 : i32
    return %arg0, %c0_i32 : i32, i32
  }
}

module attributes {stable_mosaic.version = 11 : i64} {
  func.func @_conv_stats_kernel(%arg0: i32, %arg1: memref<256x4xbf16, #tpu.memory_space<vmem>>, %arg2: memref<4x4xbf16, #tpu.memory_space<vmem>>, %arg3: memref<256x4xf32, #tpu.memory_space<vmem>>, %arg4: memref<1x4xf32, #tpu.memory_space<vmem>>, %arg5: memref<1x4xf32, #tpu.memory_space<vmem>>) attributes {dimension_semantics = [#tpu.dimension_semantics<arbitrary>], iteration_bounds = array<i64: 2>, scalar_prefetch = 0 : i64, scratch_operands = 0 : i64, tpu.core_type = #tpu.core_type<tc>, window_params = [{transform_indices = @transform_0, window_bounds = array<i64: 256, 4>}, {pipeline_mode = #tpu.pipeline_mode<synchronous>, transform_indices = @transform_1, window_bounds = array<i64: 4, 4>}, {transform_indices = @transform_2, window_bounds = array<i64: 256, 4>}, {pipeline_mode = #tpu.pipeline_mode<synchronous>, transform_indices = @transform_3, window_bounds = array<i64: 1, 4>}, {pipeline_mode = #tpu.pipeline_mode<synchronous>, transform_indices = @transform_4, window_bounds = array<i64: 1, 4>}]} {
    %c0_i32 = arith.constant 0 : i32
    %0 = arith.cmpi eq, %arg0, %c0_i32 : i32
    %1 = arith.extui %0 : i1 to i32
    %c0_i32_0 = arith.constant 0 : i32
    %2 = arith.cmpi ne, %1, %c0_i32_0 : i32
    scf.if %2 {
      %cst_16 = arith.constant 0.000000e+00 : f32
      %18 = vector.broadcast %cst_16 : f32 to vector<1x4xf32>
      %c0_17 = arith.constant 0 : index
      %c0_18 = arith.constant 0 : index
      %19 = vector.load %arg4[%c0_17, %c0_18] : memref<1x4xf32, #tpu.memory_space<vmem>>, vector<1x4xf32>
      tpu.vector_store %arg4[%c0_17, %c0_18], %18 {strides = array<i32>} : memref<1x4xf32, #tpu.memory_space<vmem>>, vector<1x4xf32>,
      %cst_19 = arith.constant 0.000000e+00 : f32
      %20 = vector.broadcast %cst_19 : f32 to vector<1x4xf32>
      %c0_20 = arith.constant 0 : index
      %c0_21 = arith.constant 0 : index
      %21 = vector.load %arg5[%c0_20, %c0_21] : memref<1x4xf32, #tpu.memory_space<vmem>>, vector<1x4xf32>
      tpu.vector_store %arg5[%c0_20, %c0_21], %20 {strides = array<i32>} : memref<1x4xf32, #tpu.memory_space<vmem>>, vector<1x4xf32>,
    } else {
    }
    %c0 = arith.constant 0 : index
    %c0_1 = arith.constant 0 : index
    %3 = vector.load %arg1[%c0, %c0_1] : memref<256x4xbf16, #tpu.memory_space<vmem>>, vector<256x4xbf16>
    %c0_2 = arith.constant 0 : index
    %c0_3 = arith.constant 0 : index
    %4 = vector.load %arg2[%c0_2, %c0_3] : memref<4x4xbf16, #tpu.memory_space<vmem>>, vector<4x4xbf16>
    %cst = arith.constant dense<0.000000e+00> : vector<256x4xf32>
    %5 = tpu.matmul %3, %4, %cst {dimension_numbers = #tpu.dot_dimension_numbers<[1], [0], [0], [1], [0, 0, 1, 1], [], []>} : vector<256x4xbf16>, vector<4x4xbf16>, vector<256x4xf32> -> vector<256x4xf32>
    %c0_4 = arith.constant 0 : index
    %c0_5 = arith.constant 0 : index
    %6 = vector.load %arg3[%c0_4, %c0_5] : memref<256x4xf32, #tpu.memory_space<vmem>>, vector<256x4xf32>
    tpu.vector_store %arg3[%c0_4, %c0_5], %5 {strides = array<i32>} : memref<256x4xf32, #tpu.memory_space<vmem>>, vector<256x4xf32>,
    %c0_6 = arith.constant 0 : index
    %c0_7 = arith.constant 0 : index
    %7 = vector.load %arg4[%c0_6, %c0_7] : memref<1x4xf32, #tpu.memory_space<vmem>>, vector<1x4xf32>
    %cst_8 = arith.constant dense<0.000000e+00> : vector<4xf32>
    %8 = vector.multi_reduction <add>, %5, %cst_8 [0] : vector<256x4xf32> to vector<4xf32>
    %9 = vector.shape_cast %8 : vector<4xf32> to vector<1x4xf32>
    %10 = arith.addf %7, %9 : vector<1x4xf32>
    %c0_9 = arith.constant 0 : index
    %c0_10 = arith.constant 0 : index
    %11 = vector.load %arg4[%c0_9, %c0_10] : memref<1x4xf32, #tpu.memory_space<vmem>>, vector<1x4xf32>
    tpu.vector_store %arg4[%c0_9, %c0_10], %10 {strides = array<i32>} : memref<1x4xf32, #tpu.memory_space<vmem>>, vector<1x4xf32>,
    %c0_11 = arith.constant 0 : index
    %c0_12 = arith.constant 0 : index
    %12 = vector.load %arg5[%c0_11, %c0_12] : memref<1x4xf32, #tpu.memory_space<vmem>>, vector<1x4xf32>
    %13 = arith.mulf %5, %5 : vector<256x4xf32>
    %cst_13 = arith.constant dense<0.000000e+00> : vector<4xf32>
    %14 = vector.multi_reduction <add>, %13, %cst_13 [0] : vector<256x4xf32> to vector<4xf32>
    %15 = vector.shape_cast %14 : vector<4xf32> to vector<1x4xf32>
    %16 = arith.addf %12, %15 : vector<1x4xf32>
    %c0_14 = arith.constant 0 : index
    %c0_15 = arith.constant 0 : index
    %17 = vector.load %arg5[%c0_14, %c0_15] : memref<1x4xf32, #tpu.memory_space<vmem>>, vector<1x4xf32>
    tpu.vector_store %arg5[%c0_14, %c0_15], %16 {strides = array<i32>} : memref<1x4xf32, #tpu.memory_space<vmem>>, vector<1x4xf32>,
    return
  }
  func.func @transform_0(%arg0: i32) -> (i32, i32) {
    %c0_i32 = arith.constant 0 : i32
    %c0_i32_0 = arith.constant 0 : i32
    return %arg0, %c0_i32 : i32, i32
  }
  func.func @transform_1(%arg0: i32) -> (i32, i32) {
    %c0_i32 = arith.constant 0 : i32
    %c0_i32_0 = arith.constant 0 : i32
    %c0_i32_1 = arith.constant 0 : i32
    return %c0_i32, %c0_i32_0 : i32, i32
  }
  func.func @transform_2(%arg0: i32) -> (i32, i32) {
    %c0_i32 = arith.constant 0 : i32
    %c0_i32_0 = arith.constant 0 : i32
    return %arg0, %c0_i32 : i32, i32
  }
  func.func @transform_3(%arg0: i32) -> (i32, i32) {
    %c0_i32 = arith.constant 0 : i32
    %c0_i32_0 = arith.constant 0 : i32
    %c0_i32_1 = arith.constant 0 : i32
    return %c0_i32, %c0_i32_0 : i32, i32
  }
  func.func @transform_4(%arg0: i32) -> (i32, i32) {
    %c0_i32 = arith.constant 0 : i32
    %c0_i32_0 = arith.constant 0 : i32
    %c0_i32_1 = arith.constant 0 : i32
    return %c0_i32, %c0_i32_0 : i32, i32
  }
}

module attributes {stable_mosaic.version = 11 : i64} {
  func.func @_conv_stats_kernel(%arg0: i32, %arg1: memref<256x36xbf16, #tpu.memory_space<vmem>>, %arg2: memref<36x2xbf16, #tpu.memory_space<vmem>>, %arg3: memref<256x2xf32, #tpu.memory_space<vmem>>, %arg4: memref<1x2xf32, #tpu.memory_space<vmem>>, %arg5: memref<1x2xf32, #tpu.memory_space<vmem>>) attributes {dimension_semantics = [#tpu.dimension_semantics<arbitrary>], iteration_bounds = array<i64: 2>, scalar_prefetch = 0 : i64, scratch_operands = 0 : i64, tpu.core_type = #tpu.core_type<tc>, window_params = [{transform_indices = @transform_0, window_bounds = array<i64: 256, 36>}, {pipeline_mode = #tpu.pipeline_mode<synchronous>, transform_indices = @transform_1, window_bounds = array<i64: 36, 2>}, {transform_indices = @transform_2, window_bounds = array<i64: 256, 2>}, {pipeline_mode = #tpu.pipeline_mode<synchronous>, transform_indices = @transform_3, window_bounds = array<i64: 1, 2>}, {pipeline_mode = #tpu.pipeline_mode<synchronous>, transform_indices = @transform_4, window_bounds = array<i64: 1, 2>}]} {
    %c0_i32 = arith.constant 0 : i32
    %0 = arith.cmpi eq, %arg0, %c0_i32 : i32
    %1 = arith.extui %0 : i1 to i32
    %c0_i32_0 = arith.constant 0 : i32
    %2 = arith.cmpi ne, %1, %c0_i32_0 : i32
    scf.if %2 {
      %cst_16 = arith.constant 0.000000e+00 : f32
      %18 = vector.broadcast %cst_16 : f32 to vector<1x2xf32>
      %c0_17 = arith.constant 0 : index
      %c0_18 = arith.constant 0 : index
      %19 = vector.load %arg4[%c0_17, %c0_18] : memref<1x2xf32, #tpu.memory_space<vmem>>, vector<1x2xf32>
      tpu.vector_store %arg4[%c0_17, %c0_18], %18 {strides = array<i32>} : memref<1x2xf32, #tpu.memory_space<vmem>>, vector<1x2xf32>,
      %cst_19 = arith.constant 0.000000e+00 : f32
      %20 = vector.broadcast %cst_19 : f32 to vector<1x2xf32>
      %c0_20 = arith.constant 0 : index
      %c0_21 = arith.constant 0 : index
      %21 = vector.load %arg5[%c0_20, %c0_21] : memref<1x2xf32, #tpu.memory_space<vmem>>, vector<1x2xf32>
      tpu.vector_store %arg5[%c0_20, %c0_21], %20 {strides = array<i32>} : memref<1x2xf32, #tpu.memory_space<vmem>>, vector<1x2xf32>,
    } else {
    }
    %c0 = arith.constant 0 : index
    %c0_1 = arith.constant 0 : index
    %3 = vector.load %arg1[%c0, %c0_1] : memref<256x36xbf16, #tpu.memory_space<vmem>>, vector<256x36xbf16>
    %c0_2 = arith.constant 0 : index
    %c0_3 = arith.constant 0 : index
    %4 = vector.load %arg2[%c0_2, %c0_3] : memref<36x2xbf16, #tpu.memory_space<vmem>>, vector<36x2xbf16>
    %cst = arith.constant dense<0.000000e+00> : vector<256x2xf32>
    %5 = tpu.matmul %3, %4, %cst {dimension_numbers = #tpu.dot_dimension_numbers<[1], [0], [0], [1], [0, 0, 1, 1], [], []>} : vector<256x36xbf16>, vector<36x2xbf16>, vector<256x2xf32> -> vector<256x2xf32>
    %c0_4 = arith.constant 0 : index
    %c0_5 = arith.constant 0 : index
    %6 = vector.load %arg3[%c0_4, %c0_5] : memref<256x2xf32, #tpu.memory_space<vmem>>, vector<256x2xf32>
    tpu.vector_store %arg3[%c0_4, %c0_5], %5 {strides = array<i32>} : memref<256x2xf32, #tpu.memory_space<vmem>>, vector<256x2xf32>,
    %c0_6 = arith.constant 0 : index
    %c0_7 = arith.constant 0 : index
    %7 = vector.load %arg4[%c0_6, %c0_7] : memref<1x2xf32, #tpu.memory_space<vmem>>, vector<1x2xf32>
    %cst_8 = arith.constant dense<0.000000e+00> : vector<2xf32>
    %8 = vector.multi_reduction <add>, %5, %cst_8 [0] : vector<256x2xf32> to vector<2xf32>
    %9 = vector.shape_cast %8 : vector<2xf32> to vector<1x2xf32>
    %10 = arith.addf %7, %9 : vector<1x2xf32>
    %c0_9 = arith.constant 0 : index
    %c0_10 = arith.constant 0 : index
    %11 = vector.load %arg4[%c0_9, %c0_10] : memref<1x2xf32, #tpu.memory_space<vmem>>, vector<1x2xf32>
    tpu.vector_store %arg4[%c0_9, %c0_10], %10 {strides = array<i32>} : memref<1x2xf32, #tpu.memory_space<vmem>>, vector<1x2xf32>,
    %c0_11 = arith.constant 0 : index
    %c0_12 = arith.constant 0 : index
    %12 = vector.load %arg5[%c0_11, %c0_12] : memref<1x2xf32, #tpu.memory_space<vmem>>, vector<1x2xf32>
    %13 = arith.mulf %5, %5 : vector<256x2xf32>
    %cst_13 = arith.constant dense<0.000000e+00> : vector<2xf32>
    %14 = vector.multi_reduction <add>, %13, %cst_13 [0] : vector<256x2xf32> to vector<2xf32>
    %15 = vector.shape_cast %14 : vector<2xf32> to vector<1x2xf32>
    %16 = arith.addf %12, %15 : vector<1x2xf32>
    %c0_14 = arith.constant 0 : index
    %c0_15 = arith.constant 0 : index
    %17 = vector.load %arg5[%c0_14, %c0_15] : memref<1x2xf32, #tpu.memory_space<vmem>>, vector<1x2xf32>
    tpu.vector_store %arg5[%c0_14, %c0_15], %16 {strides = array<i32>} : memref<1x2xf32, #tpu.memory_space<vmem>>, vector<1x2xf32>,
    return
  }
  func.func @transform_0(%arg0: i32) -> (i32, i32) {
    %c0_i32 = arith.constant 0 : i32
    %c0_i32_0 = arith.constant 0 : i32
    return %arg0, %c0_i32 : i32, i32
  }
  func.func @transform_1(%arg0: i32) -> (i32, i32) {
    %c0_i32 = arith.constant 0 : i32
    %c0_i32_0 = arith.constant 0 : i32
    %c0_i32_1 = arith.constant 0 : i32
    return %c0_i32, %c0_i32_0 : i32, i32
  }
  func.func @transform_2(%arg0: i32) -> (i32, i32) {
    %c0_i32 = arith.constant 0 : i32
    %c0_i32_0 = arith.constant 0 : i32
    return %arg0, %c0_i32 : i32, i32
  }
  func.func @transform_3(%arg0: i32) -> (i32, i32) {
    %c0_i32 = arith.constant 0 : i32
    %c0_i32_0 = arith.constant 0 : i32
    %c0_i32_1 = arith.constant 0 : i32
    return %c0_i32, %c0_i32_0 : i32, i32
  }
  func.func @transform_4(%arg0: i32) -> (i32, i32) {
    %c0_i32 = arith.constant 0 : i32
    %c0_i32_0 = arith.constant 0 : i32
    %c0_i32_1 = arith.constant 0 : i32
    return %c0_i32, %c0_i32_0 : i32, i32
  }
}

module attributes {stable_mosaic.version = 11 : i64} {
  func.func @_bn_relu_kernel(%arg0: i32, %arg1: memref<256x2xf32, #tpu.memory_space<vmem>>, %arg2: memref<1x2xf32, #tpu.memory_space<vmem>>, %arg3: memref<1x2xf32, #tpu.memory_space<vmem>>, %arg4: memref<1x2xf32, #tpu.memory_space<vmem>>, %arg5: memref<1x2xf32, #tpu.memory_space<vmem>>, %arg6: memref<256x2xf32, #tpu.memory_space<vmem>>) attributes {dimension_semantics = [#tpu.dimension_semantics<parallel>], iteration_bounds = array<i64: 2>, scalar_prefetch = 0 : i64, scratch_operands = 0 : i64, tpu.core_type = #tpu.core_type<tc>, window_params = [{transform_indices = @transform_0, window_bounds = array<i64: 256, 2>}, {pipeline_mode = #tpu.pipeline_mode<synchronous>, transform_indices = @transform_1, window_bounds = array<i64: 1, 2>}, {pipeline_mode = #tpu.pipeline_mode<synchronous>, transform_indices = @transform_2, window_bounds = array<i64: 1, 2>}, {pipeline_mode = #tpu.pipeline_mode<synchronous>, transform_indices = @transform_3, window_bounds = array<i64: 1, 2>}, {pipeline_mode = #tpu.pipeline_mode<synchronous>, transform_indices = @transform_4, window_bounds = array<i64: 1, 2>}, {transform_indices = @transform_5, window_bounds = array<i64: 256, 2>}]} {
    %c0 = arith.constant 0 : index
    %c0_0 = arith.constant 0 : index
    %0 = vector.load %arg2[%c0, %c0_0] : memref<1x2xf32, #tpu.memory_space<vmem>>, vector<1x2xf32>
    %cst = arith.constant 0.001953125 : f32
    %1 = vector.broadcast %cst : f32 to vector<1x2xf32>
    %2 = arith.mulf %0, %1 : vector<1x2xf32>
    %c0_1 = arith.constant 0 : index
    %c0_2 = arith.constant 0 : index
    %3 = vector.load %arg3[%c0_1, %c0_2] : memref<1x2xf32, #tpu.memory_space<vmem>>, vector<1x2xf32>
    %cst_3 = arith.constant 0.001953125 : f32
    %4 = vector.broadcast %cst_3 : f32 to vector<1x2xf32>
    %5 = arith.mulf %3, %4 : vector<1x2xf32>
    %6 = arith.mulf %2, %2 : vector<1x2xf32>
    %7 = arith.subf %5, %6 : vector<1x2xf32>
    %cst_4 = arith.constant 0.000000e+00 : f32
    %8 = vector.broadcast %cst_4 : f32 to vector<1x2xf32>
    %9 = arith.maximumf %7, %8 : vector<1x2xf32>
    %c0_5 = arith.constant 0 : index
    %c0_6 = arith.constant 0 : index
    %10 = vector.load %arg4[%c0_5, %c0_6] : memref<1x2xf32, #tpu.memory_space<vmem>>, vector<1x2xf32>
    %cst_7 = arith.constant 9.99999974E-6 : f32
    %11 = vector.broadcast %cst_7 : f32 to vector<1x2xf32>
    %12 = arith.addf %9, %11 : vector<1x2xf32>
    %13 = math.rsqrt %12 : vector<1x2xf32>
    %14 = arith.mulf %10, %13 : vector<1x2xf32>
    %c0_8 = arith.constant 0 : index
    %c0_9 = arith.constant 0 : index
    %15 = vector.load %arg5[%c0_8, %c0_9] : memref<1x2xf32, #tpu.memory_space<vmem>>, vector<1x2xf32>
    %16 = arith.mulf %2, %14 : vector<1x2xf32>
    %17 = arith.subf %15, %16 : vector<1x2xf32>
    %c0_10 = arith.constant 0 : index
    %c0_11 = arith.constant 0 : index
    %18 = vector.load %arg1[%c0_10, %c0_11] : memref<256x2xf32, #tpu.memory_space<vmem>>, vector<256x2xf32>
    %19 = vector.broadcast %14 : vector<1x2xf32> to vector<256x2xf32>
    %20 = arith.mulf %18, %19 : vector<256x2xf32>
    %21 = vector.broadcast %17 : vector<1x2xf32> to vector<256x2xf32>
    %22 = arith.addf %20, %21 : vector<256x2xf32>
    %cst_12 = arith.constant 0.000000e+00 : f32
    %23 = vector.broadcast %cst_12 : f32 to vector<256x2xf32>
    %24 = arith.maximumf %22, %23 : vector<256x2xf32>
    %c0_13 = arith.constant 0 : index
    %c0_14 = arith.constant 0 : index
    %25 = vector.load %arg6[%c0_13, %c0_14] : memref<256x2xf32, #tpu.memory_space<vmem>>, vector<256x2xf32>
    tpu.vector_store %arg6[%c0_13, %c0_14], %24 {strides = array<i32>} : memref<256x2xf32, #tpu.memory_space<vmem>>, vector<256x2xf32>,
    return
  }
  func.func @transform_0(%arg0: i32) -> (i32, i32) {
    %c0_i32 = arith.constant 0 : i32
    %c0_i32_0 = arith.constant 0 : i32
    return %arg0, %c0_i32 : i32, i32
  }
  func.func @transform_1(%arg0: i32) -> (i32, i32) {
    %c0_i32 = arith.constant 0 : i32
    %c0_i32_0 = arith.constant 0 : i32
    %c0_i32_1 = arith.constant 0 : i32
    return %c0_i32, %c0_i32_0 : i32, i32
  }
  func.func @transform_2(%arg0: i32) -> (i32, i32) {
    %c0_i32 = arith.constant 0 : i32
    %c0_i32_0 = arith.constant 0 : i32
    %c0_i32_1 = arith.constant 0 : i32
    return %c0_i32, %c0_i32_0 : i32, i32
  }
  func.func @transform_3(%arg0: i32) -> (i32, i32) {
    %c0_i32 = arith.constant 0 : i32
    %c0_i32_0 = arith.constant 0 : i32
    %c0_i32_1 = arith.constant 0 : i32
    return %c0_i32, %c0_i32_0 : i32, i32
  }
  func.func @transform_4(%arg0: i32) -> (i32, i32) {
    %c0_i32 = arith.constant 0 : i32
    %c0_i32_0 = arith.constant 0 : i32
    %c0_i32_1 = arith.constant 0 : i32
    return %c0_i32, %c0_i32_0 : i32, i32
  }
  func.func @transform_5(%arg0: i32) -> (i32, i32) {
    %c0_i32 = arith.constant 0 : i32
    %c0_i32_0 = arith.constant 0 : i32
    return %arg0, %c0_i32 : i32, i32
  }
}

module attributes {stable_mosaic.version = 11 : i64} {
  func.func @_conv_stats_kernel(%arg0: i32, %arg1: memref<256x18xbf16, #tpu.memory_space<vmem>>, %arg2: memref<18x2xbf16, #tpu.memory_space<vmem>>, %arg3: memref<256x2xf32, #tpu.memory_space<vmem>>, %arg4: memref<1x2xf32, #tpu.memory_space<vmem>>, %arg5: memref<1x2xf32, #tpu.memory_space<vmem>>) attributes {dimension_semantics = [#tpu.dimension_semantics<arbitrary>], iteration_bounds = array<i64: 2>, scalar_prefetch = 0 : i64, scratch_operands = 0 : i64, tpu.core_type = #tpu.core_type<tc>, window_params = [{transform_indices = @transform_0, window_bounds = array<i64: 256, 18>}, {pipeline_mode = #tpu.pipeline_mode<synchronous>, transform_indices = @transform_1, window_bounds = array<i64: 18, 2>}, {transform_indices = @transform_2, window_bounds = array<i64: 256, 2>}, {pipeline_mode = #tpu.pipeline_mode<synchronous>, transform_indices = @transform_3, window_bounds = array<i64: 1, 2>}, {pipeline_mode = #tpu.pipeline_mode<synchronous>, transform_indices = @transform_4, window_bounds = array<i64: 1, 2>}]} {
    %c0_i32 = arith.constant 0 : i32
    %0 = arith.cmpi eq, %arg0, %c0_i32 : i32
    %1 = arith.extui %0 : i1 to i32
    %c0_i32_0 = arith.constant 0 : i32
    %2 = arith.cmpi ne, %1, %c0_i32_0 : i32
    scf.if %2 {
      %cst_16 = arith.constant 0.000000e+00 : f32
      %18 = vector.broadcast %cst_16 : f32 to vector<1x2xf32>
      %c0_17 = arith.constant 0 : index
      %c0_18 = arith.constant 0 : index
      %19 = vector.load %arg4[%c0_17, %c0_18] : memref<1x2xf32, #tpu.memory_space<vmem>>, vector<1x2xf32>
      tpu.vector_store %arg4[%c0_17, %c0_18], %18 {strides = array<i32>} : memref<1x2xf32, #tpu.memory_space<vmem>>, vector<1x2xf32>,
      %cst_19 = arith.constant 0.000000e+00 : f32
      %20 = vector.broadcast %cst_19 : f32 to vector<1x2xf32>
      %c0_20 = arith.constant 0 : index
      %c0_21 = arith.constant 0 : index
      %21 = vector.load %arg5[%c0_20, %c0_21] : memref<1x2xf32, #tpu.memory_space<vmem>>, vector<1x2xf32>
      tpu.vector_store %arg5[%c0_20, %c0_21], %20 {strides = array<i32>} : memref<1x2xf32, #tpu.memory_space<vmem>>, vector<1x2xf32>,
    } else {
    }
    %c0 = arith.constant 0 : index
    %c0_1 = arith.constant 0 : index
    %3 = vector.load %arg1[%c0, %c0_1] : memref<256x18xbf16, #tpu.memory_space<vmem>>, vector<256x18xbf16>
    %c0_2 = arith.constant 0 : index
    %c0_3 = arith.constant 0 : index
    %4 = vector.load %arg2[%c0_2, %c0_3] : memref<18x2xbf16, #tpu.memory_space<vmem>>, vector<18x2xbf16>
    %cst = arith.constant dense<0.000000e+00> : vector<256x2xf32>
    %5 = tpu.matmul %3, %4, %cst {dimension_numbers = #tpu.dot_dimension_numbers<[1], [0], [0], [1], [0, 0, 1, 1], [], []>} : vector<256x18xbf16>, vector<18x2xbf16>, vector<256x2xf32> -> vector<256x2xf32>
    %c0_4 = arith.constant 0 : index
    %c0_5 = arith.constant 0 : index
    %6 = vector.load %arg3[%c0_4, %c0_5] : memref<256x2xf32, #tpu.memory_space<vmem>>, vector<256x2xf32>
    tpu.vector_store %arg3[%c0_4, %c0_5], %5 {strides = array<i32>} : memref<256x2xf32, #tpu.memory_space<vmem>>, vector<256x2xf32>,
    %c0_6 = arith.constant 0 : index
    %c0_7 = arith.constant 0 : index
    %7 = vector.load %arg4[%c0_6, %c0_7] : memref<1x2xf32, #tpu.memory_space<vmem>>, vector<1x2xf32>
    %cst_8 = arith.constant dense<0.000000e+00> : vector<2xf32>
    %8 = vector.multi_reduction <add>, %5, %cst_8 [0] : vector<256x2xf32> to vector<2xf32>
    %9 = vector.shape_cast %8 : vector<2xf32> to vector<1x2xf32>
    %10 = arith.addf %7, %9 : vector<1x2xf32>
    %c0_9 = arith.constant 0 : index
    %c0_10 = arith.constant 0 : index
    %11 = vector.load %arg4[%c0_9, %c0_10] : memref<1x2xf32, #tpu.memory_space<vmem>>, vector<1x2xf32>
    tpu.vector_store %arg4[%c0_9, %c0_10], %10 {strides = array<i32>} : memref<1x2xf32, #tpu.memory_space<vmem>>, vector<1x2xf32>,
    %c0_11 = arith.constant 0 : index
    %c0_12 = arith.constant 0 : index
    %12 = vector.load %arg5[%c0_11, %c0_12] : memref<1x2xf32, #tpu.memory_space<vmem>>, vector<1x2xf32>
    %13 = arith.mulf %5, %5 : vector<256x2xf32>
    %cst_13 = arith.constant dense<0.000000e+00> : vector<2xf32>
    %14 = vector.multi_reduction <add>, %13, %cst_13 [0] : vector<256x2xf32> to vector<2xf32>
    %15 = vector.shape_cast %14 : vector<2xf32> to vector<1x2xf32>
    %16 = arith.addf %12, %15 : vector<1x2xf32>
    %c0_14 = arith.constant 0 : index
    %c0_15 = arith.constant 0 : index
    %17 = vector.load %arg5[%c0_14, %c0_15] : memref<1x2xf32, #tpu.memory_space<vmem>>, vector<1x2xf32>
    tpu.vector_store %arg5[%c0_14, %c0_15], %16 {strides = array<i32>} : memref<1x2xf32, #tpu.memory_space<vmem>>, vector<1x2xf32>,
    return
  }
  func.func @transform_0(%arg0: i32) -> (i32, i32) {
    %c0_i32 = arith.constant 0 : i32
    %c0_i32_0 = arith.constant 0 : i32
    return %arg0, %c0_i32 : i32, i32
  }
  func.func @transform_1(%arg0: i32) -> (i32, i32) {
    %c0_i32 = arith.constant 0 : i32
    %c0_i32_0 = arith.constant 0 : i32
    %c0_i32_1 = arith.constant 0 : i32
    return %c0_i32, %c0_i32_0 : i32, i32
  }
  func.func @transform_2(%arg0: i32) -> (i32, i32) {
    %c0_i32 = arith.constant 0 : i32
    %c0_i32_0 = arith.constant 0 : i32
    return %arg0, %c0_i32 : i32, i32
  }
  func.func @transform_3(%arg0: i32) -> (i32, i32) {
    %c0_i32 = arith.constant 0 : i32
    %c0_i32_0 = arith.constant 0 : i32
    %c0_i32_1 = arith.constant 0 : i32
    return %c0_i32, %c0_i32_0 : i32, i32
  }
  func.func @transform_4(%arg0: i32) -> (i32, i32) {
    %c0_i32 = arith.constant 0 : i32
    %c0_i32_0 = arith.constant 0 : i32
    %c0_i32_1 = arith.constant 0 : i32
    return %c0_i32, %c0_i32_0 : i32, i32
  }
}

</mosaic_0001>

<llo_original>
// kernel: cat_bottleneck_forward.7
$region0: #{cat_bottleneck_forward.7}
  #allocation0 [shape = 'u32[]', space=smem, size = 0x4, offset = 0x4, fixed_abs, tag = 'smem constant byte address 0x4 - core index']
  #allocation1 [shape = 'u32[72,128]{1,0:T(1,128)}', space=vmem, size = 0x9000, scoped, tag = 'internal scratch']
  %s0 = inlined_call_operand.vmem [shape: f32[512,4], index: 0, kind: input, shape index: {}]
  %s1 = inlined_call_operand.vmem [shape: f32[1,4], index: 1, kind: input, shape index: {}]
  %s2 = inlined_call_operand.vmem [shape: f32[1,4], index: 2, kind: input, shape index: {}]
  %s3 = inlined_call_operand.vmem [shape: f32[1,4], index: 3, kind: input, shape index: {}]
  %s4 = inlined_call_operand.vmem [shape: f32[1,4], index: 4, kind: input, shape index: {}]
  %s5 = inlined_call_operand.vmem [shape: f32[512,4], index: 5, kind: output, shape index: {}]
  %s6 = sld [smem:[#allocation0]]
  $region53: #{cat_bottleneck_forward.7} parent=0
    _
  %s8 = ssub.s32 1, %s6
  %s9 = scalar_select 0, %s8, %s6
  loop: start=0, step=1, limit=4
  $region2: #{cat_bottleneck_forward.7} parent=0 // loop_pre_header
    _
  $region3: #{cat_bottleneck_forward.7} parent=0 // loop_header
    %s11 = sphi 0, %s15
    %p12 = scmp.ge.s32.totalorder %s11, 4
    %s21 = sphi 0, %s23
    %s24 = sphi 0, %s21
    %s25 = sphi 0, %s24
    %s41 = sphi 0, %s25
    %s45 = sphi 0, %s45
    %s47 = sphi 0, %s45
    %s48 = sphi 0, %s47
    %s62 = sphi 0, %s48
    %s66 = sphi 0, %s66
    %s68 = sphi 0, %s66
    %s69 = sphi 0, %s68
    %s83 = sphi 0, %s69
    %s87 = sphi 0, %s87
    %s89 = sphi 0, %s87
    %s90 = sphi 0, %s89
    %s104 = sphi 0, %s90
    %s108 = sphi 0, %s108
    %s110 = sphi 0, %s108
    %s111 = sphi 0, %s110
    %s125 = sphi 0, %s111
    %s131 = sphi 0, %s133
    %s134 = sphi 0, %s131
    %s135 = sphi 0, %s134
    %s151 = sphi 0, %s135
  $region4: #{cat_bottleneck_forward.7} parent=0 // loop_header_branch
    %14 = sbr.rel (%p12) target = $region8
  $region5: #{cat_bottleneck_forward.7} parent=0 // loop_body
    %s16 = ssub.s32 %s11, 1
    %s17 = ssub.s32 %s11, 2
    %s18 = sadd.s32 %s11, 1
    %s19 = ssub.s32 %s11, %s18
    %p20 = scmp.eq.s32.totalorder %s19, 0
    %s22 = sadd.s32 %s21, 1
    %s23 = scalar_select %p20, %s21, %s22
    %p26 = pneg %p20
    %p27 = scmp.eq.s32.totalorder %s11, 1
    %p28 = por %p26, %p27
    %p29 = scmp.ne.s32.totalorder %s21, %s24
    %p30 = scmp.eq.s32.totalorder %s11, 0
    %p31 = por %p29, %p30
    %p32 = scmp.ne.s32.totalorder %s21, %s24
    %p33 = scmp.eq.s32.totalorder %s16, 1
    %p34 = por %p32, %p33
    %p35 = scmp.ne.s32.totalorder %s24, %s25
    %p36 = scmp.eq.s32.totalorder %s16, 0
    %p37 = por %p35, %p36
    %p38 = scmp.ne.s32.totalorder %s24, %s25
    %p39 = scmp.eq.s32.totalorder %s17, 1
    %p40 = por %p38, %p39
    %p42 = scmp.ne.s32.totalorder %s25, %s41
    %p43 = scmp.eq.s32.totalorder %s17, 0
    %p44 = por %p42, %p43
    %s46 = sadd.s32 %s45, 1
    %p49 = scmp.eq.s32.totalorder %s11, 1
    %p50 = scmp.ne.s32.totalorder %s45, %s47
    %p51 = scmp.eq.s32.totalorder %s11, 0
    %p52 = por %p50, %p51
    %p53 = scmp.ne.s32.totalorder %s45, %s47
    %p54 = scmp.eq.s32.totalorder %s16, 1
    %p55 = por %p53, %p54
    %p56 = scmp.ne.s32.totalorder %s47, %s48
    %p57 = scmp.eq.s32.totalorder %s16, 0
    %p58 = por %p56, %p57
    %p59 = scmp.ne.s32.totalorder %s47, %s48
    %p60 = scmp.eq.s32.totalorder %s17, 1
    %p61 = por %p59, %p60
    %p63 = scmp.ne.s32.totalorder %s48, %s62
    %p64 = scmp.eq.s32.totalorder %s17, 0
    %p65 = por %p63, %p64
    %s67 = sadd.s32 %s66, 1
    %p70 = scmp.eq.s32.totalorder %s11, 1
    %p71 = scmp.ne.s32.totalorder %s66, %s68
    %p72 = scmp.eq.s32.totalorder %s11, 0
    %p73 = por %p71, %p72
    %p74 = scmp.ne.s32.totalorder %s66, %s68
    %p75 = scmp.eq.s32.totalorder %s16, 1
    %p76 = por %p74, %p75
    %p77 = scmp.ne.s32.totalorder %s68, %s69
    %p78 = scmp.eq.s32.totalorder %s16, 0
    %p79 = por %p77, %p78
    %p80 = scmp.ne.s32.totalorder %s68, %s69
    %p81 = scmp.eq.s32.totalorder %s17, 1
    %p82 = por %p80, %p81
    %p84 = scmp.ne.s32.totalorder %s69, %s83
    %p85 = scmp.eq.s32.totalorder %s17, 0
    %p86 = por %p84, %p85
    %s88 = sadd.s32 %s87, 1
    %p91 = scmp.eq.s32.totalorder %s11, 1
    %p92 = scmp.ne.s32.totalorder %s87, %s89
    %p93 = scmp.eq.s32.totalorder %s11, 0
    %p94 = por %p92, %p93
    %p95 = scmp.ne.s32.totalorder %s87, %s89
    %p96 = scmp.eq.s32.totalorder %s16, 1
    %p97 = por %p95, %p96
    %p98 = scmp.ne.s32.totalorder %s89, %s90
    %p99 = scmp.eq.s32.totalorder %s16, 0
    %p100 = por %p98, %p99
    %p101 = scmp.ne.s32.totalorder %s89, %s90
    %p102 = scmp.eq.s32.totalorder %s17, 1
    %p103 = por %p101, %p102
    %p105 = scmp.ne.s32.totalorder %s90, %s104
    %p106 = scmp.eq.s32.totalorder %s17, 0
    %p107 = por %p105, %p106
    %s109 = sadd.s32 %s108, 1
    %p112 = scmp.eq.s32.totalorder %s11, 1
    %p113 = scmp.ne.s32.totalorder %s108, %s110
    %p114 = scmp.eq.s32.totalorder %s11, 0
    %p115 = por %p113, %p114
    %p116 = scmp.ne.s32.totalorder %s108, %s110
    %p117 = scmp.eq.s32.totalorder %s16, 1
    %p118 = por %p116, %p117
    %p119 = scmp.ne.s32.totalorder %s110, %s111
    %p120 = scmp.eq.s32.totalorder %s16, 0
    %p121 = por %p119, %p120
    %p122 = scmp.ne.s32.totalorder %s110, %s111
    %p123 = scmp.eq.s32.totalorder %s17, 1
    %p124 = por %p122, %p123
    %p126 = scmp.ne.s32.totalorder %s111, %s125
    %p127 = scmp.eq.s32.totalorder %s17, 0
    %p128 = por %p126, %p127
    %s129 = ssub.s32 %s11, %s18
    %p130 = scmp.eq.s32.totalorder %s129, 0
    %s132 = sadd.s32 %s131, 1
    %s133 = scalar_select %p130, %s131, %s132
    %p136 = pneg %p130
    %p137 = scmp.eq.s32.totalorder %s11, 1
    %p138 = por %p136, %p137
    %p139 = scmp.ne.s32.totalorder %s131, %s134
    %p140 = scmp.eq.s32.totalorder %s11, 0
    %p141 = por %p139, %p140
    %p142 = scmp.ne.s32.totalorder %s131, %s134
    %p143 = scmp.eq.s32.totalorder %s16, 1
    %p144 = por %p142, %p143
    %p145 = scmp.ne.s32.totalorder %s134, %s135
    %p146 = scmp.eq.s32.totalorder %s16, 0
    %p147 = por %p145, %p146
    %p148 = scmp.ne.s32.totalorder %s134, %s135
    %p149 = scmp.eq.s32.totalorder %s17, 1
    %p150 = por %p148, %p149
    %p152 = scmp.ne.s32.totalorder %s135, %s151
    %p153 = scmp.eq.s32.totalorder %s17, 0
    %p154 = por %p152, %p153
    %p155 = scmp.le.s32.totalorder 1, %s11
    %p156 = scmp.lt.s32.totalorder %s11, 3
    %p157 = pnand %p155, %p156
    %p158 = pneg %p157
    // Predicated region
    $region9: #{cat_bottleneck_forward.7} parent=5 // pred_check
      _
    $region10: #{cat_bottleneck_forward.7} parent=5 // pred_check_branch
      %160 = sbr.rel (%p157) target = $region12
    $region11: #{cat_bottleneck_forward.7} parent=5 // pred_region
      %s161 = ssub.s32 %s11, 1
      // Predicated region
      $region13: #{cat_bottleneck_forward.7} parent=11 // pred_check
        %p162 = pneg %p58
      $region14: #{cat_bottleneck_forward.7} parent=11 // pred_check_branch
        %164 = sbr.rel (%p162) target = $region16
      $region15: #{cat_bottleneck_forward.7} parent=11 // pred_region
        _
      $region16: #{cat_bottleneck_forward.7} parent=11 // pred_fallthru
        _
      // Predicated region
      $region17: #{cat_bottleneck_forward.7} parent=11 // pred_check
        %p165 = pneg %p79
      $region18: #{cat_bottleneck_forward.7} parent=11 // pred_check_branch
        %167 = sbr.rel (%p165) target = $region20
      $region19: #{cat_bottleneck_forward.7} parent=11 // pred_region
        _
      $region20: #{cat_bottleneck_forward.7} parent=11 // pred_fallthru
        _
      // Predicated region
      $region21: #{cat_bottleneck_forward.7} parent=11 // pred_check
        %p168 = pneg %p100
      $region22: #{cat_bottleneck_forward.7} parent=11 // pred_check_branch
        %170 = sbr.rel (%p168) target = $region24
      $region23: #{cat_bottleneck_forward.7} parent=11 // pred_region
        _
      $region24: #{cat_bottleneck_forward.7} parent=11 // pred_fallthru
        _
      // Predicated region
      $region25: #{cat_bottleneck_forward.7} parent=11 // pred_check
        %p171 = pneg %p121
      $region26: #{cat_bottleneck_forward.7} parent=11 // pred_check_branch
        %173 = sbr.rel (%p171) target = $region28
      $region27: #{cat_bottleneck_forward.7} parent=11 // pred_region
        _
      $region28: #{cat_bottleneck_forward.7} parent=11 // pred_fallthru
        _
    $region12: #{cat_bottleneck_forward.7} parent=5 // pred_fallthru
      _
    %p174 = scmp.lt.s32.totalorder %s11, 2
    // Predicated region
    $region29: #{cat_bottleneck_forward.7} parent=5 // pred_check
      %p175 = pneg %p174
    $region30: #{cat_bottleneck_forward.7} parent=5 // pred_check_branch
      %177 = sbr.rel (%p175) target = $region32
    $region31: #{cat_bottleneck_forward.7} parent=5 // pred_region
      // Predicated region
      $region33: #{cat_bottleneck_forward.7} parent=31 // pred_check
        %p178 = pneg %p31
      $region34: #{cat_bottleneck_forward.7} parent=31 // pred_check_branch
        %180 = sbr.rel (%p178) target = $region36
      $region35: #{cat_bottleneck_forward.7} parent=31 // pred_region
        %s181 = smul.u32 32, %s11
        %p182 = scmp.lt.s32.totalorder %s181, 63
        %s183 = scalar_select %p182, %s181, 63
        %s184 = smul.addr %s183, 8
        %s185 = scalar_lea.vmem %s0, %s184
        %s186 = smul.u32 32, %s11
      $region36: #{cat_bottleneck_forward.7} parent=31 // pred_fallthru
        _
    $region32: #{cat_bottleneck_forward.7} parent=5 // pred_fallthru
      _
    %p187 = scmp.le.s32.totalorder 1, %s11
    %p188 = scmp.lt.s32.totalorder %s11, 3
    %p189 = pnand %p187, %p188
    %p190 = pneg %p189
    // Predicated region
    $region37: #{cat_bottleneck_forward.7} parent=5 // pred_check
      _
    $region38: #{cat_bottleneck_forward.7} parent=5 // pred_check_branch
      %192 = sbr.rel (%p189) target = $region40
    $region39: #{cat_bottleneck_forward.7} parent=5 // pred_region
      %s193 = ssub.s32 %s11, 1
      %s194 = smul.u32 32, %s16
      %p195 = scmp.lt.s32.totalorder %s194, 63
      %s196 = scalar_select %p195, %s194, 63
      %s197 = smul.addr %s196, 8
      %s198 = scalar_lea.vmem %s0, %s197
      %p199 = pneg %p37
      %p200 = pneg %p34
      %p201 = pneg %p58
      %p202 = pneg %p55
      %p203 = pneg %p79
      %p204 = pneg %p76
      %p205 = pneg %p100
      %p206 = pneg %p97
      %p207 = pneg %p121
      %p208 = pneg %p118
      %p209 = pneg %p147
      %p210 = pneg %p144
      %s211 = smul.u32 32, %s16
      %p212 = scmp.lt.s32.totalorder %s211, 63
      %s213 = scalar_select %p212, %s211, 63
      %s214 = smul.addr %s213, 8
      %s215 = scalar_lea.vmem %s5, %s214
      %s216 = smul.u32 32, %s16
      %p217 = scmp.lt.s32.totalorder %s216, 63
      %s218 = scalar_select %p217, %s216, 63
      %s219 = smul.addr %s218, 8
      %s220 = scalar_lea.vmem %s0, %s219
      %s221 = smul.u32 32, %s16
      %s222 = smul.u32 32, %s16
      %p223 = scmp.lt.s32.totalorder %s222, 63
      %s224 = scalar_select %p223, %s222, 63
      %s225 = smul.addr %s224, 8
      %s226 = scalar_lea.vmem %s5, %s225
      %s227 = smul.u32 32, %s16
      %v228 = vld [vmem:[%s1] sm:$0x1]
      %v229 = vmul.f32 %v228, 0.001953125
      %v230 = vld [vmem:[%s2] sm:$0x1]
      %v231 = vmul.f32 %v230, 0.001953125
      %v232 = vmul.f32 %v229, %v229
      %v233 = vsub.f32 %v231, %v232
      %v234 = vmax.f32 %v233, 0.0
      %v235 = vld [vmem:[%s3] sm:$0x1]
      %v236 = vadd.f32 %v234, 1e-05
      %v237 = vrsqrt.pop %v236
      %v238 = vmul.f32 %v237, %v236
      %v239 = vmul.f32 %v238, %v237
      %v240 = vmul.f32 0.5, %v239
      %v241 = vsub.f32 1.5, %v240
      %v242 = vmul.f32 %v237, %v241
      %vm243 = vweird.f32 %v236
      %vm244 = vweird.f32 %v237
      %vm245 = vmor %vm243, %vm244
      %v246 = vsel %vm245, %v237, %v242
      %v247 = vmul.f32 %v235, %v246
      %v248 = vld [vmem:[%s4] sm:$0x1]
      %v249 = vmul.f32 %v229, %v247
      %v250 = vsub.f32 %v248, %v249
      %v251 = vld [vmem:[%s220] sm:$0xff]
      %v252 = vld [vmem:[%s220 + $0x8] sm:$0xff]
      %v253 = vld [vmem:[%s220 + $0x10] sm:$0xff]
      %v254 = vld [vmem:[%s220 + $0x18] sm:$0xff]
      %v255 = vld [vmem:[%s220 + $0x20] sm:$0xff]
      %v256 = vld [vmem:[%s220 + $0x28] sm:$0xff]
      %v257 = vld [vmem:[%s220 + $0x30] sm:$0xff]
      %v258 = vld [vmem:[%s220 + $0x38] sm:$0xff]
      %v259 = vld [vmem:[%s220 + $0x40] sm:$0xff]
      %v260 = vld [vmem:[%s220 + $0x48] sm:$0xff]
      %v261 = vld [vmem:[%s220 + $0x50] sm:$0xff]
      %v262 = vld [vmem:[%s220 + $0x58] sm:$0xff]
      %v263 = vld [vmem:[%s220 + $0x60] sm:$0xff]
      %v264 = vld [vmem:[%s220 + $0x68] sm:$0xff]
      %v265 = vld [vmem:[%s220 + $0x70] sm:$0xff]
      %v266 = vld [vmem:[%s220 + $0x78] sm:$0xff]
      %v267 = vld [vmem:[%s220 + $0x80] sm:$0xff]
      %v268 = vld [vmem:[%s220 + $0x88] sm:$0xff]
      %v269 = vld [vmem:[%s220 + $0x90] sm:$0xff]
      %v270 = vld [vmem:[%s220 + $0x98] sm:$0xff]
      %v271 = vld [vmem:[%s220 + $0xa0] sm:$0xff]
      %v272 = vld [vmem:[%s220 + $0xa8] sm:$0xff]
      %v273 = vld [vmem:[%s220 + $0xb0] sm:$0xff]
      %v274 = vld [vmem:[%s220 + $0xb8] sm:$0xff]
      %v275 = vld [vmem:[%s220 + $0xc0] sm:$0xff]
      %v276 = vld [vmem:[%s220 + $0xc8] sm:$0xff]
      %v277 = vld [vmem:[%s220 + $0xd0] sm:$0xff]
      %v278 = vld [vmem:[%s220 + $0xd8] sm:$0xff]
      %v279 = vld [vmem:[%s220 + $0xe0] sm:$0xff]
      %v280 = vld [vmem:[%s220 + $0xe8] sm:$0xff]
      %v281 = vld [vmem:[%s220 + $0xf0] sm:$0xff]
      %v282 = vld [vmem:[%s220 + $0xf8] sm:$0xff]
      %v284 = vperm.slane %v247, 0
      %v286 = vmul.f32 %v251, %v284
      %v287 = vmul.f32 %v252, %v284
      %v288 = vmul.f32 %v253, %v284
      %v289 = vmul.f32 %v254, %v284
      %v290 = vmul.f32 %v255, %v284
      %v291 = vmul.f32 %v256, %v284
      %v292 = vmul.f32 %v257, %v284
      %v293 = vmul.f32 %v258, %v284
      %v294 = vmul.f32 %v259, %v284
      %v295 = vmul.f32 %v260, %v284
      %v296 = vmul.f32 %v261, %v284
      %v297 = vmul.f32 %v262, %v284
      %v298 = vmul.f32 %v263, %v284
      %v299 = vmul.f32 %v264, %v284
      %v300 = vmul.f32 %v265, %v284
      %v301 = vmul.f32 %v266, %v284
      %v302 = vmul.f32 %v267, %v284
      %v303 = vmul.f32 %v268, %v284
      %v304 = vmul.f32 %v269, %v284
      %v305 = vmul.f32 %v270, %v284
      %v306 = vmul.f32 %v271, %v284
      %v307 = vmul.f32 %v272, %v284
      %v308 = vmul.f32 %v273, %v284
      %v309 = vmul.f32 %v274, %v284
      %v310 = vmul.f32 %v275, %v284
      %v311 = vmul.f32 %v276, %v284
      %v312 = vmul.f32 %v277, %v284
      %v313 = vmul.f32 %v278, %v284
      %v314 = vmul.f32 %v279, %v284
      %v315 = vmul.f32 %v280, %v284
      %v316 = vmul.f32 %v281, %v284
      %v317 = vmul.f32 %v282, %v284
      %v319 = vperm.slane %v250, 0
      %v321 = vadd.f32 %v286, %v319
      %v322 = vadd.f32 %v287, %v319
      %v323 = vadd.f32 %v288, %v319
      %v324 = vadd.f32 %v289, %v319
      %v325 = vadd.f32 %v290, %v319
      %v326 = vadd.f32 %v291, %v319
      %v327 = vadd.f32 %v292, %v319
      %v328 = vadd.f32 %v293, %v319
      %v329 = vadd.f32 %v294, %v319
      %v330 = vadd.f32 %v295, %v319
      %v331 = vadd.f32 %v296, %v319
      %v332 = vadd.f32 %v297, %v319
      %v333 = vadd.f32 %v298, %v319
      %v334 = vadd.f32 %v299, %v319
      %v335 = vadd.f32 %v300, %v319
      %v336 = vadd.f32 %v301, %v319
      %v337 = vadd.f32 %v302, %v319
      %v338 = vadd.f32 %v303, %v319
      %v339 = vadd.f32 %v304, %v319
      %v340 = vadd.f32 %v305, %v319
      %v341 = vadd.f32 %v306, %v319
      %v342 = vadd.f32 %v307, %v319
      %v343 = vadd.f32 %v308, %v319
      %v344 = vadd.f32 %v309, %v319
      %v345 = vadd.f32 %v310, %v319
      %v346 = vadd.f32 %v311, %v319
      %v347 = vadd.f32 %v312, %v319
      %v348 = vadd.f32 %v313, %v319
      %v349 = vadd.f32 %v314, %v319
      %v350 = vadd.f32 %v315, %v319
      %v351 = vadd.f32 %v316, %v319
      %v352 = vadd.f32 %v317, %v319
      %v353 = vmax.f32 %v321, 0.0
      %v354 = vmax.f32 %v322, 0.0
      %v355 = vmax.f32 %v323, 0.0
      %v356 = vmax.f32 %v324, 0.0
      %v357 = vmax.f32 %v325, 0.0
      %v358 = vmax.f32 %v326, 0.0
      %v359 = vmax.f32 %v327, 0.0
      %v360 = vmax.f32 %v328, 0.0
      %v361 = vmax.f32 %v329, 0.0
      %v362 = vmax.f32 %v330, 0.0
      %v363 = vmax.f32 %v331, 0.0
      %v364 = vmax.f32 %v332, 0.0
      %v365 = vmax.f32 %v333, 0.0
      %v366 = vmax.f32 %v334, 0.0
      %v367 = vmax.f32 %v335, 0.0
      %v368 = vmax.f32 %v336, 0.0
      %v369 = vmax.f32 %v337, 0.0
      %v370 = vmax.f32 %v338, 0.0
      %v371 = vmax.f32 %v339, 0.0
      %v372 = vmax.f32 %v340, 0.0
      %v373 = vmax.f32 %v341, 0.0
      %v374 = vmax.f32 %v342, 0.0
      %v375 = vmax.f32 %v343, 0.0
      %v376 = vmax.f32 %v344, 0.0
      %v377 = vmax.f32 %v345, 0.0
      %v378 = vmax.f32 %v346, 0.0
      %v379 = vmax.f32 %v347, 0.0
      %v380 = vmax.f32 %v348, 0.0
      %v381 = vmax.f32 %v349, 0.0
      %v382 = vmax.f32 %v350, 0.0
      %v383 = vmax.f32 %v351, 0.0
      %v384 = vmax.f32 %v352, 0.0
      %vm385 = vcmask 31744
      %386 = vst.msk [vmem:[%s226] sm:$0xff] %vm385, %v353
      %387 = vst.msk [vmem:[%s226 + $0x8] sm:$0xff] %vm385, %v354
      %388 = vst.msk [vmem:[%s226 + $0x10] sm:$0xff] %vm385, %v355
      %389 = vst.msk [vmem:[%s226 + $0x18] sm:$0xff] %vm385, %v356
      %390 = vst.msk [vmem:[%s226 + $0x20] sm:$0xff] %vm385, %v357
      %391 = vst.msk [vmem:[%s226 + $0x28] sm:$0xff] %vm385, %v358
      %392 = vst.msk [vmem:[%s226 + $0x30] sm:$0xff] %vm385, %v359
      %393 = vst.msk [vmem:[%s226 + $0x38] sm:$0xff] %vm385, %v360
      %394 = vst.msk [vmem:[%s226 + $0x40] sm:$0xff] %vm385, %v361
      %395 = vst.msk [vmem:[%s226 + $0x48] sm:$0xff] %vm385, %v362
      %396 = vst.msk [vmem:[%s226 + $0x50] sm:$0xff] %vm385, %v363
      %397 = vst.msk [vmem:[%s226 + $0x58] sm:$0xff] %vm385, %v364
      %398 = vst.msk [vmem:[%s226 + $0x60] sm:$0xff] %vm385, %v365
      %399 = vst.msk [vmem:[%s226 + $0x68] sm:$0xff] %vm385, %v366
      %400 = vst.msk [vmem:[%s226 + $0x70] sm:$0xff] %vm385, %v367
      %401 = vst.msk [vmem:[%s226 + $0x78] sm:$0xff] %vm385, %v368
      %402 = vst.msk [vmem:[%s226 + $0x80] sm:$0xff] %vm385, %v369
      %403 = vst.msk [vmem:[%s226 + $0x88] sm:$0xff] %vm385, %v370
      %404 = vst.msk [vmem:[%s226 + $0x90] sm:$0xff] %vm385, %v371
      %405 = vst.msk [vmem:[%s226 + $0x98] sm:$0xff] %vm385, %v372
      %406 = vst.msk [vmem:[%s226 + $0xa0] sm:$0xff] %vm385, %v373
      %407 = vst.msk [vmem:[%s226 + $0xa8] sm:$0xff] %vm385, %v374
      %408 = vst.msk [vmem:[%s226 + $0xb0] sm:$0xff] %vm385, %v375
      %409 = vst.msk [vmem:[%s226 + $0xb8] sm:$0xff] %vm385, %v376
      %410 = vst.msk [vmem:[%s226 + $0xc0] sm:$0xff] %vm385, %v377
      %411 = vst.msk [vmem:[%s226 + $0xc8] sm:$0xff] %vm385, %v378
      %412 = vst.msk [vmem:[%s226 + $0xd0] sm:$0xff] %vm385, %v379
      %413 = vst.msk [vmem:[%s226 + $0xd8] sm:$0xff] %vm385, %v380
      %414 = vst.msk [vmem:[%s226 + $0xe0] sm:$0xff] %vm385, %v381
      %415 = vst.msk [vmem:[%s226 + $0xe8] sm:$0xff] %vm385, %v382
      %416 = vst.msk [vmem:[%s226 + $0xf0] sm:$0xff] %vm385, %v383
      %417 = vst.msk [vmem:[%s226 + $0xf8] sm:$0xff] %vm385, %v384
      %s418 = smul.u32 32, %s16
      %p419 = scmp.lt.s32.totalorder %s418, 63
      %s420 = scalar_select %p419, %s418, 63
      %s421 = smul.addr %s420, 8
      %s422 = scalar_lea.vmem %s5, %s421
      // Predicated region
      $region41: #{cat_bottleneck_forward.7} parent=39 // pred_check
        %p423 = pneg %p144
      $region42: #{cat_bottleneck_forward.7} parent=39 // pred_check_branch
        %425 = sbr.rel (%p423) target = $region44
      $region43: #{cat_bottleneck_forward.7} parent=39 // pred_region
        %s426 = smul.u32 32, %s16
      $region44: #{cat_bottleneck_forward.7} parent=39 // pred_fallthru
        _
    $region40: #{cat_bottleneck_forward.7} parent=5 // pred_fallthru
      _
    %p427 = scmp.le.s32.totalorder 2, %s11
    // Predicated region
    $region45: #{cat_bottleneck_forward.7} parent=5 // pred_check
      %p428 = pneg %p427
    $region46: #{cat_bottleneck_forward.7} parent=5 // pred_check_branch
      %430 = sbr.rel (%p428) target = $region48
    $region47: #{cat_bottleneck_forward.7} parent=5 // pred_region
      %s431 = ssub.s32 %s11, 2
      // Predicated region
      $region49: #{cat_bottleneck_forward.7} parent=47 // pred_check
        %p432 = pneg %p150
      $region50: #{cat_bottleneck_forward.7} parent=47 // pred_check_branch
        %434 = sbr.rel (%p432) target = $region52
      $region51: #{cat_bottleneck_forward.7} parent=47 // pred_region
        %s435 = smul.u32 32, %s17
        %p436 = scmp.lt.s32.totalorder %s435, 63
        %s437 = scalar_select %p436, %s435, 63
        %s438 = smul.addr %s437, 8
        %s439 = scalar_lea.vmem %s5, %s438
      $region52: #{cat_bottleneck_forward.7} parent=47 // pred_fallthru
        _
    $region48: #{cat_bottleneck_forward.7} parent=5 // pred_fallthru
      _
  $region6: #{cat_bottleneck_forward.7} parent=0 // loop_footer
    %s15 = sadd.s32 1, %s11
  $region7: #{cat_bottleneck_forward.7} parent=0 // loop_footer_branch
    %10 = sbr.rel target = $region3
  $region8: #{cat_bottleneck_forward.7} parent=0 // loop_exit
    _

// kernel: cat_bottleneck_forward.6
$region0: #{cat_bottleneck_forward.6}
  #allocation0 [shape = 'u32[]', space=smem, size = 0x4, offset = 0x4, fixed_abs, tag = 'smem constant byte address 0x4 - core index']
  #allocation1 [shape = 'u32[72,128]{1,0:T(1,128)}', space=vmem, size = 0x9000, scoped, tag = 'internal scratch']
  %s0 = inlined_call_operand.vmem [shape: bf16[512,4], index: 0, kind: input, shape index: {}]
  %s1 = inlined_call_operand.vmem [shape: bf16[4,4], index: 1, kind: input, shape index: {}]
  %s2 = inlined_call_operand.vmem [shape: f32[512,4], index: 2, kind: output, shape index: {0}]
  %s3 = inlined_call_operand.vmem [shape: f32[1,4], index: 3, kind: output, shape index: {1}]
  %s4 = inlined_call_operand.vmem [shape: f32[1,4], index: 4, kind: output, shape index: {2}]
  %5 = xla_tuple %s2, %s3, %s4
  %s6 = sld [smem:[#allocation0]]
  $region61: #{cat_bottleneck_forward.6} parent=0
    _
  %s8 = ssub.s32 1, %s6
  %s9 = scalar_select 0, %s8, %s6
  loop: start=0, step=1, limit=4
  $region2: #{cat_bottleneck_forward.6} parent=0 // loop_pre_header
    _
  $region3: #{cat_bottleneck_forward.6} parent=0 // loop_header
    %s11 = sphi 0, %s15
    %p12 = scmp.ge.s32.totalorder %s11, 4
    %s21 = sphi 0, %s23
    %s24 = sphi 0, %s21
    %s25 = sphi 0, %s24
    %s41 = sphi 0, %s25
    %s45 = sphi 0, %s45
    %s47 = sphi 0, %s45
    %s48 = sphi 0, %s47
    %s62 = sphi 0, %s48
    %s68 = sphi 0, %s70
    %s71 = sphi 0, %s68
    %s72 = sphi 0, %s71
    %s88 = sphi 0, %s72
    %s92 = sphi 0, %s92
    %s94 = sphi 0, %s92
    %s95 = sphi 0, %s94
    %s109 = sphi 0, %s95
    %s113 = sphi 0, %s113
    %s115 = sphi 0, %s113
    %s116 = sphi 0, %s115
    %s130 = sphi 0, %s116
  $region4: #{cat_bottleneck_forward.6} parent=0 // loop_header_branch
    %14 = sbr.rel (%p12) target = $region8
  $region5: #{cat_bottleneck_forward.6} parent=0 // loop_body
    %s16 = ssub.s32 %s11, 1
    %s17 = ssub.s32 %s11, 2
    %s18 = sadd.s32 %s11, 1
    %s19 = ssub.s32 %s11, %s18
    %p20 = scmp.eq.s32.totalorder %s19, 0
    %s22 = sadd.s32 %s21, 1
    %s23 = scalar_select %p20, %s21, %s22
    %p26 = pneg %p20
    %p27 = scmp.eq.s32.totalorder %s11, 1
    %p28 = por %p26, %p27
    %p29 = scmp.ne.s32.totalorder %s21, %s24
    %p30 = scmp.eq.s32.totalorder %s11, 0
    %p31 = por %p29, %p30
    %p32 = scmp.ne.s32.totalorder %s21, %s24
    %p33 = scmp.eq.s32.totalorder %s16, 1
    %p34 = por %p32, %p33
    %p35 = scmp.ne.s32.totalorder %s24, %s25
    %p36 = scmp.eq.s32.totalorder %s16, 0
    %p37 = por %p35, %p36
    %p38 = scmp.ne.s32.totalorder %s24, %s25
    %p39 = scmp.eq.s32.totalorder %s17, 1
    %p40 = por %p38, %p39
    %p42 = scmp.ne.s32.totalorder %s25, %s41
    %p43 = scmp.eq.s32.totalorder %s17, 0
    %p44 = por %p42, %p43
    %s46 = sadd.s32 %s45, 1
    %p49 = scmp.eq.s32.totalorder %s11, 1
    %p50 = scmp.ne.s32.totalorder %s45, %s47
    %p51 = scmp.eq.s32.totalorder %s11, 0
    %p52 = por %p50, %p51
    %p53 = scmp.ne.s32.totalorder %s45, %s47
    %p54 = scmp.eq.s32.totalorder %s16, 1
    %p55 = por %p53, %p54
    %p56 = scmp.ne.s32.totalorder %s47, %s48
    %p57 = scmp.eq.s32.totalorder %s16, 0
    %p58 = por %p56, %p57
    %p59 = scmp.ne.s32.totalorder %s47, %s48
    %p60 = scmp.eq.s32.totalorder %s17, 1
    %p61 = por %p59, %p60
    %p63 = scmp.ne.s32.totalorder %s48, %s62
    %p64 = scmp.eq.s32.totalorder %s17, 0
    %p65 = por %p63, %p64
    %s66 = ssub.s32 %s11, %s18
    %p67 = scmp.eq.s32.totalorder %s66, 0
    %s69 = sadd.s32 %s68, 1
    %s70 = scalar_select %p67, %s68, %s69
    %p73 = pneg %p67
    %p74 = scmp.eq.s32.totalorder %s11, 1
    %p75 = por %p73, %p74
    %p76 = scmp.ne.s32.totalorder %s68, %s71
    %p77 = scmp.eq.s32.totalorder %s11, 0
    %p78 = por %p76, %p77
    %p79 = scmp.ne.s32.totalorder %s68, %s71
    %p80 = scmp.eq.s32.totalorder %s16, 1
    %p81 = por %p79, %p80
    %p82 = scmp.ne.s32.totalorder %s71, %s72
    %p83 = scmp.eq.s32.totalorder %s16, 0
    %p84 = por %p82, %p83
    %p85 = scmp.ne.s32.totalorder %s71, %s72
    %p86 = scmp.eq.s32.totalorder %s17, 1
    %p87 = por %p85, %p86
    %p89 = scmp.ne.s32.totalorder %s72, %s88
    %p90 = scmp.eq.s32.totalorder %s17, 0
    %p91 = por %p89, %p90
    %s93 = sadd.s32 %s92, 1
    %p96 = scmp.eq.s32.totalorder %s11, 1
    %p97 = scmp.ne.s32.totalorder %s92, %s94
    %p98 = scmp.eq.s32.totalorder %s11, 0
    %p99 = por %p97, %p98
    %p100 = scmp.ne.s32.totalorder %s92, %s94
    %p101 = scmp.eq.s32.totalorder %s16, 1
    %p102 = por %p100, %p101
    %p103 = scmp.ne.s32.totalorder %s94, %s95
    %p104 = scmp.eq.s32.totalorder %s16, 0
    %p105 = por %p103, %p104
    %p106 = scmp.ne.s32.totalorder %s94, %s95
    %p107 = scmp.eq.s32.totalorder %s17, 1
    %p108 = por %p106, %p107
    %p110 = scmp.ne.s32.totalorder %s95, %s109
    %p111 = scmp.eq.s32.totalorder %s17, 0
    %p112 = por %p110, %p111
    %s114 = sadd.s32 %s113, 1
    %p117 = scmp.eq.s32.totalorder %s11, 1
    %p118 = scmp.ne.s32.totalorder %s113, %s115
    %p119 = scmp.eq.s32.totalorder %s11, 0
    %p120 = por %p118, %p119
    %p121 = scmp.ne.s32.totalorder %s113, %s115
    %p122 = scmp.eq.s32.totalorder %s16, 1
    %p123 = por %p121, %p122
    %p124 = scmp.ne.s32.totalorder %s115, %s116
    %p125 = scmp.eq.s32.totalorder %s16, 0
    %p126 = por %p124, %p125
    %p127 = scmp.ne.s32.totalorder %s115, %s116
    %p128 = scmp.eq.s32.totalorder %s17, 1
    %p129 = por %p127, %p128
    %p131 = scmp.ne.s32.totalorder %s116, %s130
    %p132 = scmp.eq.s32.totalorder %s17, 0
    %p133 = por %p131, %p132
    %p134 = scmp.le.s32.totalorder 1, %s11
    %p135 = scmp.lt.s32.totalorder %s11, 3
    %p136 = pnand %p134, %p135
    %p137 = pneg %p136
    // Predicated region
    $region9: #{cat_bottleneck_forward.6} parent=5 // pred_check
      _
    $region10: #{cat_bottleneck_forward.6} parent=5 // pred_check_branch
      %139 = sbr.rel (%p136) target = $region12
    $region11: #{cat_bottleneck_forward.6} parent=5 // pred_region
      %s140 = ssub.s32 %s11, 1
      // Predicated region
      $region13: #{cat_bottleneck_forward.6} parent=11 // pred_check
        %p141 = pneg %p58
      $region14: #{cat_bottleneck_forward.6} parent=11 // pred_check_branch
        %143 = sbr.rel (%p141) target = $region16
      $region15: #{cat_bottleneck_forward.6} parent=11 // pred_region
        _
      $region16: #{cat_bottleneck_forward.6} parent=11 // pred_fallthru
        _
    $region12: #{cat_bottleneck_forward.6} parent=5 // pred_fallthru
      _
    %p144 = scmp.lt.s32.totalorder %s11, 2
    // Predicated region
    $region17: #{cat_bottleneck_forward.6} parent=5 // pred_check
      %p145 = pneg %p144
    $region18: #{cat_bottleneck_forward.6} parent=5 // pred_check_branch
      %147 = sbr.rel (%p145) target = $region20
    $region19: #{cat_bottleneck_forward.6} parent=5 // pred_region
      // Predicated region
      $region21: #{cat_bottleneck_forward.6} parent=19 // pred_check
        %p148 = pneg %p31
      $region22: #{cat_bottleneck_forward.6} parent=19 // pred_check_branch
        %150 = sbr.rel (%p148) target = $region24
      $region23: #{cat_bottleneck_forward.6} parent=19 // pred_region
        %s151 = smul.u32 32, %s11
        %p152 = scmp.lt.s32.totalorder %s151, 63
        %s153 = scalar_select %p152, %s151, 63
        %s154 = smul.addr %s153, 4
        %s155 = scalar_lea.vmem %s0, %s154
        %s156 = smul.u32 32, %s11
      $region24: #{cat_bottleneck_forward.6} parent=19 // pred_fallthru
        _
    $region20: #{cat_bottleneck_forward.6} parent=5 // pred_fallthru
      _
    %p157 = scmp.le.s32.totalorder 1, %s11
    %p158 = scmp.lt.s32.totalorder %s11, 3
    %p159 = pnand %p157, %p158
    %p160 = pneg %p159
    // Predicated region
    $region25: #{cat_bottleneck_forward.6} parent=5 // pred_check
      _
    $region26: #{cat_bottleneck_forward.6} parent=5 // pred_check_branch
      %162 = sbr.rel (%p159) target = $region28
    $region27: #{cat_bottleneck_forward.6} parent=5 // pred_region
      %s163 = ssub.s32 %s11, 1
      %s164 = smul.u32 32, %s16
      %p165 = scmp.lt.s32.totalorder %s164, 63
      %s166 = scalar_select %p165, %s164, 63
      %s167 = smul.addr %s166, 4
      %s168 = scalar_lea.vmem %s0, %s167
      %p169 = pneg %p37
      %p170 = pneg %p34
      %p171 = pneg %p58
      %p172 = pneg %p55
      %p173 = pneg %p84
      %p174 = pneg %p81
      %s175 = smul.u32 32, %s16
      %p176 = scmp.lt.s32.totalorder %s175, 63
      %s177 = scalar_select %p176, %s175, 63
      %s178 = smul.addr %s177, 8
      %s179 = scalar_lea.vmem %s2, %s178
      %p180 = pneg %p105
      %p181 = pneg %p102
      %p182 = pneg %p126
      %p183 = pneg %p123
      %s184 = smul.u32 32, %s16
      %p185 = scmp.lt.s32.totalorder %s184, 63
      %s186 = scalar_select %p185, %s184, 63
      %s187 = smul.addr %s186, 4
      %s188 = scalar_lea.vmem %s0, %s187
      %s189 = smul.u32 32, %s16
      %s190 = smul.u32 32, %s16
      %p191 = scmp.lt.s32.totalorder %s190, 63
      %s192 = scalar_select %p191, %s190, 63
      %s193 = smul.addr %s192, 8
      %s194 = scalar_lea.vmem %s2, %s193
      %s195 = smul.u32 32, %s16
      %p197 = scmp.eq.s32.totalorder %s16, 0
      // Predicated region
      $region29: #{cat_bottleneck_forward.6} parent=27 // pred_check
        %p198 = pneg %p197
      $region30: #{cat_bottleneck_forward.6} parent=27 // pred_check_branch
        %200 = sbr.rel (%p198) target = $region32
      $region31: #{cat_bottleneck_forward.6} parent=27 // pred_region
        %vm201 = vcmask 24576
        %202 = vst.msk [vmem:[%s3] sm:$0x1] %vm201, 0.0
        %203 = vst.msk [vmem:[%s4] sm:$0x1] %vm201, 0.0
      $region32: #{cat_bottleneck_forward.6} parent=27 // pred_fallthru
        _
      %v204 = vld [vmem:[%s188] sm:$0xf]
      %v205 = vld [vmem:[%s188 + $0x4] sm:$0xf]
      %v206 = vld [vmem:[%s188 + $0x8] sm:$0xf]
      %v207 = vld [vmem:[%s188 + $0xc] sm:$0xf]
      %v208 = vld [vmem:[%s188 + $0x10] sm:$0xf]
      %v209 = vld [vmem:[%s188 + $0x14] sm:$0xf]
      %v210 = vld [vmem:[%s188 + $0x18] sm:$0xf]
      %v211 = vld [vmem:[%s188 + $0x1c] sm:$0xf]
      %v212 = vld [vmem:[%s188 + $0x20] sm:$0xf]
      %v213 = vld [vmem:[%s188 + $0x24] sm:$0xf]
      %v214 = vld [vmem:[%s188 + $0x28] sm:$0xf]
      %v215 = vld [vmem:[%s188 + $0x2c] sm:$0xf]
      %v216 = vld [vmem:[%s188 + $0x30] sm:$0xf]
      %v217 = vld [vmem:[%s188 + $0x34] sm:$0xf]
      %v218 = vld [vmem:[%s188 + $0x38] sm:$0xf]
      %v219 = vld [vmem:[%s188 + $0x3c] sm:$0xf]
      %v220 = vld [vmem:[%s188 + $0x40] sm:$0xf]
      %v221 = vld [vmem:[%s188 + $0x44] sm:$0xf]
      %v222 = vld [vmem:[%s188 + $0x48] sm:$0xf]
      %v223 = vld [vmem:[%s188 + $0x4c] sm:$0xf]
      %v224 = vld [vmem:[%s188 + $0x50] sm:$0xf]
      %v225 = vld [vmem:[%s188 + $0x54] sm:$0xf]
      %v226 = vld [vmem:[%s188 + $0x58] sm:$0xf]
      %v227 = vld [vmem:[%s188 + $0x5c] sm:$0xf]
      %v228 = vld [vmem:[%s188 + $0x60] sm:$0xf]
      %v229 = vld [vmem:[%s188 + $0x64] sm:$0xf]
      %v230 = vld [vmem:[%s188 + $0x68] sm:$0xf]
      %v231 = vld [vmem:[%s188 + $0x6c] sm:$0xf]
      %v232 = vld [vmem:[%s188 + $0x70] sm:$0xf]
      %v233 = vld [vmem:[%s188 + $0x74] sm:$0xf]
      %v234 = vld [vmem:[%s188 + $0x78] sm:$0xf]
      %v235 = vld [vmem:[%s188 + $0x7c] sm:$0xf]
      %v236 = vld [vmem:[%s1] sm:$0x3]
      %v269 = vunpack.c.l.b16 %v204
      %v270 = vunpack.c.l.b16 %v205
      %v271 = vunpack.c.l.b16 %v206
      %v272 = vunpack.c.l.b16 %v207
      %v273 = vunpack.c.l.b16 %v208
      %v274 = vunpack.c.l.b16 %v209
      %v275 = vunpack.c.l.b16 %v210
      %v276 = vunpack.c.l.b16 %v211
      %v277 = vunpack.c.l.b16 %v212
      %v278 = vunpack.c.l.b16 %v213
      %v279 = vunpack.c.l.b16 %v214
      %v280 = vunpack.c.l.b16 %v215
      %v281 = vunpack.c.l.b16 %v216
      %v282 = vunpack.c.l.b16 %v217
      %v283 = vunpack.c.l.b16 %v218
      %v284 = vunpack.c.l.b16 %v219
      %v285 = vunpack.c.l.b16 %v220
      %v286 = vunpack.c.l.b16 %v221
      %v287 = vunpack.c.l.b16 %v222
      %v288 = vunpack.c.l.b16 %v223
      %v289 = vunpack.c.l.b16 %v224
      %v290 = vunpack.c.l.b16 %v225
      %v291 = vunpack.c.l.b16 %v226
      %v292 = vunpack.c.l.b16 %v227
      %v293 = vunpack.c.l.b16 %v228
      %v294 = vunpack.c.l.b16 %v229
      %v295 = vunpack.c.l.b16 %v230
      %v296 = vunpack.c.l.b16 %v231
      %v297 = vunpack.c.l.b16 %v232
      %v298 = vunpack.c.l.b16 %v233
      %v299 = vunpack.c.l.b16 %v234
      %v300 = vunpack.c.l.b16 %v235
      %v301 = vpack.c.b16 %v270, %v269
      %v302 = vpack.c.b16 %v272, %v271
      %v303 = vpack.c.b16 %v274, %v273
      %v304 = vpack.c.b16 %v276, %v275
      %v305 = vpack.c.b16 %v278, %v277
      %v306 = vpack.c.b16 %v280, %v279
      %v307 = vpack.c.b16 %v282, %v281
      %v308 = vpack.c.b16 %v284, %v283
      %v309 = vpack.c.b16 %v286, %v285
      %v310 = vpack.c.b16 %v288, %v287
      %v311 = vpack.c.b16 %v290, %v289
      %v312 = vpack.c.b16 %v292, %v291
      %v313 = vpack.c.b16 %v294, %v293
      %v314 = vpack.c.b16 %v296, %v295
      %v315 = vpack.c.b16 %v298, %v297
      %v316 = vpack.c.b16 %v300, %v299
      %vm317 = vcmask 31744
      %v319 = vsel %vm317, %v301, 0
      %v322 = vsel %vm317, %v302, 0
      %v325 = vsel %vm317, %v303, 0
      %v328 = vsel %vm317, %v304, 0
      %v331 = vsel %vm317, %v305, 0
      %v334 = vsel %vm317, %v306, 0
      %v337 = vsel %vm317, %v307, 0
      %v340 = vsel %vm317, %v308, 0
      %v343 = vsel %vm317, %v309, 0
      %v346 = vsel %vm317, %v310, 0
      %v349 = vsel %vm317, %v311, 0
      %v352 = vsel %vm317, %v312, 0
      %v355 = vsel %vm317, %v313, 0
      %v358 = vsel %vm317, %v314, 0
      %v361 = vsel %vm317, %v315, 0
      %v364 = vsel %vm317, %v316, 0
      %vm366 = vcmask 1041408
      %v368 = vsel %vm366, %v236, 0
      %370 = vmatpush.bf16.msra.mxu0 0
      %371 = vmatpush.bf16.msra.mxu0 0
      %372 = vmatpush.bf16.msra.mxu0 0
      %373 = vmatpush.bf16.msra.mxu0 0
      %374 = vmatpush.bf16.msra.mxu0 0
      %375 = vmatpush.bf16.msra.mxu0 0
      %376 = vmatpush.bf16.msra.mxu0 0
      %377 = vmatpush.bf16.msra.mxu0 %v368
      %378 = vmatmul.bf16.gmra.mxu0 %v319
      %v379 = vpop.f32.mrf.mxu0
      %v380 = vadd.f32 0.0, %v379
      %v381 = vpop.f32.mrf.mxu0
      %v382 = vadd.f32 0.0, %v381
      %383 = vmatmul.bf16.gmra.mxu0 %v322
      %v384 = vpop.f32.mrf.mxu0
      %v385 = vadd.f32 0.0, %v384
      %v386 = vpop.f32.mrf.mxu0
      %v387 = vadd.f32 0.0, %v386
      %388 = vmatmul.bf16.gmra.mxu0 %v325
      %v389 = vpop.f32.mrf.mxu0
      %v390 = vadd.f32 0.0, %v389
      %v391 = vpop.f32.mrf.mxu0
      %v392 = vadd.f32 0.0, %v391
      %393 = vmatmul.bf16.gmra.mxu0 %v328
      %v394 = vpop.f32.mrf.mxu0
      %v395 = vadd.f32 0.0, %v394
      %v396 = vpop.f32.mrf.mxu0
      %v397 = vadd.f32 0.0, %v396
      %398 = vmatmul.bf16.gmra.mxu0 %v331
      %v399 = vpop.f32.mrf.mxu0
      %v400 = vadd.f32 0.0, %v399
      %v401 = vpop.f32.mrf.mxu0
      %v402 = vadd.f32 0.0, %v401
      %403 = vmatmul.bf16.gmra.mxu0 %v334
      %v404 = vpop.f32.mrf.mxu0
      %v405 = vadd.f32 0.0, %v404
      %v406 = vpop.f32.mrf.mxu0
      %v407 = vadd.f32 0.0, %v406
      %408 = vmatmul.bf16.gmra.mxu0 %v337
      %v409 = vpop.f32.mrf.mxu0
      %v410 = vadd.f32 0.0, %v409
      %v411 = vpop.f32.mrf.mxu0
      %v412 = vadd.f32 0.0, %v411
      %413 = vmatmul.bf16.gmra.mxu0 %v340
      %v414 = vpop.f32.mrf.mxu0
      %v415 = vadd.f32 0.0, %v414
      %v416 = vpop.f32.mrf.mxu0
      %v417 = vadd.f32 0.0, %v416
      %418 = vmatmul.bf16.gmra.mxu0 %v343
      %v419 = vpop.f32.mrf.mxu0
      %v420 = vadd.f32 0.0, %v419
      %v421 = vpop.f32.mrf.mxu0
      %v422 = vadd.f32 0.0, %v421
      %423 = vmatmul.bf16.gmra.mxu0 %v346
      %v424 = vpop.f32.mrf.mxu0
      %v425 = vadd.f32 0.0, %v424
      %v426 = vpop.f32.mrf.mxu0
      %v427 = vadd.f32 0.0, %v426
      %428 = vmatmul.bf16.gmra.mxu0 %v349
      %v429 = vpop.f32.mrf.mxu0
      %v430 = vadd.f32 0.0, %v429
      %v431 = vpop.f32.mrf.mxu0
      %v432 = vadd.f32 0.0, %v431
      %433 = vmatmul.bf16.gmra.mxu0 %v352
      %v434 = vpop.f32.mrf.mxu0
      %v435 = vadd.f32 0.0, %v434
      %v436 = vpop.f32.mrf.mxu0
      %v437 = vadd.f32 0.0, %v436
      %438 = vmatmul.bf16.gmra.mxu0 %v355
      %v439 = vpop.f32.mrf.mxu0
      %v440 = vadd.f32 0.0, %v439
      %v441 = vpop.f32.mrf.mxu0
      %v442 = vadd.f32 0.0, %v441
      %443 = vmatmul.bf16.gmra.mxu0 %v358
      %v444 = vpop.f32.mrf.mxu0
      %v445 = vadd.f32 0.0, %v444
      %v446 = vpop.f32.mrf.mxu0
      %v447 = vadd.f32 0.0, %v446
      %448 = vmatmul.bf16.gmra.mxu0 %v361
      %v449 = vpop.f32.mrf.mxu0
      %v450 = vadd.f32 0.0, %v449
      %v451 = vpop.f32.mrf.mxu0
      %v452 = vadd.f32 0.0, %v451
      %453 = vmatmul.bf16.gmra.mxu0 %v364
      %v454 = vpop.f32.mrf.mxu0
      %v455 = vadd.f32 0.0, %v454
      %v456 = vpop.f32.mrf.mxu0
      %v457 = vadd.f32 0.0, %v456
      %458 = vdwg.mxu0
      %459 = vst.msk [vmem:[%s194] sm:$0xff] %vm317, %v380
      %460 = vst.msk [vmem:[%s194 + $0x8] sm:$0xff] %vm317, %v382
      %461 = vst.msk [vmem:[%s194 + $0x10] sm:$0xff] %vm317, %v385
      %462 = vst.msk [vmem:[%s194 + $0x18] sm:$0xff] %vm317, %v387
      %463 = vst.msk [vmem:[%s194 + $0x20] sm:$0xff] %vm317, %v390
      %464 = vst.msk [vmem:[%s194 + $0x28] sm:$0xff] %vm317, %v392
      %465 = vst.msk [vmem:[%s194 + $0x30] sm:$0xff] %vm317, %v395
      %466 = vst.msk [vmem:[%s194 + $0x38] sm:$0xff] %vm317, %v397
      %467 = vst.msk [vmem:[%s194 + $0x40] sm:$0xff] %vm317, %v400
      %468 = vst.msk [vmem:[%s194 + $0x48] sm:$0xff] %vm317, %v402
      %469 = vst.msk [vmem:[%s194 + $0x50] sm:$0xff] %vm317, %v405
      %470 = vst.msk [vmem:[%s194 + $0x58] sm:$0xff] %vm317, %v407
      %471 = vst.msk [vmem:[%s194 + $0x60] sm:$0xff] %vm317, %v410
      %472 = vst.msk [vmem:[%s194 + $0x68] sm:$0xff] %vm317, %v412
      %473 = vst.msk [vmem:[%s194 + $0x70] sm:$0xff] %vm317, %v415
      %474 = vst.msk [vmem:[%s194 + $0x78] sm:$0xff] %vm317, %v417
      %475 = vst.msk [vmem:[%s194 + $0x80] sm:$0xff] %vm317, %v420
      %476 = vst.msk [vmem:[%s194 + $0x88] sm:$0xff] %vm317, %v422
      %477 = vst.msk [vmem:[%s194 + $0x90] sm:$0xff] %vm317, %v425
      %478 = vst.msk [vmem:[%s194 + $0x98] sm:$0xff] %vm317, %v427
      %479 = vst.msk [vmem:[%s194 + $0xa0] sm:$0xff] %vm317, %v430
      %480 = vst.msk [vmem:[%s194 + $0xa8] sm:$0xff] %vm317, %v432
      %481 = vst.msk [vmem:[%s194 + $0xb0] sm:$0xff] %vm317, %v435
      %482 = vst.msk [vmem:[%s194 + $0xb8] sm:$0xff] %vm317, %v437
      %483 = vst.msk [vmem:[%s194 + $0xc0] sm:$0xff] %vm317, %v440
      %484 = vst.msk [vmem:[%s194 + $0xc8] sm:$0xff] %vm317, %v442
      %485 = vst.msk [vmem:[%s194 + $0xd0] sm:$0xff] %vm317, %v445
      %486 = vst.msk [vmem:[%s194 + $0xd8] sm:$0xff] %vm317, %v447
      %487 = vst.msk [vmem:[%s194 + $0xe0] sm:$0xff] %vm317, %v450
      %488 = vst.msk [vmem:[%s194 + $0xe8] sm:$0xff] %vm317, %v452
      %489 = vst.msk [vmem:[%s194 + $0xf0] sm:$0xff] %vm317, %v455
      %490 = vst.msk [vmem:[%s194 + $0xf8] sm:$0xff] %vm317, %v457
      %v491 = vld [vmem:[%s3] sm:$0x1]
      %v492 = vsel %vm317, %v380, 0.0
      %v493 = vsel %vm317, %v382, 0.0
      %v494 = vadd.f32 %v492, %v493
      %v495 = vsel %vm317, %v385, 0.0
      %v496 = vadd.f32 %v494, %v495
      %v497 = vsel %vm317, %v387, 0.0
      %v498 = vadd.f32 %v496, %v497
      %v499 = vsel %vm317, %v390, 0.0
      %v500 = vadd.f32 %v498, %v499
      %v501 = vsel %vm317, %v392, 0.0
      %v502 = vadd.f32 %v500, %v501
      %v503 = vsel %vm317, %v395, 0.0
      %v504 = vadd.f32 %v502, %v503
      %v505 = vsel %vm317, %v397, 0.0
      %v506 = vadd.f32 %v504, %v505
      %v507 = vsel %vm317, %v400, 0.0
      %v508 = vadd.f32 %v506, %v507
      %v509 = vsel %vm317, %v402, 0.0
      %v510 = vadd.f32 %v508, %v509
      %v511 = vsel %vm317, %v405, 0.0
      %v512 = vadd.f32 %v510, %v511
      %v513 = vsel %vm317, %v407, 0.0
      %v514 = vadd.f32 %v512, %v513
      %v515 = vsel %vm317, %v410, 0.0
      %v516 = vadd.f32 %v514, %v515
      %v517 = vsel %vm317, %v412, 0.0
      %v518 = vadd.f32 %v516, %v517
      %v519 = vsel %vm317, %v415, 0.0
      %v520 = vadd.f32 %v518, %v519
      %v521 = vsel %vm317, %v417, 0.0
      %v522 = vadd.f32 %v520, %v521
      %v523 = vsel %vm317, %v420, 0.0
      %v524 = vadd.f32 %v522, %v523
      %v525 = vsel %vm317, %v422, 0.0
      %v526 = vadd.f32 %v524, %v525
      %v527 = vsel %vm317, %v425, 0.0
      %v528 = vadd.f32 %v526, %v527
      %v529 = vsel %vm317, %v427, 0.0
      %v530 = vadd.f32 %v528, %v529
      %v531 = vsel %vm317, %v430, 0.0
      %v532 = vadd.f32 %v530, %v531
      %v533 = vsel %vm317, %v432, 0.0
      %v534 = vadd.f32 %v532, %v533
      %v535 = vsel %vm317, %v435, 0.0
      %v536 = vadd.f32 %v534, %v535
      %v537 = vsel %vm317, %v437, 0.0
      %v538 = vadd.f32 %v536, %v537
      %v539 = vsel %vm317, %v440, 0.0
      %v540 = vadd.f32 %v538, %v539
      %v541 = vsel %vm317, %v442, 0.0
      %v542 = vadd.f32 %v540, %v541
      %v543 = vsel %vm317, %v445, 0.0
      %v544 = vadd.f32 %v542, %v543
      %v545 = vsel %vm317, %v447, 0.0
      %v546 = vadd.f32 %v544, %v545
      %v547 = vsel %vm317, %v450, 0.0
      %v548 = vadd.f32 %v546, %v547
      %v549 = vsel %vm317, %v452, 0.0
      %v550 = vadd.f32 %v548, %v549
      %v551 = vsel %vm317, %v455, 0.0
      %v552 = vadd.f32 %v550, %v551
      %v553 = vsel %vm317, %v457, 0.0
      %v554 = vadd.f32 %v552, %v553
      %v555 = vrot.slane %v554, 4
      %v556 = vadd.f32 %v554, %v555
      %v557 = vrot.slane %v556, 2
      %v558 = vadd.f32 %v556, %v557
      %v559 = vrot.slane %v558, 1
      %v560 = vadd.f32 %v558, %v559
      %v561 = vadd.f32 %v491, %v560
      %vm562 = vcmask 24576
      %563 = vst.msk [vmem:[%s3] sm:$0x1] %vm562, %v561
      %v564 = vld [vmem:[%s4] sm:$0x1]
      %v565 = vmul.f32 %v380, %v380
      %v566 = vmul.f32 %v382, %v382
      %v567 = vmul.f32 %v385, %v385
      %v568 = vmul.f32 %v387, %v387
      %v569 = vmul.f32 %v390, %v390
      %v570 = vmul.f32 %v392, %v392
      %v571 = vmul.f32 %v395, %v395
      %v572 = vmul.f32 %v397, %v397
      %v573 = vmul.f32 %v400, %v400
      %v574 = vmul.f32 %v402, %v402
      %v575 = vmul.f32 %v405, %v405
      %v576 = vmul.f32 %v407, %v407
      %v577 = vmul.f32 %v410, %v410
      %v578 = vmul.f32 %v412, %v412
      %v579 = vmul.f32 %v415, %v415
      %v580 = vmul.f32 %v417, %v417
      %v581 = vmul.f32 %v420, %v420
      %v582 = vmul.f32 %v422, %v422
      %v583 = vmul.f32 %v425, %v425
      %v584 = vmul.f32 %v427, %v427
      %v585 = vmul.f32 %v430, %v430
      %v586 = vmul.f32 %v432, %v432
      %v587 = vmul.f32 %v435, %v435
      %v588 = vmul.f32 %v437, %v437
      %v589 = vmul.f32 %v440, %v440
      %v590 = vmul.f32 %v442, %v442
      %v591 = vmul.f32 %v445, %v445
      %v592 = vmul.f32 %v447, %v447
      %v593 = vmul.f32 %v450, %v450
      %v594 = vmul.f32 %v452, %v452
      %v595 = vmul.f32 %v455, %v455
      %v596 = vmul.f32 %v457, %v457
      %v597 = vsel %vm317, %v565, 0.0
      %v598 = vsel %vm317, %v566, 0.0
      %v599 = vadd.f32 %v597, %v598
      %v600 = vsel %vm317, %v567, 0.0
      %v601 = vadd.f32 %v599, %v600
      %v602 = vsel %vm317, %v568, 0.0
      %v603 = vadd.f32 %v601, %v602
      %v604 = vsel %vm317, %v569, 0.0
      %v605 = vadd.f32 %v603, %v604
      %v606 = vsel %vm317, %v570, 0.0
      %v607 = vadd.f32 %v605, %v606
      %v608 = vsel %vm317, %v571, 0.0
      %v609 = vadd.f32 %v607, %v608
      %v610 = vsel %vm317, %v572, 0.0
      %v611 = vadd.f32 %v609, %v610
      %v612 = vsel %vm317, %v573, 0.0
      %v613 = vadd.f32 %v611, %v612
      %v614 = vsel %vm317, %v574, 0.0
      %v615 = vadd.f32 %v613, %v614
      %v616 = vsel %vm317, %v575, 0.0
      %v617 = vadd.f32 %v615, %v616
      %v618 = vsel %vm317, %v576, 0.0
      %v619 = vadd.f32 %v617, %v618
      %v620 = vsel %vm317, %v577, 0.0
      %v621 = vadd.f32 %v619, %v620
      %v622 = vsel %vm317, %v578, 0.0
      %v623 = vadd.f32 %v621, %v622
      %v624 = vsel %vm317, %v579, 0.0
      %v625 = vadd.f32 %v623, %v624
      %v626 = vsel %vm317, %v580, 0.0
      %v627 = vadd.f32 %v625, %v626
      %v628 = vsel %vm317, %v581, 0.0
      %v629 = vadd.f32 %v627, %v628
      %v630 = vsel %vm317, %v582, 0.0
      %v631 = vadd.f32 %v629, %v630
      %v632 = vsel %vm317, %v583, 0.0
      %v633 = vadd.f32 %v631, %v632
      %v634 = vsel %vm317, %v584, 0.0
      %v635 = vadd.f32 %v633, %v634
      %v636 = vsel %vm317, %v585, 0.0
      %v637 = vadd.f32 %v635, %v636
      %v638 = vsel %vm317, %v586, 0.0
      %v639 = vadd.f32 %v637, %v638
      %v640 = vsel %vm317, %v587, 0.0
      %v641 = vadd.f32 %v639, %v640
      %v642 = vsel %vm317, %v588, 0.0
      %v643 = vadd.f32 %v641, %v642
      %v644 = vsel %vm317, %v589, 0.0
      %v645 = vadd.f32 %v643, %v644
      %v646 = vsel %vm317, %v590, 0.0
      %v647 = vadd.f32 %v645, %v646
      %v648 = vsel %vm317, %v591, 0.0
      %v649 = vadd.f32 %v647, %v648
      %v650 = vsel %vm317, %v592, 0.0
      %v651 = vadd.f32 %v649, %v650
      %v652 = vsel %vm317, %v593, 0.0
      %v653 = vadd.f32 %v651, %v652
      %v654 = vsel %vm317, %v594, 0.0
      %v655 = vadd.f32 %v653, %v654
      %v656 = vsel %vm317, %v595, 0.0
      %v657 = vadd.f32 %v655, %v656
      %v658 = vsel %vm317, %v596, 0.0
      %v659 = vadd.f32 %v657, %v658
      %v660 = vrot.slane %v659, 4
      %v661 = vadd.f32 %v659, %v660
      %v662 = vrot.slane %v661, 2
      %v663 = vadd.f32 %v661, %v662
      %v664 = vrot.slane %v663, 1
      %v665 = vadd.f32 %v663, %v664
      %v666 = vadd.f32 %v564, %v665
      %667 = vst.msk [vmem:[%s4] sm:$0x1] %vm562, %v666
      %s668 = smul.u32 32, %s16
      %p669 = scmp.lt.s32.totalorder %s668, 63
      %s670 = scalar_select %p669, %s668, 63
      %s671 = smul.addr %s670, 8
      %s672 = scalar_lea.vmem %s2, %s671
      // Predicated region
      $region33: #{cat_bottleneck_forward.6} parent=27 // pred_check
        %p673 = pneg %p81
      $region34: #{cat_bottleneck_forward.6} parent=27 // pred_check_branch
        %675 = sbr.rel (%p673) target = $region36
      $region35: #{cat_bottleneck_forward.6} parent=27 // pred_region
        %s676 = smul.u32 32, %s16
      $region36: #{cat_bottleneck_forward.6} parent=27 // pred_fallthru
        _
      // Predicated region
      $region37: #{cat_bottleneck_forward.6} parent=27 // pred_check
        %p677 = pneg %p102
      $region38: #{cat_bottleneck_forward.6} parent=27 // pred_check_branch
        %679 = sbr.rel (%p677) target = $region40
      $region39: #{cat_bottleneck_forward.6} parent=27 // pred_region
        _
      $region40: #{cat_bottleneck_forward.6} parent=27 // pred_fallthru
        _
      // Predicated region
      $region41: #{cat_bottleneck_forward.6} parent=27 // pred_check
        %p680 = pneg %p123
      $region42: #{cat_bottleneck_forward.6} parent=27 // pred_check_branch
        %682 = sbr.rel (%p680) target = $region44
      $region43: #{cat_bottleneck_forward.6} parent=27 // pred_region
        _
      $region44: #{cat_bottleneck_forward.6} parent=27 // pred_fallthru
        _
      // Predicated region
      $region45: #{cat_bottleneck_forward.6} parent=27 // pred_check
        %p683 = pneg %p102
      $region46: #{cat_bottleneck_forward.6} parent=27 // pred_check_branch
        %685 = sbr.rel (%p683) target = $region48
      $region47: #{cat_bottleneck_forward.6} parent=27 // pred_region
        _
      $region48: #{cat_bottleneck_forward.6} parent=27 // pred_fallthru
        _
      // Predicated region
      $region49: #{cat_bottleneck_forward.6} parent=27 // pred_check
        %p686 = pneg %p123
      $region50: #{cat_bottleneck_forward.6} parent=27 // pred_check_branch
        %688 = sbr.rel (%p686) target = $region52
      $region51: #{cat_bottleneck_forward.6} parent=27 // pred_region
        _
      $region52: #{cat_bottleneck_forward.6} parent=27 // pred_fallthru
        _
    $region28: #{cat_bottleneck_forward.6} parent=5 // pred_fallthru
      _
    %p689 = scmp.le.s32.totalorder 2, %s11
    // Predicated region
    $region53: #{cat_bottleneck_forward.6} parent=5 // pred_check
      %p690 = pneg %p689
    $region54: #{cat_bottleneck_forward.6} parent=5 // pred_check_branch
      %692 = sbr.rel (%p690) target = $region56
    $region55: #{cat_bottleneck_forward.6} parent=5 // pred_region
      %s693 = ssub.s32 %s11, 2
      // Predicated region
      $region57: #{cat_bottleneck_forward.6} parent=55 // pred_check
        %p694 = pneg %p87
      $region58: #{cat_bottleneck_forward.6} parent=55 // pred_check_branch
        %696 = sbr.rel (%p694) target = $region60
      $region59: #{cat_bottleneck_forward.6} parent=55 // pred_region
        %s697 = smul.u32 32, %s17
        %p698 = scmp.lt.s32.totalorder %s697, 63
        %s699 = scalar_select %p698, %s697, 63
        %s700 = smul.addr %s699, 8
        %s701 = scalar_lea.vmem %s2, %s700
      $region60: #{cat_bottleneck_forward.6} parent=55 // pred_fallthru
        _
    $region56: #{cat_bottleneck_forward.6} parent=5 // pred_fallthru
      _
  $region6: #{cat_bottleneck_forward.6} parent=0 // loop_footer
    %s15 = sadd.s32 1, %s11
  $region7: #{cat_bottleneck_forward.6} parent=0 // loop_footer_branch
    %10 = sbr.rel target = $region3
  $region8: #{cat_bottleneck_forward.6} parent=0 // loop_exit
    _

// kernel: cat_bottleneck_forward.8
$region0: #{cat_bottleneck_forward.8}
  #allocation0 [shape = 'u32[]', space=smem, size = 0x4, offset = 0x4, fixed_abs, tag = 'smem constant byte address 0x4 - core index']
  #allocation1 [shape = 'u32[72,128]{1,0:T(1,128)}', space=vmem, size = 0x9000, scoped, tag = 'internal scratch']
  %s0 = inlined_call_operand.vmem [shape: bf16[512,36], index: 0, kind: input, shape index: {}]
  %s1 = inlined_call_operand.vmem [shape: bf16[36,2], index: 1, kind: input, shape index: {}]
  %s2 = inlined_call_operand.vmem [shape: f32[512,2], index: 2, kind: output, shape index: {0}]
  %s3 = inlined_call_operand.vmem [shape: f32[1,2], index: 3, kind: output, shape index: {1}]
  %s4 = inlined_call_operand.vmem [shape: f32[1,2], index: 4, kind: output, shape index: {2}]
  %5 = xla_tuple %s2, %s3, %s4
  %s6 = sld [smem:[#allocation0]]
  $region61: #{cat_bottleneck_forward.8} parent=0
    _
  %s8 = ssub.s32 1, %s6
  %s9 = scalar_select 0, %s8, %s6
  loop: start=0, step=1, limit=4
  $region2: #{cat_bottleneck_forward.8} parent=0 // loop_pre_header
    _
  $region3: #{cat_bottleneck_forward.8} parent=0 // loop_header
    %s11 = sphi 0, %s15
    %p12 = scmp.ge.s32.totalorder %s11, 4
    %s21 = sphi 0, %s23
    %s24 = sphi 0, %s21
    %s25 = sphi 0, %s24
    %s41 = sphi 0, %s25
    %s45 = sphi 0, %s45
    %s47 = sphi 0, %s45
    %s48 = sphi 0, %s47
    %s62 = sphi 0, %s48
    %s68 = sphi 0, %s70
    %s71 = sphi 0, %s68
    %s72 = sphi 0, %s71
    %s88 = sphi 0, %s72
    %s92 = sphi 0, %s92
    %s94 = sphi 0, %s92
    %s95 = sphi 0, %s94
    %s109 = sphi 0, %s95
    %s113 = sphi 0, %s113
    %s115 = sphi 0, %s113
    %s116 = sphi 0, %s115
    %s130 = sphi 0, %s116
  $region4: #{cat_bottleneck_forward.8} parent=0 // loop_header_branch
    %14 = sbr.rel (%p12) target = $region8
  $region5: #{cat_bottleneck_forward.8} parent=0 // loop_body
    %s16 = ssub.s32 %s11, 1
    %s17 = ssub.s32 %s11, 2
    %s18 = sadd.s32 %s11, 1
    %s19 = ssub.s32 %s11, %s18
    %p20 = scmp.eq.s32.totalorder %s19, 0
    %s22 = sadd.s32 %s21, 1
    %s23 = scalar_select %p20, %s21, %s22
    %p26 = pneg %p20
    %p27 = scmp.eq.s32.totalorder %s11, 1
    %p28 = por %p26, %p27
    %p29 = scmp.ne.s32.totalorder %s21, %s24
    %p30 = scmp.eq.s32.totalorder %s11, 0
    %p31 = por %p29, %p30
    %p32 = scmp.ne.s32.totalorder %s21, %s24
    %p33 = scmp.eq.s32.totalorder %s16, 1
    %p34 = por %p32, %p33
    %p35 = scmp.ne.s32.totalorder %s24, %s25
    %p36 = scmp.eq.s32.totalorder %s16, 0
    %p37 = por %p35, %p36
    %p38 = scmp.ne.s32.totalorder %s24, %s25
    %p39 = scmp.eq.s32.totalorder %s17, 1
    %p40 = por %p38, %p39
    %p42 = scmp.ne.s32.totalorder %s25, %s41
    %p43 = scmp.eq.s32.totalorder %s17, 0
    %p44 = por %p42, %p43
    %s46 = sadd.s32 %s45, 1
    %p49 = scmp.eq.s32.totalorder %s11, 1
    %p50 = scmp.ne.s32.totalorder %s45, %s47
    %p51 = scmp.eq.s32.totalorder %s11, 0
    %p52 = por %p50, %p51
    %p53 = scmp.ne.s32.totalorder %s45, %s47
    %p54 = scmp.eq.s32.totalorder %s16, 1
    %p55 = por %p53, %p54
    %p56 = scmp.ne.s32.totalorder %s47, %s48
    %p57 = scmp.eq.s32.totalorder %s16, 0
    %p58 = por %p56, %p57
    %p59 = scmp.ne.s32.totalorder %s47, %s48
    %p60 = scmp.eq.s32.totalorder %s17, 1
    %p61 = por %p59, %p60
    %p63 = scmp.ne.s32.totalorder %s48, %s62
    %p64 = scmp.eq.s32.totalorder %s17, 0
    %p65 = por %p63, %p64
    %s66 = ssub.s32 %s11, %s18
    %p67 = scmp.eq.s32.totalorder %s66, 0
    %s69 = sadd.s32 %s68, 1
    %s70 = scalar_select %p67, %s68, %s69
    %p73 = pneg %p67
    %p74 = scmp.eq.s32.totalorder %s11, 1
    %p75 = por %p73, %p74
    %p76 = scmp.ne.s32.totalorder %s68, %s71
    %p77 = scmp.eq.s32.totalorder %s11, 0
    %p78 = por %p76, %p77
    %p79 = scmp.ne.s32.totalorder %s68, %s71
    %p80 = scmp.eq.s32.totalorder %s16, 1
    %p81 = por %p79, %p80
    %p82 = scmp.ne.s32.totalorder %s71, %s72
    %p83 = scmp.eq.s32.totalorder %s16, 0
    %p84 = por %p82, %p83
    %p85 = scmp.ne.s32.totalorder %s71, %s72
    %p86 = scmp.eq.s32.totalorder %s17, 1
    %p87 = por %p85, %p86
    %p89 = scmp.ne.s32.totalorder %s72, %s88
    %p90 = scmp.eq.s32.totalorder %s17, 0
    %p91 = por %p89, %p90
    %s93 = sadd.s32 %s92, 1
    %p96 = scmp.eq.s32.totalorder %s11, 1
    %p97 = scmp.ne.s32.totalorder %s92, %s94
    %p98 = scmp.eq.s32.totalorder %s11, 0
    %p99 = por %p97, %p98
    %p100 = scmp.ne.s32.totalorder %s92, %s94
    %p101 = scmp.eq.s32.totalorder %s16, 1
    %p102 = por %p100, %p101
    %p103 = scmp.ne.s32.totalorder %s94, %s95
    %p104 = scmp.eq.s32.totalorder %s16, 0
    %p105 = por %p103, %p104
    %p106 = scmp.ne.s32.totalorder %s94, %s95
    %p107 = scmp.eq.s32.totalorder %s17, 1
    %p108 = por %p106, %p107
    %p110 = scmp.ne.s32.totalorder %s95, %s109
    %p111 = scmp.eq.s32.totalorder %s17, 0
    %p112 = por %p110, %p111
    %s114 = sadd.s32 %s113, 1
    %p117 = scmp.eq.s32.totalorder %s11, 1
    %p118 = scmp.ne.s32.totalorder %s113, %s115
    %p119 = scmp.eq.s32.totalorder %s11, 0
    %p120 = por %p118, %p119
    %p121 = scmp.ne.s32.totalorder %s113, %s115
    %p122 = scmp.eq.s32.totalorder %s16, 1
    %p123 = por %p121, %p122
    %p124 = scmp.ne.s32.totalorder %s115, %s116
    %p125 = scmp.eq.s32.totalorder %s16, 0
    %p126 = por %p124, %p125
    %p127 = scmp.ne.s32.totalorder %s115, %s116
    %p128 = scmp.eq.s32.totalorder %s17, 1
    %p129 = por %p127, %p128
    %p131 = scmp.ne.s32.totalorder %s116, %s130
    %p132 = scmp.eq.s32.totalorder %s17, 0
    %p133 = por %p131, %p132
    %p134 = scmp.le.s32.totalorder 1, %s11
    %p135 = scmp.lt.s32.totalorder %s11, 3
    %p136 = pnand %p134, %p135
    %p137 = pneg %p136
    // Predicated region
    $region9: #{cat_bottleneck_forward.8} parent=5 // pred_check
      _
    $region10: #{cat_bottleneck_forward.8} parent=5 // pred_check_branch
      %139 = sbr.rel (%p136) target = $region12
    $region11: #{cat_bottleneck_forward.8} parent=5 // pred_region
      %s140 = ssub.s32 %s11, 1
      // Predicated region
      $region13: #{cat_bottleneck_forward.8} parent=11 // pred_check
        %p141 = pneg %p58
      $region14: #{cat_bottleneck_forward.8} parent=11 // pred_check_branch
        %143 = sbr.rel (%p141) target = $region16
      $region15: #{cat_bottleneck_forward.8} parent=11 // pred_region
        _
      $region16: #{cat_bottleneck_forward.8} parent=11 // pred_fallthru
        _
    $region12: #{cat_bottleneck_forward.8} parent=5 // pred_fallthru
      _
    %p144 = scmp.lt.s32.totalorder %s11, 2
    // Predicated region
    $region17: #{cat_bottleneck_forward.8} parent=5 // pred_check
      %p145 = pneg %p144
    $region18: #{cat_bottleneck_forward.8} parent=5 // pred_check_branch
      %147 = sbr.rel (%p145) target = $region20
    $region19: #{cat_bottleneck_forward.8} parent=5 // pred_region
      // Predicated region
      $region21: #{cat_bottleneck_forward.8} parent=19 // pred_check
        %p148 = pneg %p31
      $region22: #{cat_bottleneck_forward.8} parent=19 // pred_check_branch
        %150 = sbr.rel (%p148) target = $region24
      $region23: #{cat_bottleneck_forward.8} parent=19 // pred_region
        %s151 = smul.u32 32, %s11
        %p152 = scmp.lt.s32.totalorder %s151, 63
        %s153 = scalar_select %p152, %s151, 63
        %s154 = smul.addr %s153, 4
        %s155 = scalar_lea.vmem %s0, %s154
        %s156 = smul.u32 32, %s11
      $region24: #{cat_bottleneck_forward.8} parent=19 // pred_fallthru
        _
    $region20: #{cat_bottleneck_forward.8} parent=5 // pred_fallthru
      _
    %p157 = scmp.le.s32.totalorder 1, %s11
    %p158 = scmp.lt.s32.totalorder %s11, 3
    %p159 = pnand %p157, %p158
    %p160 = pneg %p159
    // Predicated region
    $region25: #{cat_bottleneck_forward.8} parent=5 // pred_check
      _
    $region26: #{cat_bottleneck_forward.8} parent=5 // pred_check_branch
      %162 = sbr.rel (%p159) target = $region28
    $region27: #{cat_bottleneck_forward.8} parent=5 // pred_region
      %s163 = ssub.s32 %s11, 1
      %s164 = smul.u32 32, %s16
      %p165 = scmp.lt.s32.totalorder %s164, 63
      %s166 = scalar_select %p165, %s164, 63
      %s167 = smul.addr %s166, 4
      %s168 = scalar_lea.vmem %s0, %s167
      %p169 = pneg %p37
      %p170 = pneg %p34
      %p171 = pneg %p58
      %p172 = pneg %p55
      %p173 = pneg %p84
      %p174 = pneg %p81
      %s175 = smul.u32 32, %s16
      %p176 = scmp.lt.s32.totalorder %s175, 63
      %s177 = scalar_select %p176, %s175, 63
      %s178 = smul.addr %s177, 8
      %s179 = scalar_lea.vmem %s2, %s178
      %p180 = pneg %p105
      %p181 = pneg %p102
      %p182 = pneg %p126
      %p183 = pneg %p123
      %s184 = smul.u32 32, %s16
      %p185 = scmp.lt.s32.totalorder %s184, 63
      %s186 = scalar_select %p185, %s184, 63
      %s187 = smul.addr %s186, 4
      %s188 = scalar_lea.vmem %s0, %s187
      %s189 = smul.u32 32, %s16
      %s190 = smul.u32 32, %s16
      %p191 = scmp.lt.s32.totalorder %s190, 63
      %s192 = scalar_select %p191, %s190, 63
      %s193 = smul.addr %s192, 8
      %s194 = scalar_lea.vmem %s2, %s193
      %s195 = smul.u32 32, %s16
      %p197 = scmp.eq.s32.totalorder %s16, 0
      // Predicated region
      $region29: #{cat_bottleneck_forward.8} parent=27 // pred_check
        %p198 = pneg %p197
      $region30: #{cat_bottleneck_forward.8} parent=27 // pred_check_branch
        %200 = sbr.rel (%p198) target = $region32
      $region31: #{cat_bottleneck_forward.8} parent=27 // pred_region
        %vm201 = vcmask 8192
        %202 = vst.msk [vmem:[%s3] sm:$0x1] %vm201, 0.0
        %203 = vst.msk [vmem:[%s4] sm:$0x1] %vm201, 0.0
      $region32: #{cat_bottleneck_forward.8} parent=27 // pred_fallthru
        _
      %v204 = vld [vmem:[%s188] sm:$0xf]
      %v205 = vld [vmem:[%s188 + $0x4] sm:$0xf]
      %v206 = vld [vmem:[%s188 + $0x8] sm:$0xf]
      %v207 = vld [vmem:[%s188 + $0xc] sm:$0xf]
      %v208 = vld [vmem:[%s188 + $0x10] sm:$0xf]
      %v209 = vld [vmem:[%s188 + $0x14] sm:$0xf]
      %v210 = vld [vmem:[%s188 + $0x18] sm:$0xf]
      %v211 = vld [vmem:[%s188 + $0x1c] sm:$0xf]
      %v212 = vld [vmem:[%s188 + $0x20] sm:$0xf]
      %v213 = vld [vmem:[%s188 + $0x24] sm:$0xf]
      %v214 = vld [vmem:[%s188 + $0x28] sm:$0xf]
      %v215 = vld [vmem:[%s188 + $0x2c] sm:$0xf]
      %v216 = vld [vmem:[%s188 + $0x30] sm:$0xf]
      %v217 = vld [vmem:[%s188 + $0x34] sm:$0xf]
      %v218 = vld [vmem:[%s188 + $0x38] sm:$0xf]
      %v219 = vld [vmem:[%s188 + $0x3c] sm:$0xf]
      %v220 = vld [vmem:[%s188 + $0x40] sm:$0xf]
      %v221 = vld [vmem:[%s188 + $0x44] sm:$0xf]
      %v222 = vld [vmem:[%s188 + $0x48] sm:$0xf]
      %v223 = vld [vmem:[%s188 + $0x4c] sm:$0xf]
      %v224 = vld [vmem:[%s188 + $0x50] sm:$0xf]
      %v225 = vld [vmem:[%s188 + $0x54] sm:$0xf]
      %v226 = vld [vmem:[%s188 + $0x58] sm:$0xf]
      %v227 = vld [vmem:[%s188 + $0x5c] sm:$0xf]
      %v228 = vld [vmem:[%s188 + $0x60] sm:$0xf]
      %v229 = vld [vmem:[%s188 + $0x64] sm:$0xf]
      %v230 = vld [vmem:[%s188 + $0x68] sm:$0xf]
      %v231 = vld [vmem:[%s188 + $0x6c] sm:$0xf]
      %v232 = vld [vmem:[%s188 + $0x70] sm:$0xf]
      %v233 = vld [vmem:[%s188 + $0x74] sm:$0xf]
      %v234 = vld [vmem:[%s188 + $0x78] sm:$0xf]
      %v235 = vld [vmem:[%s188 + $0x7c] sm:$0xf]
      %v236 = vld [vmem:[%s1] sm:$0xf]
      %v237 = vld [vmem:[%s1 + $0x4] sm:$0xf]
      %v238 = vld [vmem:[%s1 + $0x8] sm:$0xf]
      %v239 = vld [vmem:[%s1 + $0xc] sm:$0xf]
      %v240 = vld [vmem:[%s1 + $0x10] sm:$0x3]
      %v273 = vunpack.c.l.b16 %v204
      %v274 = vunpack.c.l.b16 %v205
      %v275 = vunpack.c.l.b16 %v206
      %v276 = vunpack.c.l.b16 %v207
      %v277 = vunpack.c.l.b16 %v208
      %v278 = vunpack.c.l.b16 %v209
      %v279 = vunpack.c.l.b16 %v210
      %v280 = vunpack.c.l.b16 %v211
      %v281 = vunpack.c.l.b16 %v212
      %v282 = vunpack.c.l.b16 %v213
      %v283 = vunpack.c.l.b16 %v214
      %v284 = vunpack.c.l.b16 %v215
      %v285 = vunpack.c.l.b16 %v216
      %v286 = vunpack.c.l.b16 %v217
      %v287 = vunpack.c.l.b16 %v218
      %v288 = vunpack.c.l.b16 %v219
      %v289 = vunpack.c.l.b16 %v220
      %v290 = vunpack.c.l.b16 %v221
      %v291 = vunpack.c.l.b16 %v222
      %v292 = vunpack.c.l.b16 %v223
      %v293 = vunpack.c.l.b16 %v224
      %v294 = vunpack.c.l.b16 %v225
      %v295 = vunpack.c.l.b16 %v226
      %v296 = vunpack.c.l.b16 %v227
      %v297 = vunpack.c.l.b16 %v228
      %v298 = vunpack.c.l.b16 %v229
      %v299 = vunpack.c.l.b16 %v230
      %v300 = vunpack.c.l.b16 %v231
      %v301 = vunpack.c.l.b16 %v232
      %v302 = vunpack.c.l.b16 %v233
      %v303 = vunpack.c.l.b16 %v234
      %v304 = vunpack.c.l.b16 %v235
      %v305 = vpack.c.b16 %v274, %v273
      %v306 = vpack.c.b16 %v276, %v275
      %v307 = vpack.c.b16 %v278, %v277
      %v308 = vpack.c.b16 %v280, %v279
      %v309 = vpack.c.b16 %v282, %v281
      %v310 = vpack.c.b16 %v284, %v283
      %v311 = vpack.c.b16 %v286, %v285
      %v312 = vpack.c.b16 %v288, %v287
      %v313 = vpack.c.b16 %v290, %v289
      %v314 = vpack.c.b16 %v292, %v291
      %v315 = vpack.c.b16 %v294, %v293
      %v316 = vpack.c.b16 %v296, %v295
      %v317 = vpack.c.b16 %v298, %v297
      %v318 = vpack.c.b16 %v300, %v299
      %v319 = vpack.c.b16 %v302, %v301
      %v320 = vpack.c.b16 %v304, %v303
      %v326 = vunpack.c.l.b16 %v236
      %v327 = vunpack.c.l.b16 %v237
      %v328 = vunpack.c.l.b16 %v238
      %v329 = vunpack.c.l.b16 %v239
      %v330 = vunpack.c.l.b16 %v240
      %v331 = vpack.c.b16 %v327, %v326
      %v332 = vpack.c.b16 %v329, %v328
      %v333 = vpack.c.b16 %v330, %v330
      %vm336 = vcmask 293888
      %v338 = vsel %vm336, %v305, 0
      %v341 = vsel %vm336, %v306, 0
      %v344 = vsel %vm336, %v307, 0
      %v347 = vsel %vm336, %v308, 0
      %v350 = vsel %vm336, %v309, 0
      %v353 = vsel %vm336, %v310, 0
      %v356 = vsel %vm336, %v311, 0
      %v359 = vsel %vm336, %v312, 0
      %v362 = vsel %vm336, %v313, 0
      %v365 = vsel %vm336, %v314, 0
      %v368 = vsel %vm336, %v315, 0
      %v371 = vsel %vm336, %v316, 0
      %v374 = vsel %vm336, %v317, 0
      %v377 = vsel %vm336, %v318, 0
      %v380 = vsel %vm336, %v319, 0
      %v383 = vsel %vm336, %v320, 0
      %vm385 = vcmask 1041408
      %v387 = vsel %vm385, %v333, 0
      %389 = vmatpush.bf16.msra.mxu0 0
      %390 = vmatpush.bf16.msra.mxu0 0
      %391 = vmatpush.bf16.msra.mxu0 0
      %392 = vmatpush.bf16.msra.mxu0 0
      %393 = vmatpush.bf16.msra.mxu0 0
      %394 = vmatpush.bf16.msra.mxu0 %v387
      %395 = vmatpush.bf16.msra.mxu0 %v332
      %396 = vmatpush.bf16.msra.mxu0 %v331
      %397 = vmatmul.bf16.gmra.mxu0 %v338
      %v398 = vpop.f32.mrf.mxu0
      %v399 = vadd.f32 0.0, %v398
      %v400 = vpop.f32.mrf.mxu0
      %v401 = vadd.f32 0.0, %v400
      %402 = vmatmul.bf16.gmra.mxu0 %v341
      %v403 = vpop.f32.mrf.mxu0
      %v404 = vadd.f32 0.0, %v403
      %v405 = vpop.f32.mrf.mxu0
      %v406 = vadd.f32 0.0, %v405
      %407 = vmatmul.bf16.gmra.mxu0 %v344
      %v408 = vpop.f32.mrf.mxu0
      %v409 = vadd.f32 0.0, %v408
      %v410 = vpop.f32.mrf.mxu0
      %v411 = vadd.f32 0.0, %v410
      %412 = vmatmul.bf16.gmra.mxu0 %v347
      %v413 = vpop.f32.mrf.mxu0
      %v414 = vadd.f32 0.0, %v413
      %v415 = vpop.f32.mrf.mxu0
      %v416 = vadd.f32 0.0, %v415
      %417 = vmatmul.bf16.gmra.mxu0 %v350
      %v418 = vpop.f32.mrf.mxu0
      %v419 = vadd.f32 0.0, %v418
      %v420 = vpop.f32.mrf.mxu0
      %v421 = vadd.f32 0.0, %v420
      %422 = vmatmul.bf16.gmra.mxu0 %v353
      %v423 = vpop.f32.mrf.mxu0
      %v424 = vadd.f32 0.0, %v423
      %v425 = vpop.f32.mrf.mxu0
      %v426 = vadd.f32 0.0, %v425
      %427 = vmatmul.bf16.gmra.mxu0 %v356
      %v428 = vpop.f32.mrf.mxu0
      %v429 = vadd.f32 0.0, %v428
      %v430 = vpop.f32.mrf.mxu0
      %v431 = vadd.f32 0.0, %v430
      %432 = vmatmul.bf16.gmra.mxu0 %v359
      %v433 = vpop.f32.mrf.mxu0
      %v434 = vadd.f32 0.0, %v433
      %v435 = vpop.f32.mrf.mxu0
      %v436 = vadd.f32 0.0, %v435
      %437 = vmatmul.bf16.gmra.mxu0 %v362
      %v438 = vpop.f32.mrf.mxu0
      %v439 = vadd.f32 0.0, %v438
      %v440 = vpop.f32.mrf.mxu0
      %v441 = vadd.f32 0.0, %v440
      %442 = vmatmul.bf16.gmra.mxu0 %v365
      %v443 = vpop.f32.mrf.mxu0
      %v444 = vadd.f32 0.0, %v443
      %v445 = vpop.f32.mrf.mxu0
      %v446 = vadd.f32 0.0, %v445
      %447 = vmatmul.bf16.gmra.mxu0 %v368
      %v448 = vpop.f32.mrf.mxu0
      %v449 = vadd.f32 0.0, %v448
      %v450 = vpop.f32.mrf.mxu0
      %v451 = vadd.f32 0.0, %v450
      %452 = vmatmul.bf16.gmra.mxu0 %v371
      %v453 = vpop.f32.mrf.mxu0
      %v454 = vadd.f32 0.0, %v453
      %v455 = vpop.f32.mrf.mxu0
      %v456 = vadd.f32 0.0, %v455
      %457 = vmatmul.bf16.gmra.mxu0 %v374
      %v458 = vpop.f32.mrf.mxu0
      %v459 = vadd.f32 0.0, %v458
      %v460 = vpop.f32.mrf.mxu0
      %v461 = vadd.f32 0.0, %v460
      %462 = vmatmul.bf16.gmra.mxu0 %v377
      %v463 = vpop.f32.mrf.mxu0
      %v464 = vadd.f32 0.0, %v463
      %v465 = vpop.f32.mrf.mxu0
      %v466 = vadd.f32 0.0, %v465
      %467 = vmatmul.bf16.gmra.mxu0 %v380
      %v468 = vpop.f32.mrf.mxu0
      %v469 = vadd.f32 0.0, %v468
      %v470 = vpop.f32.mrf.mxu0
      %v471 = vadd.f32 0.0, %v470
      %472 = vmatmul.bf16.gmra.mxu0 %v383
      %v473 = vpop.f32.mrf.mxu0
      %v474 = vadd.f32 0.0, %v473
      %v475 = vpop.f32.mrf.mxu0
      %v476 = vadd.f32 0.0, %v475
      %477 = vdwg.mxu0
      %vm478 = vcmask 15360
      %479 = vst.msk [vmem:[%s194] sm:$0xff] %vm478, %v399
      %480 = vst.msk [vmem:[%s194 + $0x8] sm:$0xff] %vm478, %v401
      %481 = vst.msk [vmem:[%s194 + $0x10] sm:$0xff] %vm478, %v404
      %482 = vst.msk [vmem:[%s194 + $0x18] sm:$0xff] %vm478, %v406
      %483 = vst.msk [vmem:[%s194 + $0x20] sm:$0xff] %vm478, %v409
      %484 = vst.msk [vmem:[%s194 + $0x28] sm:$0xff] %vm478, %v411
      %485 = vst.msk [vmem:[%s194 + $0x30] sm:$0xff] %vm478, %v414
      %486 = vst.msk [vmem:[%s194 + $0x38] sm:$0xff] %vm478, %v416
      %487 = vst.msk [vmem:[%s194 + $0x40] sm:$0xff] %vm478, %v419
      %488 = vst.msk [vmem:[%s194 + $0x48] sm:$0xff] %vm478, %v421
      %489 = vst.msk [vmem:[%s194 + $0x50] sm:$0xff] %vm478, %v424
      %490 = vst.msk [vmem:[%s194 + $0x58] sm:$0xff] %vm478, %v426
      %491 = vst.msk [vmem:[%s194 + $0x60] sm:$0xff] %vm478, %v429
      %492 = vst.msk [vmem:[%s194 + $0x68] sm:$0xff] %vm478, %v431
      %493 = vst.msk [vmem:[%s194 + $0x70] sm:$0xff] %vm478, %v434
      %494 = vst.msk [vmem:[%s194 + $0x78] sm:$0xff] %vm478, %v436
      %495 = vst.msk [vmem:[%s194 + $0x80] sm:$0xff] %vm478, %v439
      %496 = vst.msk [vmem:[%s194 + $0x88] sm:$0xff] %vm478, %v441
      %497 = vst.msk [vmem:[%s194 + $0x90] sm:$0xff] %vm478, %v444
      %498 = vst.msk [vmem:[%s194 + $0x98] sm:$0xff] %vm478, %v446
      %499 = vst.msk [vmem:[%s194 + $0xa0] sm:$0xff] %vm478, %v449
      %500 = vst.msk [vmem:[%s194 + $0xa8] sm:$0xff] %vm478, %v451
      %501 = vst.msk [vmem:[%s194 + $0xb0] sm:$0xff] %vm478, %v454
      %502 = vst.msk [vmem:[%s194 + $0xb8] sm:$0xff] %vm478, %v456
      %503 = vst.msk [vmem:[%s194 + $0xc0] sm:$0xff] %vm478, %v459
      %504 = vst.msk [vmem:[%s194 + $0xc8] sm:$0xff] %vm478, %v461
      %505 = vst.msk [vmem:[%s194 + $0xd0] sm:$0xff] %vm478, %v464
      %506 = vst.msk [vmem:[%s194 + $0xd8] sm:$0xff] %vm478, %v466
      %507 = vst.msk [vmem:[%s194 + $0xe0] sm:$0xff] %vm478, %v469
      %508 = vst.msk [vmem:[%s194 + $0xe8] sm:$0xff] %vm478, %v471
      %509 = vst.msk [vmem:[%s194 + $0xf0] sm:$0xff] %vm478, %v474
      %510 = vst.msk [vmem:[%s194 + $0xf8] sm:$0xff] %vm478, %v476
      %v511 = vld [vmem:[%s3] sm:$0x1]
      %v512 = vsel %vm478, %v399, 0.0
      %v513 = vsel %vm478, %v401, 0.0
      %v514 = vadd.f32 %v512, %v513
      %v515 = vsel %vm478, %v404, 0.0
      %v516 = vadd.f32 %v514, %v515
      %v517 = vsel %vm478, %v406, 0.0
      %v518 = vadd.f32 %v516, %v517
      %v519 = vsel %vm478, %v409, 0.0
      %v520 = vadd.f32 %v518, %v519
      %v521 = vsel %vm478, %v411, 0.0
      %v522 = vadd.f32 %v520, %v521
      %v523 = vsel %vm478, %v414, 0.0
      %v524 = vadd.f32 %v522, %v523
      %v525 = vsel %vm478, %v416, 0.0
      %v526 = vadd.f32 %v524, %v525
      %v527 = vsel %vm478, %v419, 0.0
      %v528 = vadd.f32 %v526, %v527
      %v529 = vsel %vm478, %v421, 0.0
      %v530 = vadd.f32 %v528, %v529
      %v531 = vsel %vm478, %v424, 0.0
      %v532 = vadd.f32 %v530, %v531
      %v533 = vsel %vm478, %v426, 0.0
      %v534 = vadd.f32 %v532, %v533
      %v535 = vsel %vm478, %v429, 0.0
      %v536 = vadd.f32 %v534, %v535
      %v537 = vsel %vm478, %v431, 0.0
      %v538 = vadd.f32 %v536, %v537
      %v539 = vsel %vm478, %v434, 0.0
      %v540 = vadd.f32 %v538, %v539
      %v541 = vsel %vm478, %v436, 0.0
      %v542 = vadd.f32 %v540, %v541
      %v543 = vsel %vm478, %v439, 0.0
      %v544 = vadd.f32 %v542, %v543
      %v545 = vsel %vm478, %v441, 0.0
      %v546 = vadd.f32 %v544, %v545
      %v547 = vsel %vm478, %v444, 0.0
      %v548 = vadd.f32 %v546, %v547
      %v549 = vsel %vm478, %v446, 0.0
      %v550 = vadd.f32 %v548, %v549
      %v551 = vsel %vm478, %v449, 0.0
      %v552 = vadd.f32 %v550, %v551
      %v553 = vsel %vm478, %v451, 0.0
      %v554 = vadd.f32 %v552, %v553
      %v555 = vsel %vm478, %v454, 0.0
      %v556 = vadd.f32 %v554, %v555
      %v557 = vsel %vm478, %v456, 0.0
      %v558 = vadd.f32 %v556, %v557
      %v559 = vsel %vm478, %v459, 0.0
      %v560 = vadd.f32 %v558, %v559
      %v561 = vsel %vm478, %v461, 0.0
      %v562 = vadd.f32 %v560, %v561
      %v563 = vsel %vm478, %v464, 0.0
      %v564 = vadd.f32 %v562, %v563
      %v565 = vsel %vm478, %v466, 0.0
      %v566 = vadd.f32 %v564, %v565
      %v567 = vsel %vm478, %v469, 0.0
      %v568 = vadd.f32 %v566, %v567
      %v569 = vsel %vm478, %v471, 0.0
      %v570 = vadd.f32 %v568, %v569
      %v571 = vsel %vm478, %v474, 0.0
      %v572 = vadd.f32 %v570, %v571
      %v573 = vsel %vm478, %v476, 0.0
      %v574 = vadd.f32 %v572, %v573
      %v575 = vrot.slane %v574, 4
      %v576 = vadd.f32 %v574, %v575
      %v577 = vrot.slane %v576, 2
      %v578 = vadd.f32 %v576, %v577
      %v579 = vrot.slane %v578, 1
      %v580 = vadd.f32 %v578, %v579
      %v581 = vadd.f32 %v511, %v580
      %vm582 = vcmask 8192
      %583 = vst.msk [vmem:[%s3] sm:$0x1] %vm582, %v581
      %v584 = vld [vmem:[%s4] sm:$0x1]
      %v585 = vmul.f32 %v399, %v399
      %v586 = vmul.f32 %v401, %v401
      %v587 = vmul.f32 %v404, %v404
      %v588 = vmul.f32 %v406, %v406
      %v589 = vmul.f32 %v409, %v409
      %v590 = vmul.f32 %v411, %v411
      %v591 = vmul.f32 %v414, %v414
      %v592 = vmul.f32 %v416, %v416
      %v593 = vmul.f32 %v419, %v419
      %v594 = vmul.f32 %v421, %v421
      %v595 = vmul.f32 %v424, %v424
      %v596 = vmul.f32 %v426, %v426
      %v597 = vmul.f32 %v429, %v429
      %v598 = vmul.f32 %v431, %v431
      %v599 = vmul.f32 %v434, %v434
      %v600 = vmul.f32 %v436, %v436
      %v601 = vmul.f32 %v439, %v439
      %v602 = vmul.f32 %v441, %v441
      %v603 = vmul.f32 %v444, %v444
      %v604 = vmul.f32 %v446, %v446
      %v605 = vmul.f32 %v449, %v449
      %v606 = vmul.f32 %v451, %v451
      %v607 = vmul.f32 %v454, %v454
      %v608 = vmul.f32 %v456, %v456
      %v609 = vmul.f32 %v459, %v459
      %v610 = vmul.f32 %v461, %v461
      %v611 = vmul.f32 %v464, %v464
      %v612 = vmul.f32 %v466, %v466
      %v613 = vmul.f32 %v469, %v469
      %v614 = vmul.f32 %v471, %v471
      %v615 = vmul.f32 %v474, %v474
      %v616 = vmul.f32 %v476, %v476
      %v617 = vsel %vm478, %v585, 0.0
      %v618 = vsel %vm478, %v586, 0.0
      %v619 = vadd.f32 %v617, %v618
      %v620 = vsel %vm478, %v587, 0.0
      %v621 = vadd.f32 %v619, %v620
      %v622 = vsel %vm478, %v588, 0.0
      %v623 = vadd.f32 %v621, %v622
      %v624 = vsel %vm478, %v589, 0.0
      %v625 = vadd.f32 %v623, %v624
      %v626 = vsel %vm478, %v590, 0.0
      %v627 = vadd.f32 %v625, %v626
      %v628 = vsel %vm478, %v591, 0.0
      %v629 = vadd.f32 %v627, %v628
      %v630 = vsel %vm478, %v592, 0.0
      %v631 = vadd.f32 %v629, %v630
      %v632 = vsel %vm478, %v593, 0.0
      %v633 = vadd.f32 %v631, %v632
      %v634 = vsel %vm478, %v594, 0.0
      %v635 = vadd.f32 %v633, %v634
      %v636 = vsel %vm478, %v595, 0.0
      %v637 = vadd.f32 %v635, %v636
      %v638 = vsel %vm478, %v596, 0.0
      %v639 = vadd.f32 %v637, %v638
      %v640 = vsel %vm478, %v597, 0.0
      %v641 = vadd.f32 %v639, %v640
      %v642 = vsel %vm478, %v598, 0.0
      %v643 = vadd.f32 %v641, %v642
      %v644 = vsel %vm478, %v599, 0.0
      %v645 = vadd.f32 %v643, %v644
      %v646 = vsel %vm478, %v600, 0.0
      %v647 = vadd.f32 %v645, %v646
      %v648 = vsel %vm478, %v601, 0.0
      %v649 = vadd.f32 %v647, %v648
      %v650 = vsel %vm478, %v602, 0.0
      %v651 = vadd.f32 %v649, %v650
      %v652 = vsel %vm478, %v603, 0.0
      %v653 = vadd.f32 %v651, %v652
      %v654 = vsel %vm478, %v604, 0.0
      %v655 = vadd.f32 %v653, %v654
      %v656 = vsel %vm478, %v605, 0.0
      %v657 = vadd.f32 %v655, %v656
      %v658 = vsel %vm478, %v606, 0.0
      %v659 = vadd.f32 %v657, %v658
      %v660 = vsel %vm478, %v607, 0.0
      %v661 = vadd.f32 %v659, %v660
      %v662 = vsel %vm478, %v608, 0.0
      %v663 = vadd.f32 %v661, %v662
      %v664 = vsel %vm478, %v609, 0.0
      %v665 = vadd.f32 %v663, %v664
      %v666 = vsel %vm478, %v610, 0.0
      %v667 = vadd.f32 %v665, %v666
      %v668 = vsel %vm478, %v611, 0.0
      %v669 = vadd.f32 %v667, %v668
      %v670 = vsel %vm478, %v612, 0.0
      %v671 = vadd.f32 %v669, %v670
      %v672 = vsel %vm478, %v613, 0.0
      %v673 = vadd.f32 %v671, %v672
      %v674 = vsel %vm478, %v614, 0.0
      %v675 = vadd.f32 %v673, %v674
      %v676 = vsel %vm478, %v615, 0.0
      %v677 = vadd.f32 %v675, %v676
      %v678 = vsel %vm478, %v616, 0.0
      %v679 = vadd.f32 %v677, %v678
      %v680 = vrot.slane %v679, 4
      %v681 = vadd.f32 %v679, %v680
      %v682 = vrot.slane %v681, 2
      %v683 = vadd.f32 %v681, %v682
      %v684 = vrot.slane %v683, 1
      %v685 = vadd.f32 %v683, %v684
      %v686 = vadd.f32 %v584, %v685
      %687 = vst.msk [vmem:[%s4] sm:$0x1] %vm582, %v686
      %s688 = smul.u32 32, %s16
      %p689 = scmp.lt.s32.totalorder %s688, 63
      %s690 = scalar_select %p689, %s688, 63
      %s691 = smul.addr %s690, 8
      %s692 = scalar_lea.vmem %s2, %s691
      // Predicated region
      $region33: #{cat_bottleneck_forward.8} parent=27 // pred_check
        %p693 = pneg %p81
      $region34: #{cat_bottleneck_forward.8} parent=27 // pred_check_branch
        %695 = sbr.rel (%p693) target = $region36
      $region35: #{cat_bottleneck_forward.8} parent=27 // pred_region
        %s696 = smul.u32 32, %s16
      $region36: #{cat_bottleneck_forward.8} parent=27 // pred_fallthru
        _
      // Predicated region
      $region37: #{cat_bottleneck_forward.8} parent=27 // pred_check
        %p697 = pneg %p102
      $region38: #{cat_bottleneck_forward.8} parent=27 // pred_check_branch
        %699 = sbr.rel (%p697) target = $region40
      $region39: #{cat_bottleneck_forward.8} parent=27 // pred_region
        _
      $region40: #{cat_bottleneck_forward.8} parent=27 // pred_fallthru
        _
      // Predicated region
      $region41: #{cat_bottleneck_forward.8} parent=27 // pred_check
        %p700 = pneg %p123
      $region42: #{cat_bottleneck_forward.8} parent=27 // pred_check_branch
        %702 = sbr.rel (%p700) target = $region44
      $region43: #{cat_bottleneck_forward.8} parent=27 // pred_region
        _
      $region44: #{cat_bottleneck_forward.8} parent=27 // pred_fallthru
        _
      // Predicated region
      $region45: #{cat_bottleneck_forward.8} parent=27 // pred_check
        %p703 = pneg %p102
      $region46: #{cat_bottleneck_forward.8} parent=27 // pred_check_branch
        %705 = sbr.rel (%p703) target = $region48
      $region47: #{cat_bottleneck_forward.8} parent=27 // pred_region
        _
      $region48: #{cat_bottleneck_forward.8} parent=27 // pred_fallthru
        _
      // Predicated region
      $region49: #{cat_bottleneck_forward.8} parent=27 // pred_check
        %p706 = pneg %p123
      $region50: #{cat_bottleneck_forward.8} parent=27 // pred_check_branch
        %708 = sbr.rel (%p706) target = $region52
      $region51: #{cat_bottleneck_forward.8} parent=27 // pred_region
        _
      $region52: #{cat_bottleneck_forward.8} parent=27 // pred_fallthru
        _
    $region28: #{cat_bottleneck_forward.8} parent=5 // pred_fallthru
      _
    %p709 = scmp.le.s32.totalorder 2, %s11
    // Predicated region
    $region53: #{cat_bottleneck_forward.8} parent=5 // pred_check
      %p710 = pneg %p709
    $region54: #{cat_bottleneck_forward.8} parent=5 // pred_check_branch
      %712 = sbr.rel (%p710) target = $region56
    $region55: #{cat_bottleneck_forward.8} parent=5 // pred_region
      %s713 = ssub.s32 %s11, 2
      // Predicated region
      $region57: #{cat_bottleneck_forward.8} parent=55 // pred_check
        %p714 = pneg %p87
      $region58: #{cat_bottleneck_forward.8} parent=55 // pred_check_branch
        %716 = sbr.rel (%p714) target = $region60
      $region59: #{cat_bottleneck_forward.8} parent=55 // pred_region
        %s717 = smul.u32 32, %s17
        %p718 = scmp.lt.s32.totalorder %s717, 63
        %s719 = scalar_select %p718, %s717, 63
        %s720 = smul.addr %s719, 8
        %s721 = scalar_lea.vmem %s2, %s720
      $region60: #{cat_bottleneck_forward.8} parent=55 // pred_fallthru
        _
    $region56: #{cat_bottleneck_forward.8} parent=5 // pred_fallthru
      _
  $region6: #{cat_bottleneck_forward.8} parent=0 // loop_footer
    %s15 = sadd.s32 1, %s11
  $region7: #{cat_bottleneck_forward.8} parent=0 // loop_footer_branch
    %10 = sbr.rel target = $region3
  $region8: #{cat_bottleneck_forward.8} parent=0 // loop_exit
    _

// kernel: cat_bottleneck_forward.9
$region0: #{cat_bottleneck_forward.9}
  #allocation0 [shape = 'u32[]', space=smem, size = 0x4, offset = 0x4, fixed_abs, tag = 'smem constant byte address 0x4 - core index']
  #allocation1 [shape = 'u32[72,128]{1,0:T(1,128)}', space=vmem, size = 0x9000, scoped, tag = 'internal scratch']
  %s0 = inlined_call_operand.vmem [shape: f32[512,2], index: 0, kind: input, shape index: {}]
  %s1 = inlined_call_operand.vmem [shape: f32[1,2], index: 1, kind: input, shape index: {}]
  %s2 = inlined_call_operand.vmem [shape: f32[1,2], index: 2, kind: input, shape index: {}]
  %s3 = inlined_call_operand.vmem [shape: f32[1,2], index: 3, kind: input, shape index: {}]
  %s4 = inlined_call_operand.vmem [shape: f32[1,2], index: 4, kind: input, shape index: {}]
  %s5 = inlined_call_operand.vmem [shape: f32[512,2], index: 5, kind: output, shape index: {}]
  %s6 = sld [smem:[#allocation0]]
  $region53: #{cat_bottleneck_forward.9} parent=0
    _
  %s8 = ssub.s32 1, %s6
  %s9 = scalar_select 0, %s8, %s6
  loop: start=0, step=1, limit=4
  $region2: #{cat_bottleneck_forward.9} parent=0 // loop_pre_header
    _
  $region3: #{cat_bottleneck_forward.9} parent=0 // loop_header
    %s11 = sphi 0, %s15
    %p12 = scmp.ge.s32.totalorder %s11, 4
    %s21 = sphi 0, %s23
    %s24 = sphi 0, %s21
    %s25 = sphi 0, %s24
    %s41 = sphi 0, %s25
    %s45 = sphi 0, %s45
    %s47 = sphi 0, %s45
    %s48 = sphi 0, %s47
    %s62 = sphi 0, %s48
    %s66 = sphi 0, %s66
    %s68 = sphi 0, %s66
    %s69 = sphi 0, %s68
    %s83 = sphi 0, %s69
    %s87 = sphi 0, %s87
    %s89 = sphi 0, %s87
    %s90 = sphi 0, %s89
    %s104 = sphi 0, %s90
    %s108 = sphi 0, %s108
    %s110 = sphi 0, %s108
    %s111 = sphi 0, %s110
    %s125 = sphi 0, %s111
    %s131 = sphi 0, %s133
    %s134 = sphi 0, %s131
    %s135 = sphi 0, %s134
    %s151 = sphi 0, %s135
  $region4: #{cat_bottleneck_forward.9} parent=0 // loop_header_branch
    %14 = sbr.rel (%p12) target = $region8
  $region5: #{cat_bottleneck_forward.9} parent=0 // loop_body
    %s16 = ssub.s32 %s11, 1
    %s17 = ssub.s32 %s11, 2
    %s18 = sadd.s32 %s11, 1
    %s19 = ssub.s32 %s11, %s18
    %p20 = scmp.eq.s32.totalorder %s19, 0
    %s22 = sadd.s32 %s21, 1
    %s23 = scalar_select %p20, %s21, %s22
    %p26 = pneg %p20
    %p27 = scmp.eq.s32.totalorder %s11, 1
    %p28 = por %p26, %p27
    %p29 = scmp.ne.s32.totalorder %s21, %s24
    %p30 = scmp.eq.s32.totalorder %s11, 0
    %p31 = por %p29, %p30
    %p32 = scmp.ne.s32.totalorder %s21, %s24
    %p33 = scmp.eq.s32.totalorder %s16, 1
    %p34 = por %p32, %p33
    %p35 = scmp.ne.s32.totalorder %s24, %s25
    %p36 = scmp.eq.s32.totalorder %s16, 0
    %p37 = por %p35, %p36
    %p38 = scmp.ne.s32.totalorder %s24, %s25
    %p39 = scmp.eq.s32.totalorder %s17, 1
    %p40 = por %p38, %p39
    %p42 = scmp.ne.s32.totalorder %s25, %s41
    %p43 = scmp.eq.s32.totalorder %s17, 0
    %p44 = por %p42, %p43
    %s46 = sadd.s32 %s45, 1
    %p49 = scmp.eq.s32.totalorder %s11, 1
    %p50 = scmp.ne.s32.totalorder %s45, %s47
    %p51 = scmp.eq.s32.totalorder %s11, 0
    %p52 = por %p50, %p51
    %p53 = scmp.ne.s32.totalorder %s45, %s47
    %p54 = scmp.eq.s32.totalorder %s16, 1
    %p55 = por %p53, %p54
    %p56 = scmp.ne.s32.totalorder %s47, %s48
    %p57 = scmp.eq.s32.totalorder %s16, 0
    %p58 = por %p56, %p57
    %p59 = scmp.ne.s32.totalorder %s47, %s48
    %p60 = scmp.eq.s32.totalorder %s17, 1
    %p61 = por %p59, %p60
    %p63 = scmp.ne.s32.totalorder %s48, %s62
    %p64 = scmp.eq.s32.totalorder %s17, 0
    %p65 = por %p63, %p64
    %s67 = sadd.s32 %s66, 1
    %p70 = scmp.eq.s32.totalorder %s11, 1
    %p71 = scmp.ne.s32.totalorder %s66, %s68
    %p72 = scmp.eq.s32.totalorder %s11, 0
    %p73 = por %p71, %p72
    %p74 = scmp.ne.s32.totalorder %s66, %s68
    %p75 = scmp.eq.s32.totalorder %s16, 1
    %p76 = por %p74, %p75
    %p77 = scmp.ne.s32.totalorder %s68, %s69
    %p78 = scmp.eq.s32.totalorder %s16, 0
    %p79 = por %p77, %p78
    %p80 = scmp.ne.s32.totalorder %s68, %s69
    %p81 = scmp.eq.s32.totalorder %s17, 1
    %p82 = por %p80, %p81
    %p84 = scmp.ne.s32.totalorder %s69, %s83
    %p85 = scmp.eq.s32.totalorder %s17, 0
    %p86 = por %p84, %p85
    %s88 = sadd.s32 %s87, 1
    %p91 = scmp.eq.s32.totalorder %s11, 1
    %p92 = scmp.ne.s32.totalorder %s87, %s89
    %p93 = scmp.eq.s32.totalorder %s11, 0
    %p94 = por %p92, %p93
    %p95 = scmp.ne.s32.totalorder %s87, %s89
    %p96 = scmp.eq.s32.totalorder %s16, 1
    %p97 = por %p95, %p96
    %p98 = scmp.ne.s32.totalorder %s89, %s90
    %p99 = scmp.eq.s32.totalorder %s16, 0
    %p100 = por %p98, %p99
    %p101 = scmp.ne.s32.totalorder %s89, %s90
    %p102 = scmp.eq.s32.totalorder %s17, 1
    %p103 = por %p101, %p102
    %p105 = scmp.ne.s32.totalorder %s90, %s104
    %p106 = scmp.eq.s32.totalorder %s17, 0
    %p107 = por %p105, %p106
    %s109 = sadd.s32 %s108, 1
    %p112 = scmp.eq.s32.totalorder %s11, 1
    %p113 = scmp.ne.s32.totalorder %s108, %s110
    %p114 = scmp.eq.s32.totalorder %s11, 0
    %p115 = por %p113, %p114
    %p116 = scmp.ne.s32.totalorder %s108, %s110
    %p117 = scmp.eq.s32.totalorder %s16, 1
    %p118 = por %p116, %p117
    %p119 = scmp.ne.s32.totalorder %s110, %s111
    %p120 = scmp.eq.s32.totalorder %s16, 0
    %p121 = por %p119, %p120
    %p122 = scmp.ne.s32.totalorder %s110, %s111
    %p123 = scmp.eq.s32.totalorder %s17, 1
    %p124 = por %p122, %p123
    %p126 = scmp.ne.s32.totalorder %s111, %s125
    %p127 = scmp.eq.s32.totalorder %s17, 0
    %p128 = por %p126, %p127
    %s129 = ssub.s32 %s11, %s18
    %p130 = scmp.eq.s32.totalorder %s129, 0
    %s132 = sadd.s32 %s131, 1
    %s133 = scalar_select %p130, %s131, %s132
    %p136 = pneg %p130
    %p137 = scmp.eq.s32.totalorder %s11, 1
    %p138 = por %p136, %p137
    %p139 = scmp.ne.s32.totalorder %s131, %s134
    %p140 = scmp.eq.s32.totalorder %s11, 0
    %p141 = por %p139, %p140
    %p142 = scmp.ne.s32.totalorder %s131, %s134
    %p143 = scmp.eq.s32.totalorder %s16, 1
    %p144 = por %p142, %p143
    %p145 = scmp.ne.s32.totalorder %s134, %s135
    %p146 = scmp.eq.s32.totalorder %s16, 0
    %p147 = por %p145, %p146
    %p148 = scmp.ne.s32.totalorder %s134, %s135
    %p149 = scmp.eq.s32.totalorder %s17, 1
    %p150 = por %p148, %p149
    %p152 = scmp.ne.s32.totalorder %s135, %s151
    %p153 = scmp.eq.s32.totalorder %s17, 0
    %p154 = por %p152, %p153
    %p155 = scmp.le.s32.totalorder 1, %s11
    %p156 = scmp.lt.s32.totalorder %s11, 3
    %p157 = pnand %p155, %p156
    %p158 = pneg %p157
    // Predicated region
    $region9: #{cat_bottleneck_forward.9} parent=5 // pred_check
      _
    $region10: #{cat_bottleneck_forward.9} parent=5 // pred_check_branch
      %160 = sbr.rel (%p157) target = $region12
    $region11: #{cat_bottleneck_forward.9} parent=5 // pred_region
      %s161 = ssub.s32 %s11, 1
      // Predicated region
      $region13: #{cat_bottleneck_forward.9} parent=11 // pred_check
        %p162 = pneg %p58
      $region14: #{cat_bottleneck_forward.9} parent=11 // pred_check_branch
        %164 = sbr.rel (%p162) target = $region16
      $region15: #{cat_bottleneck_forward.9} parent=11 // pred_region
        _
      $region16: #{cat_bottleneck_forward.9} parent=11 // pred_fallthru
        _
      // Predicated region
      $region17: #{cat_bottleneck_forward.9} parent=11 // pred_check
        %p165 = pneg %p79
      $region18: #{cat_bottleneck_forward.9} parent=11 // pred_check_branch
        %167 = sbr.rel (%p165) target = $region20
      $region19: #{cat_bottleneck_forward.9} parent=11 // pred_region
        _
      $region20: #{cat_bottleneck_forward.9} parent=11 // pred_fallthru
        _
      // Predicated region
      $region21: #{cat_bottleneck_forward.9} parent=11 // pred_check
        %p168 = pneg %p100
      $region22: #{cat_bottleneck_forward.9} parent=11 // pred_check_branch
        %170 = sbr.rel (%p168) target = $region24
      $region23: #{cat_bottleneck_forward.9} parent=11 // pred_region
        _
      $region24: #{cat_bottleneck_forward.9} parent=11 // pred_fallthru
        _
      // Predicated region
      $region25: #{cat_bottleneck_forward.9} parent=11 // pred_check
        %p171 = pneg %p121
      $region26: #{cat_bottleneck_forward.9} parent=11 // pred_check_branch
        %173 = sbr.rel (%p171) target = $region28
      $region27: #{cat_bottleneck_forward.9} parent=11 // pred_region
        _
      $region28: #{cat_bottleneck_forward.9} parent=11 // pred_fallthru
        _
    $region12: #{cat_bottleneck_forward.9} parent=5 // pred_fallthru
      _
    %p174 = scmp.lt.s32.totalorder %s11, 2
    // Predicated region
    $region29: #{cat_bottleneck_forward.9} parent=5 // pred_check
      %p175 = pneg %p174
    $region30: #{cat_bottleneck_forward.9} parent=5 // pred_check_branch
      %177 = sbr.rel (%p175) target = $region32
    $region31: #{cat_bottleneck_forward.9} parent=5 // pred_region
      // Predicated region
      $region33: #{cat_bottleneck_forward.9} parent=31 // pred_check
        %p178 = pneg %p31
      $region34: #{cat_bottleneck_forward.9} parent=31 // pred_check_branch
        %180 = sbr.rel (%p178) target = $region36
      $region35: #{cat_bottleneck_forward.9} parent=31 // pred_region
        %s181 = smul.u32 32, %s11
        %p182 = scmp.lt.s32.totalorder %s181, 63
        %s183 = scalar_select %p182, %s181, 63
        %s184 = smul.addr %s183, 8
        %s185 = scalar_lea.vmem %s0, %s184
        %s186 = smul.u32 32, %s11
      $region36: #{cat_bottleneck_forward.9} parent=31 // pred_fallthru
        _
    $region32: #{cat_bottleneck_forward.9} parent=5 // pred_fallthru
      _
    %p187 = scmp.le.s32.totalorder 1, %s11
    %p188 = scmp.lt.s32.totalorder %s11, 3
    %p189 = pnand %p187, %p188
    %p190 = pneg %p189
    // Predicated region
    $region37: #{cat_bottleneck_forward.9} parent=5 // pred_check
      _
    $region38: #{cat_bottleneck_forward.9} parent=5 // pred_check_branch
      %192 = sbr.rel (%p189) target = $region40
    $region39: #{cat_bottleneck_forward.9} parent=5 // pred_region
      %s193 = ssub.s32 %s11, 1
      %s194 = smul.u32 32, %s16
      %p195 = scmp.lt.s32.totalorder %s194, 63
      %s196 = scalar_select %p195, %s194, 63
      %s197 = smul.addr %s196, 8
      %s198 = scalar_lea.vmem %s0, %s197
      %p199 = pneg %p37
      %p200 = pneg %p34
      %p201 = pneg %p58
      %p202 = pneg %p55
      %p203 = pneg %p79
      %p204 = pneg %p76
      %p205 = pneg %p100
      %p206 = pneg %p97
      %p207 = pneg %p121
      %p208 = pneg %p118
      %p209 = pneg %p147
      %p210 = pneg %p144
      %s211 = smul.u32 32, %s16
      %p212 = scmp.lt.s32.totalorder %s211, 63
      %s213 = scalar_select %p212, %s211, 63
      %s214 = smul.addr %s213, 8
      %s215 = scalar_lea.vmem %s5, %s214
      %s216 = smul.u32 32, %s16
      %p217 = scmp.lt.s32.totalorder %s216, 63
      %s218 = scalar_select %p217, %s216, 63
      %s219 = smul.addr %s218, 8
      %s220 = scalar_lea.vmem %s0, %s219
      %s221 = smul.u32 32, %s16
      %s222 = smul.u32 32, %s16
      %p223 = scmp.lt.s32.totalorder %s222, 63
      %s224 = scalar_select %p223, %s222, 63
      %s225 = smul.addr %s224, 8
      %s226 = scalar_lea.vmem %s5, %s225
      %s227 = smul.u32 32, %s16
      %v228 = vld [vmem:[%s1] sm:$0x1]
      %v229 = vmul.f32 %v228, 0.001953125
      %v230 = vld [vmem:[%s2] sm:$0x1]
      %v231 = vmul.f32 %v230, 0.001953125
      %v232 = vmul.f32 %v229, %v229
      %v233 = vsub.f32 %v231, %v232
      %v234 = vmax.f32 %v233, 0.0
      %v235 = vld [vmem:[%s3] sm:$0x1]
      %v236 = vadd.f32 %v234, 1e-05
      %v237 = vrsqrt.pop %v236
      %v238 = vmul.f32 %v237, %v236
      %v239 = vmul.f32 %v238, %v237
      %v240 = vmul.f32 0.5, %v239
      %v241 = vsub.f32 1.5, %v240
      %v242 = vmul.f32 %v237, %v241
      %vm243 = vweird.f32 %v236
      %vm244 = vweird.f32 %v237
      %vm245 = vmor %vm243, %vm244
      %v246 = vsel %vm245, %v237, %v242
      %v247 = vmul.f32 %v235, %v246
      %v248 = vld [vmem:[%s4] sm:$0x1]
      %v249 = vmul.f32 %v229, %v247
      %v250 = vsub.f32 %v248, %v249
      %v251 = vld [vmem:[%s220] sm:$0xff]
      %v252 = vld [vmem:[%s220 + $0x8] sm:$0xff]
      %v253 = vld [vmem:[%s220 + $0x10] sm:$0xff]
      %v254 = vld [vmem:[%s220 + $0x18] sm:$0xff]
      %v255 = vld [vmem:[%s220 + $0x20] sm:$0xff]
      %v256 = vld [vmem:[%s220 + $0x28] sm:$0xff]
      %v257 = vld [vmem:[%s220 + $0x30] sm:$0xff]
      %v258 = vld [vmem:[%s220 + $0x38] sm:$0xff]
      %v259 = vld [vmem:[%s220 + $0x40] sm:$0xff]
      %v260 = vld [vmem:[%s220 + $0x48] sm:$0xff]
      %v261 = vld [vmem:[%s220 + $0x50] sm:$0xff]
      %v262 = vld [vmem:[%s220 + $0x58] sm:$0xff]
      %v263 = vld [vmem:[%s220 + $0x60] sm:$0xff]
      %v264 = vld [vmem:[%s220 + $0x68] sm:$0xff]
      %v265 = vld [vmem:[%s220 + $0x70] sm:$0xff]
      %v266 = vld [vmem:[%s220 + $0x78] sm:$0xff]
      %v267 = vld [vmem:[%s220 + $0x80] sm:$0xff]
      %v268 = vld [vmem:[%s220 + $0x88] sm:$0xff]
      %v269 = vld [vmem:[%s220 + $0x90] sm:$0xff]
      %v270 = vld [vmem:[%s220 + $0x98] sm:$0xff]
      %v271 = vld [vmem:[%s220 + $0xa0] sm:$0xff]
      %v272 = vld [vmem:[%s220 + $0xa8] sm:$0xff]
      %v273 = vld [vmem:[%s220 + $0xb0] sm:$0xff]
      %v274 = vld [vmem:[%s220 + $0xb8] sm:$0xff]
      %v275 = vld [vmem:[%s220 + $0xc0] sm:$0xff]
      %v276 = vld [vmem:[%s220 + $0xc8] sm:$0xff]
      %v277 = vld [vmem:[%s220 + $0xd0] sm:$0xff]
      %v278 = vld [vmem:[%s220 + $0xd8] sm:$0xff]
      %v279 = vld [vmem:[%s220 + $0xe0] sm:$0xff]
      %v280 = vld [vmem:[%s220 + $0xe8] sm:$0xff]
      %v281 = vld [vmem:[%s220 + $0xf0] sm:$0xff]
      %v282 = vld [vmem:[%s220 + $0xf8] sm:$0xff]
      %v284 = vperm.slane %v247, 0
      %v286 = vmul.f32 %v251, %v284
      %v287 = vmul.f32 %v252, %v284
      %v288 = vmul.f32 %v253, %v284
      %v289 = vmul.f32 %v254, %v284
      %v290 = vmul.f32 %v255, %v284
      %v291 = vmul.f32 %v256, %v284
      %v292 = vmul.f32 %v257, %v284
      %v293 = vmul.f32 %v258, %v284
      %v294 = vmul.f32 %v259, %v284
      %v295 = vmul.f32 %v260, %v284
      %v296 = vmul.f32 %v261, %v284
      %v297 = vmul.f32 %v262, %v284
      %v298 = vmul.f32 %v263, %v284
      %v299 = vmul.f32 %v264, %v284
      %v300 = vmul.f32 %v265, %v284
      %v301 = vmul.f32 %v266, %v284
      %v302 = vmul.f32 %v267, %v284
      %v303 = vmul.f32 %v268, %v284
      %v304 = vmul.f32 %v269, %v284
      %v305 = vmul.f32 %v270, %v284
      %v306 = vmul.f32 %v271, %v284
      %v307 = vmul.f32 %v272, %v284
      %v308 = vmul.f32 %v273, %v284
      %v309 = vmul.f32 %v274, %v284
      %v310 = vmul.f32 %v275, %v284
      %v311 = vmul.f32 %v276, %v284
      %v312 = vmul.f32 %v277, %v284
      %v313 = vmul.f32 %v278, %v284
      %v314 = vmul.f32 %v279, %v284
      %v315 = vmul.f32 %v280, %v284
      %v316 = vmul.f32 %v281, %v284
      %v317 = vmul.f32 %v282, %v284
      %v319 = vperm.slane %v250, 0
      %v321 = vadd.f32 %v286, %v319
      %v322 = vadd.f32 %v287, %v319
      %v323 = vadd.f32 %v288, %v319
      %v324 = vadd.f32 %v289, %v319
      %v325 = vadd.f32 %v290, %v319
      %v326 = vadd.f32 %v291, %v319
      %v327 = vadd.f32 %v292, %v319
      %v328 = vadd.f32 %v293, %v319
      %v329 = vadd.f32 %v294, %v319
      %v330 = vadd.f32 %v295, %v319
      %v331 = vadd.f32 %v296, %v319
      %v332 = vadd.f32 %v297, %v319
      %v333 = vadd.f32 %v298, %v319
      %v334 = vadd.f32 %v299, %v319
      %v335 = vadd.f32 %v300, %v319
      %v336 = vadd.f32 %v301, %v319
      %v337 = vadd.f32 %v302, %v319
      %v338 = vadd.f32 %v303, %v319
      %v339 = vadd.f32 %v304, %v319
      %v340 = vadd.f32 %v305, %v319
      %v341 = vadd.f32 %v306, %v319
      %v342 = vadd.f32 %v307, %v319
      %v343 = vadd.f32 %v308, %v319
      %v344 = vadd.f32 %v309, %v319
      %v345 = vadd.f32 %v310, %v319
      %v346 = vadd.f32 %v311, %v319
      %v347 = vadd.f32 %v312, %v319
      %v348 = vadd.f32 %v313, %v319
      %v349 = vadd.f32 %v314, %v319
      %v350 = vadd.f32 %v315, %v319
      %v351 = vadd.f32 %v316, %v319
      %v352 = vadd.f32 %v317, %v319
      %v353 = vmax.f32 %v321, 0.0
      %v354 = vmax.f32 %v322, 0.0
      %v355 = vmax.f32 %v323, 0.0
      %v356 = vmax.f32 %v324, 0.0
      %v357 = vmax.f32 %v325, 0.0
      %v358 = vmax.f32 %v326, 0.0
      %v359 = vmax.f32 %v327, 0.0
      %v360 = vmax.f32 %v328, 0.0
      %v361 = vmax.f32 %v329, 0.0
      %v362 = vmax.f32 %v330, 0.0
      %v363 = vmax.f32 %v331, 0.0
      %v364 = vmax.f32 %v332, 0.0
      %v365 = vmax.f32 %v333, 0.0
      %v366 = vmax.f32 %v334, 0.0
      %v367 = vmax.f32 %v335, 0.0
      %v368 = vmax.f32 %v336, 0.0
      %v369 = vmax.f32 %v337, 0.0
      %v370 = vmax.f32 %v338, 0.0
      %v371 = vmax.f32 %v339, 0.0
      %v372 = vmax.f32 %v340, 0.0
      %v373 = vmax.f32 %v341, 0.0
      %v374 = vmax.f32 %v342, 0.0
      %v375 = vmax.f32 %v343, 0.0
      %v376 = vmax.f32 %v344, 0.0
      %v377 = vmax.f32 %v345, 0.0
      %v378 = vmax.f32 %v346, 0.0
      %v379 = vmax.f32 %v347, 0.0
      %v380 = vmax.f32 %v348, 0.0
      %v381 = vmax.f32 %v349, 0.0
      %v382 = vmax.f32 %v350, 0.0
      %v383 = vmax.f32 %v351, 0.0
      %v384 = vmax.f32 %v352, 0.0
      %vm385 = vcmask 15360
      %386 = vst.msk [vmem:[%s226] sm:$0xff] %vm385, %v353
      %387 = vst.msk [vmem:[%s226 + $0x8] sm:$0xff] %vm385, %v354
      %388 = vst.msk [vmem:[%s226 + $0x10] sm:$0xff] %vm385, %v355
      %389 = vst.msk [vmem:[%s226 + $0x18] sm:$0xff] %vm385, %v356
      %390 = vst.msk [vmem:[%s226 + $0x20] sm:$0xff] %vm385, %v357
      %391 = vst.msk [vmem:[%s226 + $0x28] sm:$0xff] %vm385, %v358
      %392 = vst.msk [vmem:[%s226 + $0x30] sm:$0xff] %vm385, %v359
      %393 = vst.msk [vmem:[%s226 + $0x38] sm:$0xff] %vm385, %v360
      %394 = vst.msk [vmem:[%s226 + $0x40] sm:$0xff] %vm385, %v361
      %395 = vst.msk [vmem:[%s226 + $0x48] sm:$0xff] %vm385, %v362
      %396 = vst.msk [vmem:[%s226 + $0x50] sm:$0xff] %vm385, %v363
      %397 = vst.msk [vmem:[%s226 + $0x58] sm:$0xff] %vm385, %v364
      %398 = vst.msk [vmem:[%s226 + $0x60] sm:$0xff] %vm385, %v365
      %399 = vst.msk [vmem:[%s226 + $0x68] sm:$0xff] %vm385, %v366
      %400 = vst.msk [vmem:[%s226 + $0x70] sm:$0xff] %vm385, %v367
      %401 = vst.msk [vmem:[%s226 + $0x78] sm:$0xff] %vm385, %v368
      %402 = vst.msk [vmem:[%s226 + $0x80] sm:$0xff] %vm385, %v369
      %403 = vst.msk [vmem:[%s226 + $0x88] sm:$0xff] %vm385, %v370
      %404 = vst.msk [vmem:[%s226 + $0x90] sm:$0xff] %vm385, %v371
      %405 = vst.msk [vmem:[%s226 + $0x98] sm:$0xff] %vm385, %v372
      %406 = vst.msk [vmem:[%s226 + $0xa0] sm:$0xff] %vm385, %v373
      %407 = vst.msk [vmem:[%s226 + $0xa8] sm:$0xff] %vm385, %v374
      %408 = vst.msk [vmem:[%s226 + $0xb0] sm:$0xff] %vm385, %v375
      %409 = vst.msk [vmem:[%s226 + $0xb8] sm:$0xff] %vm385, %v376
      %410 = vst.msk [vmem:[%s226 + $0xc0] sm:$0xff] %vm385, %v377
      %411 = vst.msk [vmem:[%s226 + $0xc8] sm:$0xff] %vm385, %v378
      %412 = vst.msk [vmem:[%s226 + $0xd0] sm:$0xff] %vm385, %v379
      %413 = vst.msk [vmem:[%s226 + $0xd8] sm:$0xff] %vm385, %v380
      %414 = vst.msk [vmem:[%s226 + $0xe0] sm:$0xff] %vm385, %v381
      %415 = vst.msk [vmem:[%s226 + $0xe8] sm:$0xff] %vm385, %v382
      %416 = vst.msk [vmem:[%s226 + $0xf0] sm:$0xff] %vm385, %v383
      %417 = vst.msk [vmem:[%s226 + $0xf8] sm:$0xff] %vm385, %v384
      %s418 = smul.u32 32, %s16
      %p419 = scmp.lt.s32.totalorder %s418, 63
      %s420 = scalar_select %p419, %s418, 63
      %s421 = smul.addr %s420, 8
      %s422 = scalar_lea.vmem %s5, %s421
      // Predicated region
      $region41: #{cat_bottleneck_forward.9} parent=39 // pred_check
        %p423 = pneg %p144
      $region42: #{cat_bottleneck_forward.9} parent=39 // pred_check_branch
        %425 = sbr.rel (%p423) target = $region44
      $region43: #{cat_bottleneck_forward.9} parent=39 // pred_region
        %s426 = smul.u32 32, %s16
      $region44: #{cat_bottleneck_forward.9} parent=39 // pred_fallthru
        _
    $region40: #{cat_bottleneck_forward.9} parent=5 // pred_fallthru
      _
    %p427 = scmp.le.s32.totalorder 2, %s11
    // Predicated region
    $region45: #{cat_bottleneck_forward.9} parent=5 // pred_check
      %p428 = pneg %p427
    $region46: #{cat_bottleneck_forward.9} parent=5 // pred_check_branch
      %430 = sbr.rel (%p428) target = $region48
    $region47: #{cat_bottleneck_forward.9} parent=5 // pred_region
      %s431 = ssub.s32 %s11, 2
      // Predicated region
      $region49: #{cat_bottleneck_forward.9} parent=47 // pred_check
        %p432 = pneg %p150
      $region50: #{cat_bottleneck_forward.9} parent=47 // pred_check_branch
        %434 = sbr.rel (%p432) target = $region52
      $region51: #{cat_bottleneck_forward.9} parent=47 // pred_region
        %s435 = smul.u32 32, %s17
        %p436 = scmp.lt.s32.totalorder %s435, 63
        %s437 = scalar_select %p436, %s435, 63
        %s438 = smul.addr %s437, 8
        %s439 = scalar_lea.vmem %s5, %s438
      $region52: #{cat_bottleneck_forward.9} parent=47 // pred_fallthru
        _
    $region48: #{cat_bottleneck_forward.9} parent=5 // pred_fallthru
      _
  $region6: #{cat_bottleneck_forward.9} parent=0 // loop_footer
    %s15 = sadd.s32 1, %s11
  $region7: #{cat_bottleneck_forward.9} parent=0 // loop_footer_branch
    %10 = sbr.rel target = $region3
  $region8: #{cat_bottleneck_forward.9} parent=0 // loop_exit
    _

// kernel: cat_bottleneck_forward.10
$region0: #{cat_bottleneck_forward.10}
  #allocation0 [shape = 'u32[]', space=smem, size = 0x4, offset = 0x4, fixed_abs, tag = 'smem constant byte address 0x4 - core index']
  #allocation1 [shape = 'u32[72,128]{1,0:T(1,128)}', space=vmem, size = 0x9000, scoped, tag = 'internal scratch']
  %s0 = inlined_call_operand.vmem [shape: bf16[512,18], index: 0, kind: input, shape index: {}]
  %s1 = inlined_call_operand.vmem [shape: bf16[18,2], index: 1, kind: input, shape index: {}]
  %s2 = inlined_call_operand.vmem [shape: f32[512,2], index: 2, kind: output, shape index: {0}]
  %s3 = inlined_call_operand.vmem [shape: f32[1,2], index: 3, kind: output, shape index: {1}]
  %s4 = inlined_call_operand.vmem [shape: f32[1,2], index: 4, kind: output, shape index: {2}]
  %5 = xla_tuple %s2, %s3, %s4
  %s6 = sld [smem:[#allocation0]]
  $region61: #{cat_bottleneck_forward.10} parent=0
    _
  %s8 = ssub.s32 1, %s6
  %s9 = scalar_select 0, %s8, %s6
  loop: start=0, step=1, limit=4
  $region2: #{cat_bottleneck_forward.10} parent=0 // loop_pre_header
    _
  $region3: #{cat_bottleneck_forward.10} parent=0 // loop_header
    %s11 = sphi 0, %s15
    %p12 = scmp.ge.s32.totalorder %s11, 4
    %s21 = sphi 0, %s23
    %s24 = sphi 0, %s21
    %s25 = sphi 0, %s24
    %s41 = sphi 0, %s25
    %s45 = sphi 0, %s45
    %s47 = sphi 0, %s45
    %s48 = sphi 0, %s47
    %s62 = sphi 0, %s48
    %s68 = sphi 0, %s70
    %s71 = sphi 0, %s68
    %s72 = sphi 0, %s71
    %s88 = sphi 0, %s72
    %s92 = sphi 0, %s92
    %s94 = sphi 0, %s92
    %s95 = sphi 0, %s94
    %s109 = sphi 0, %s95
    %s113 = sphi 0, %s113
    %s115 = sphi 0, %s113
    %s116 = sphi 0, %s115
    %s130 = sphi 0, %s116
  $region4: #{cat_bottleneck_forward.10} parent=0 // loop_header_branch
    %14 = sbr.rel (%p12) target = $region8
  $region5: #{cat_bottleneck_forward.10} parent=0 // loop_body
    %s16 = ssub.s32 %s11, 1
    %s17 = ssub.s32 %s11, 2
    %s18 = sadd.s32 %s11, 1
    %s19 = ssub.s32 %s11, %s18
    %p20 = scmp.eq.s32.totalorder %s19, 0
    %s22 = sadd.s32 %s21, 1
    %s23 = scalar_select %p20, %s21, %s22
    %p26 = pneg %p20
    %p27 = scmp.eq.s32.totalorder %s11, 1
    %p28 = por %p26, %p27
    %p29 = scmp.ne.s32.totalorder %s21, %s24
    %p30 = scmp.eq.s32.totalorder %s11, 0
    %p31 = por %p29, %p30
    %p32 = scmp.ne.s32.totalorder %s21, %s24
    %p33 = scmp.eq.s32.totalorder %s16, 1
    %p34 = por %p32, %p33
    %p35 = scmp.ne.s32.totalorder %s24, %s25
    %p36 = scmp.eq.s32.totalorder %s16, 0
    %p37 = por %p35, %p36
    %p38 = scmp.ne.s32.totalorder %s24, %s25
    %p39 = scmp.eq.s32.totalorder %s17, 1
    %p40 = por %p38, %p39
    %p42 = scmp.ne.s32.totalorder %s25, %s41
    %p43 = scmp.eq.s32.totalorder %s17, 0
    %p44 = por %p42, %p43
    %s46 = sadd.s32 %s45, 1
    %p49 = scmp.eq.s32.totalorder %s11, 1
    %p50 = scmp.ne.s32.totalorder %s45, %s47
    %p51 = scmp.eq.s32.totalorder %s11, 0
    %p52 = por %p50, %p51
    %p53 = scmp.ne.s32.totalorder %s45, %s47
    %p54 = scmp.eq.s32.totalorder %s16, 1
    %p55 = por %p53, %p54
    %p56 = scmp.ne.s32.totalorder %s47, %s48
    %p57 = scmp.eq.s32.totalorder %s16, 0
    %p58 = por %p56, %p57
    %p59 = scmp.ne.s32.totalorder %s47, %s48
    %p60 = scmp.eq.s32.totalorder %s17, 1
    %p61 = por %p59, %p60
    %p63 = scmp.ne.s32.totalorder %s48, %s62
    %p64 = scmp.eq.s32.totalorder %s17, 0
    %p65 = por %p63, %p64
    %s66 = ssub.s32 %s11, %s18
    %p67 = scmp.eq.s32.totalorder %s66, 0
    %s69 = sadd.s32 %s68, 1
    %s70 = scalar_select %p67, %s68, %s69
    %p73 = pneg %p67
    %p74 = scmp.eq.s32.totalorder %s11, 1
    %p75 = por %p73, %p74
    %p76 = scmp.ne.s32.totalorder %s68, %s71
    %p77 = scmp.eq.s32.totalorder %s11, 0
    %p78 = por %p76, %p77
    %p79 = scmp.ne.s32.totalorder %s68, %s71
    %p80 = scmp.eq.s32.totalorder %s16, 1
    %p81 = por %p79, %p80
    %p82 = scmp.ne.s32.totalorder %s71, %s72
    %p83 = scmp.eq.s32.totalorder %s16, 0
    %p84 = por %p82, %p83
    %p85 = scmp.ne.s32.totalorder %s71, %s72
    %p86 = scmp.eq.s32.totalorder %s17, 1
    %p87 = por %p85, %p86
    %p89 = scmp.ne.s32.totalorder %s72, %s88
    %p90 = scmp.eq.s32.totalorder %s17, 0
    %p91 = por %p89, %p90
    %s93 = sadd.s32 %s92, 1
    %p96 = scmp.eq.s32.totalorder %s11, 1
    %p97 = scmp.ne.s32.totalorder %s92, %s94
    %p98 = scmp.eq.s32.totalorder %s11, 0
    %p99 = por %p97, %p98
    %p100 = scmp.ne.s32.totalorder %s92, %s94
    %p101 = scmp.eq.s32.totalorder %s16, 1
    %p102 = por %p100, %p101
    %p103 = scmp.ne.s32.totalorder %s94, %s95
    %p104 = scmp.eq.s32.totalorder %s16, 0
    %p105 = por %p103, %p104
    %p106 = scmp.ne.s32.totalorder %s94, %s95
    %p107 = scmp.eq.s32.totalorder %s17, 1
    %p108 = por %p106, %p107
    %p110 = scmp.ne.s32.totalorder %s95, %s109
    %p111 = scmp.eq.s32.totalorder %s17, 0
    %p112 = por %p110, %p111
    %s114 = sadd.s32 %s113, 1
    %p117 = scmp.eq.s32.totalorder %s11, 1
    %p118 = scmp.ne.s32.totalorder %s113, %s115
    %p119 = scmp.eq.s32.totalorder %s11, 0
    %p120 = por %p118, %p119
    %p121 = scmp.ne.s32.totalorder %s113, %s115
    %p122 = scmp.eq.s32.totalorder %s16, 1
    %p123 = por %p121, %p122
    %p124 = scmp.ne.s32.totalorder %s115, %s116
    %p125 = scmp.eq.s32.totalorder %s16, 0
    %p126 = por %p124, %p125
    %p127 = scmp.ne.s32.totalorder %s115, %s116
    %p128 = scmp.eq.s32.totalorder %s17, 1
    %p129 = por %p127, %p128
    %p131 = scmp.ne.s32.totalorder %s116, %s130
    %p132 = scmp.eq.s32.totalorder %s17, 0
    %p133 = por %p131, %p132
    %p134 = scmp.le.s32.totalorder 1, %s11
    %p135 = scmp.lt.s32.totalorder %s11, 3
    %p136 = pnand %p134, %p135
    %p137 = pneg %p136
    // Predicated region
    $region9: #{cat_bottleneck_forward.10} parent=5 // pred_check
      _
    $region10: #{cat_bottleneck_forward.10} parent=5 // pred_check_branch
      %139 = sbr.rel (%p136) target = $region12
    $region11: #{cat_bottleneck_forward.10} parent=5 // pred_region
      %s140 = ssub.s32 %s11, 1
      // Predicated region
      $region13: #{cat_bottleneck_forward.10} parent=11 // pred_check
        %p141 = pneg %p58
      $region14: #{cat_bottleneck_forward.10} parent=11 // pred_check_branch
        %143 = sbr.rel (%p141) target = $region16
      $region15: #{cat_bottleneck_forward.10} parent=11 // pred_region
        _
      $region16: #{cat_bottleneck_forward.10} parent=11 // pred_fallthru
        _
    $region12: #{cat_bottleneck_forward.10} parent=5 // pred_fallthru
      _
    %p144 = scmp.lt.s32.totalorder %s11, 2
    // Predicated region
    $region17: #{cat_bottleneck_forward.10} parent=5 // pred_check
      %p145 = pneg %p144
    $region18: #{cat_bottleneck_forward.10} parent=5 // pred_check_branch
      %147 = sbr.rel (%p145) target = $region20
    $region19: #{cat_bottleneck_forward.10} parent=5 // pred_region
      // Predicated region
      $region21: #{cat_bottleneck_forward.10} parent=19 // pred_check
        %p148 = pneg %p31
      $region22: #{cat_bottleneck_forward.10} parent=19 // pred_check_branch
        %150 = sbr.rel (%p148) target = $region24
      $region23: #{cat_bottleneck_forward.10} parent=19 // pred_region
        %s151 = smul.u32 32, %s11
        %p152 = scmp.lt.s32.totalorder %s151, 63
        %s153 = scalar_select %p152, %s151, 63
        %s154 = smul.addr %s153, 4
        %s155 = scalar_lea.vmem %s0, %s154
        %s156 = smul.u32 32, %s11
      $region24: #{cat_bottleneck_forward.10} parent=19 // pred_fallthru
        _
    $region20: #{cat_bottleneck_forward.10} parent=5 // pred_fallthru
      _
    %p157 = scmp.le.s32.totalorder 1, %s11
    %p158 = scmp.lt.s32.totalorder %s11, 3
    %p159 = pnand %p157, %p158
    %p160 = pneg %p159
    // Predicated region
    $region25: #{cat_bottleneck_forward.10} parent=5 // pred_check
      _
    $region26: #{cat_bottleneck_forward.10} parent=5 // pred_check_branch
      %162 = sbr.rel (%p159) target = $region28
    $region27: #{cat_bottleneck_forward.10} parent=5 // pred_region
      %s163 = ssub.s32 %s11, 1
      %s164 = smul.u32 32, %s16
      %p165 = scmp.lt.s32.totalorder %s164, 63
      %s166 = scalar_select %p165, %s164, 63
      %s167 = smul.addr %s166, 4
      %s168 = scalar_lea.vmem %s0, %s167
      %p169 = pneg %p37
      %p170 = pneg %p34
      %p171 = pneg %p58
      %p172 = pneg %p55
      %p173 = pneg %p84
      %p174 = pneg %p81
      %s175 = smul.u32 32, %s16
      %p176 = scmp.lt.s32.totalorder %s175, 63
      %s177 = scalar_select %p176, %s175, 63
      %s178 = smul.addr %s177, 8
      %s179 = scalar_lea.vmem %s2, %s178
      %p180 = pneg %p105
      %p181 = pneg %p102
      %p182 = pneg %p126
      %p183 = pneg %p123
      %s184 = smul.u32 32, %s16
      %p185 = scmp.lt.s32.totalorder %s184, 63
      %s186 = scalar_select %p185, %s184, 63
      %s187 = smul.addr %s186, 4
      %s188 = scalar_lea.vmem %s0, %s187
      %s189 = smul.u32 32, %s16
      %s190 = smul.u32 32, %s16
      %p191 = scmp.lt.s32.totalorder %s190, 63
      %s192 = scalar_select %p191, %s190, 63
      %s193 = smul.addr %s192, 8
      %s194 = scalar_lea.vmem %s2, %s193
      %s195 = smul.u32 32, %s16
      %p197 = scmp.eq.s32.totalorder %s16, 0
      // Predicated region
      $region29: #{cat_bottleneck_forward.10} parent=27 // pred_check
        %p198 = pneg %p197
      $region30: #{cat_bottleneck_forward.10} parent=27 // pred_check_branch
        %200 = sbr.rel (%p198) target = $region32
      $region31: #{cat_bottleneck_forward.10} parent=27 // pred_region
        %vm201 = vcmask 8192
        %202 = vst.msk [vmem:[%s3] sm:$0x1] %vm201, 0.0
        %203 = vst.msk [vmem:[%s4] sm:$0x1] %vm201, 0.0
      $region32: #{cat_bottleneck_forward.10} parent=27 // pred_fallthru
        _
      %v204 = vld [vmem:[%s188] sm:$0xf]
      %v205 = vld [vmem:[%s188 + $0x4] sm:$0xf]
      %v206 = vld [vmem:[%s188 + $0x8] sm:$0xf]
      %v207 = vld [vmem:[%s188 + $0xc] sm:$0xf]
      %v208 = vld [vmem:[%s188 + $0x10] sm:$0xf]
      %v209 = vld [vmem:[%s188 + $0x14] sm:$0xf]
      %v210 = vld [vmem:[%s188 + $0x18] sm:$0xf]
      %v211 = vld [vmem:[%s188 + $0x1c] sm:$0xf]
      %v212 = vld [vmem:[%s188 + $0x20] sm:$0xf]
      %v213 = vld [vmem:[%s188 + $0x24] sm:$0xf]
      %v214 = vld [vmem:[%s188 + $0x28] sm:$0xf]
      %v215 = vld [vmem:[%s188 + $0x2c] sm:$0xf]
      %v216 = vld [vmem:[%s188 + $0x30] sm:$0xf]
      %v217 = vld [vmem:[%s188 + $0x34] sm:$0xf]
      %v218 = vld [vmem:[%s188 + $0x38] sm:$0xf]
      %v219 = vld [vmem:[%s188 + $0x3c] sm:$0xf]
      %v220 = vld [vmem:[%s188 + $0x40] sm:$0xf]
      %v221 = vld [vmem:[%s188 + $0x44] sm:$0xf]
      %v222 = vld [vmem:[%s188 + $0x48] sm:$0xf]
      %v223 = vld [vmem:[%s188 + $0x4c] sm:$0xf]
      %v224 = vld [vmem:[%s188 + $0x50] sm:$0xf]
      %v225 = vld [vmem:[%s188 + $0x54] sm:$0xf]
      %v226 = vld [vmem:[%s188 + $0x58] sm:$0xf]
      %v227 = vld [vmem:[%s188 + $0x5c] sm:$0xf]
      %v228 = vld [vmem:[%s188 + $0x60] sm:$0xf]
      %v229 = vld [vmem:[%s188 + $0x64] sm:$0xf]
      %v230 = vld [vmem:[%s188 + $0x68] sm:$0xf]
      %v231 = vld [vmem:[%s188 + $0x6c] sm:$0xf]
      %v232 = vld [vmem:[%s188 + $0x70] sm:$0xf]
      %v233 = vld [vmem:[%s188 + $0x74] sm:$0xf]
      %v234 = vld [vmem:[%s188 + $0x78] sm:$0xf]
      %v235 = vld [vmem:[%s188 + $0x7c] sm:$0xf]
      %v236 = vld [vmem:[%s1] sm:$0xf]
      %v237 = vld [vmem:[%s1 + $0x4] sm:$0xf]
      %v238 = vld [vmem:[%s1 + $0x8] sm:$0x1]
      %v271 = vunpack.c.l.b16 %v204
      %v272 = vunpack.c.l.b16 %v205
      %v273 = vunpack.c.l.b16 %v206
      %v274 = vunpack.c.l.b16 %v207
      %v275 = vunpack.c.l.b16 %v208
      %v276 = vunpack.c.l.b16 %v209
      %v277 = vunpack.c.l.b16 %v210
      %v278 = vunpack.c.l.b16 %v211
      %v279 = vunpack.c.l.b16 %v212
      %v280 = vunpack.c.l.b16 %v213
      %v281 = vunpack.c.l.b16 %v214
      %v282 = vunpack.c.l.b16 %v215
      %v283 = vunpack.c.l.b16 %v216
      %v284 = vunpack.c.l.b16 %v217
      %v285 = vunpack.c.l.b16 %v218
      %v286 = vunpack.c.l.b16 %v219
      %v287 = vunpack.c.l.b16 %v220
      %v288 = vunpack.c.l.b16 %v221
      %v289 = vunpack.c.l.b16 %v222
      %v290 = vunpack.c.l.b16 %v223
      %v291 = vunpack.c.l.b16 %v224
      %v292 = vunpack.c.l.b16 %v225
      %v293 = vunpack.c.l.b16 %v226
      %v294 = vunpack.c.l.b16 %v227
      %v295 = vunpack.c.l.b16 %v228
      %v296 = vunpack.c.l.b16 %v229
      %v297 = vunpack.c.l.b16 %v230
      %v298 = vunpack.c.l.b16 %v231
      %v299 = vunpack.c.l.b16 %v232
      %v300 = vunpack.c.l.b16 %v233
      %v301 = vunpack.c.l.b16 %v234
      %v302 = vunpack.c.l.b16 %v235
      %v303 = vpack.c.b16 %v272, %v271
      %v304 = vpack.c.b16 %v274, %v273
      %v305 = vpack.c.b16 %v276, %v275
      %v306 = vpack.c.b16 %v278, %v277
      %v307 = vpack.c.b16 %v280, %v279
      %v308 = vpack.c.b16 %v282, %v281
      %v309 = vpack.c.b16 %v284, %v283
      %v310 = vpack.c.b16 %v286, %v285
      %v311 = vpack.c.b16 %v288, %v287
      %v312 = vpack.c.b16 %v290, %v289
      %v313 = vpack.c.b16 %v292, %v291
      %v314 = vpack.c.b16 %v294, %v293
      %v315 = vpack.c.b16 %v296, %v295
      %v316 = vpack.c.b16 %v298, %v297
      %v317 = vpack.c.b16 %v300, %v299
      %v318 = vpack.c.b16 %v302, %v301
      %v322 = vunpack.c.l.b16 %v236
      %v323 = vunpack.c.l.b16 %v237
      %v324 = vunpack.c.l.b16 %v238
      %v325 = vpack.c.b16 %v323, %v322
      %v326 = vpack.c.b16 %v324, %v324
      %vm328 = vcmask 146432
      %v330 = vsel %vm328, %v303, 0
      %v333 = vsel %vm328, %v304, 0
      %v336 = vsel %vm328, %v305, 0
      %v339 = vsel %vm328, %v306, 0
      %v342 = vsel %vm328, %v307, 0
      %v345 = vsel %vm328, %v308, 0
      %v348 = vsel %vm328, %v309, 0
      %v351 = vsel %vm328, %v310, 0
      %v354 = vsel %vm328, %v311, 0
      %v357 = vsel %vm328, %v312, 0
      %v360 = vsel %vm328, %v313, 0
      %v363 = vsel %vm328, %v314, 0
      %v366 = vsel %vm328, %v315, 0
      %v369 = vsel %vm328, %v316, 0
      %v372 = vsel %vm328, %v317, 0
      %v375 = vsel %vm328, %v318, 0
      %vm377 = vcmask 1040384
      %v379 = vsel %vm377, %v326, 0
      %381 = vmatpush.bf16.msra.mxu0 0
      %382 = vmatpush.bf16.msra.mxu0 0
      %383 = vmatpush.bf16.msra.mxu0 0
      %384 = vmatpush.bf16.msra.mxu0 0
      %385 = vmatpush.bf16.msra.mxu0 0
      %386 = vmatpush.bf16.msra.mxu0 0
      %387 = vmatpush.bf16.msra.mxu0 %v379
      %388 = vmatpush.bf16.msra.mxu0 %v325
      %389 = vmatmul.bf16.gmra.mxu0 %v330
      %v390 = vpop.f32.mrf.mxu0
      %v391 = vadd.f32 0.0, %v390
      %v392 = vpop.f32.mrf.mxu0
      %v393 = vadd.f32 0.0, %v392
      %394 = vmatmul.bf16.gmra.mxu0 %v333
      %v395 = vpop.f32.mrf.mxu0
      %v396 = vadd.f32 0.0, %v395
      %v397 = vpop.f32.mrf.mxu0
      %v398 = vadd.f32 0.0, %v397
      %399 = vmatmul.bf16.gmra.mxu0 %v336
      %v400 = vpop.f32.mrf.mxu0
      %v401 = vadd.f32 0.0, %v400
      %v402 = vpop.f32.mrf.mxu0
      %v403 = vadd.f32 0.0, %v402
      %404 = vmatmul.bf16.gmra.mxu0 %v339
      %v405 = vpop.f32.mrf.mxu0
      %v406 = vadd.f32 0.0, %v405
      %v407 = vpop.f32.mrf.mxu0
      %v408 = vadd.f32 0.0, %v407
      %409 = vmatmul.bf16.gmra.mxu0 %v342
      %v410 = vpop.f32.mrf.mxu0
      %v411 = vadd.f32 0.0, %v410
      %v412 = vpop.f32.mrf.mxu0
      %v413 = vadd.f32 0.0, %v412
      %414 = vmatmul.bf16.gmra.mxu0 %v345
      %v415 = vpop.f32.mrf.mxu0
      %v416 = vadd.f32 0.0, %v415
      %v417 = vpop.f32.mrf.mxu0
      %v418 = vadd.f32 0.0, %v417
      %419 = vmatmul.bf16.gmra.mxu0 %v348
      %v420 = vpop.f32.mrf.mxu0
      %v421 = vadd.f32 0.0, %v420
      %v422 = vpop.f32.mrf.mxu0
      %v423 = vadd.f32 0.0, %v422
      %424 = vmatmul.bf16.gmra.mxu0 %v351
      %v425 = vpop.f32.mrf.mxu0
      %v426 = vadd.f32 0.0, %v425
      %v427 = vpop.f32.mrf.mxu0
      %v428 = vadd.f32 0.0, %v427
      %429 = vmatmul.bf16.gmra.mxu0 %v354
      %v430 = vpop.f32.mrf.mxu0
      %v431 = vadd.f32 0.0, %v430
      %v432 = vpop.f32.mrf.mxu0
      %v433 = vadd.f32 0.0, %v432
      %434 = vmatmul.bf16.gmra.mxu0 %v357
      %v435 = vpop.f32.mrf.mxu0
      %v436 = vadd.f32 0.0, %v435
      %v437 = vpop.f32.mrf.mxu0
      %v438 = vadd.f32 0.0, %v437
      %439 = vmatmul.bf16.gmra.mxu0 %v360
      %v440 = vpop.f32.mrf.mxu0
      %v441 = vadd.f32 0.0, %v440
      %v442 = vpop.f32.mrf.mxu0
      %v443 = vadd.f32 0.0, %v442
      %444 = vmatmul.bf16.gmra.mxu0 %v363
      %v445 = vpop.f32.mrf.mxu0
      %v446 = vadd.f32 0.0, %v445
      %v447 = vpop.f32.mrf.mxu0
      %v448 = vadd.f32 0.0, %v447
      %449 = vmatmul.bf16.gmra.mxu0 %v366
      %v450 = vpop.f32.mrf.mxu0
      %v451 = vadd.f32 0.0, %v450
      %v452 = vpop.f32.mrf.mxu0
      %v453 = vadd.f32 0.0, %v452
      %454 = vmatmul.bf16.gmra.mxu0 %v369
      %v455 = vpop.f32.mrf.mxu0
      %v456 = vadd.f32 0.0, %v455
      %v457 = vpop.f32.mrf.mxu0
      %v458 = vadd.f32 0.0, %v457
      %459 = vmatmul.bf16.gmra.mxu0 %v372
      %v460 = vpop.f32.mrf.mxu0
      %v461 = vadd.f32 0.0, %v460
      %v462 = vpop.f32.mrf.mxu0
      %v463 = vadd.f32 0.0, %v462
      %464 = vmatmul.bf16.gmra.mxu0 %v375
      %v465 = vpop.f32.mrf.mxu0
      %v466 = vadd.f32 0.0, %v465
      %v467 = vpop.f32.mrf.mxu0
      %v468 = vadd.f32 0.0, %v467
      %469 = vdwg.mxu0
      %vm470 = vcmask 15360
      %471 = vst.msk [vmem:[%s194] sm:$0xff] %vm470, %v391
      %472 = vst.msk [vmem:[%s194 + $0x8] sm:$0xff] %vm470, %v393
      %473 = vst.msk [vmem:[%s194 + $0x10] sm:$0xff] %vm470, %v396
      %474 = vst.msk [vmem:[%s194 + $0x18] sm:$0xff] %vm470, %v398
      %475 = vst.msk [vmem:[%s194 + $0x20] sm:$0xff] %vm470, %v401
      %476 = vst.msk [vmem:[%s194 + $0x28] sm:$0xff] %vm470, %v403
      %477 = vst.msk [vmem:[%s194 + $0x30] sm:$0xff] %vm470, %v406
      %478 = vst.msk [vmem:[%s194 + $0x38] sm:$0xff] %vm470, %v408
      %479 = vst.msk [vmem:[%s194 + $0x40] sm:$0xff] %vm470, %v411
      %480 = vst.msk [vmem:[%s194 + $0x48] sm:$0xff] %vm470, %v413
      %481 = vst.msk [vmem:[%s194 + $0x50] sm:$0xff] %vm470, %v416
      %482 = vst.msk [vmem:[%s194 + $0x58] sm:$0xff] %vm470, %v418
      %483 = vst.msk [vmem:[%s194 + $0x60] sm:$0xff] %vm470, %v421
      %484 = vst.msk [vmem:[%s194 + $0x68] sm:$0xff] %vm470, %v423
      %485 = vst.msk [vmem:[%s194 + $0x70] sm:$0xff] %vm470, %v426
      %486 = vst.msk [vmem:[%s194 + $0x78] sm:$0xff] %vm470, %v428
      %487 = vst.msk [vmem:[%s194 + $0x80] sm:$0xff] %vm470, %v431
      %488 = vst.msk [vmem:[%s194 + $0x88] sm:$0xff] %vm470, %v433
      %489 = vst.msk [vmem:[%s194 + $0x90] sm:$0xff] %vm470, %v436
      %490 = vst.msk [vmem:[%s194 + $0x98] sm:$0xff] %vm470, %v438
      %491 = vst.msk [vmem:[%s194 + $0xa0] sm:$0xff] %vm470, %v441
      %492 = vst.msk [vmem:[%s194 + $0xa8] sm:$0xff] %vm470, %v443
      %493 = vst.msk [vmem:[%s194 + $0xb0] sm:$0xff] %vm470, %v446
      %494 = vst.msk [vmem:[%s194 + $0xb8] sm:$0xff] %vm470, %v448
      %495 = vst.msk [vmem:[%s194 + $0xc0] sm:$0xff] %vm470, %v451
      %496 = vst.msk [vmem:[%s194 + $0xc8] sm:$0xff] %vm470, %v453
      %497 = vst.msk [vmem:[%s194 + $0xd0] sm:$0xff] %vm470, %v456
      %498 = vst.msk [vmem:[%s194 + $0xd8] sm:$0xff] %vm470, %v458
      %499 = vst.msk [vmem:[%s194 + $0xe0] sm:$0xff] %vm470, %v461
      %500 = vst.msk [vmem:[%s194 + $0xe8] sm:$0xff] %vm470, %v463
      %501 = vst.msk [vmem:[%s194 + $0xf0] sm:$0xff] %vm470, %v466
      %502 = vst.msk [vmem:[%s194 + $0xf8] sm:$0xff] %vm470, %v468
      %v503 = vld [vmem:[%s3] sm:$0x1]
      %v504 = vsel %vm470, %v391, 0.0
      %v505 = vsel %vm470, %v393, 0.0
      %v506 = vadd.f32 %v504, %v505
      %v507 = vsel %vm470, %v396, 0.0
      %v508 = vadd.f32 %v506, %v507
      %v509 = vsel %vm470, %v398, 0.0
      %v510 = vadd.f32 %v508, %v509
      %v511 = vsel %vm470, %v401, 0.0
      %v512 = vadd.f32 %v510, %v511
      %v513 = vsel %vm470, %v403, 0.0
      %v514 = vadd.f32 %v512, %v513
      %v515 = vsel %vm470, %v406, 0.0
      %v516 = vadd.f32 %v514, %v515
      %v517 = vsel %vm470, %v408, 0.0
      %v518 = vadd.f32 %v516, %v517
      %v519 = vsel %vm470, %v411, 0.0
      %v520 = vadd.f32 %v518, %v519
      %v521 = vsel %vm470, %v413, 0.0
      %v522 = vadd.f32 %v520, %v521
      %v523 = vsel %vm470, %v416, 0.0
      %v524 = vadd.f32 %v522, %v523
      %v525 = vsel %vm470, %v418, 0.0
      %v526 = vadd.f32 %v524, %v525
      %v527 = vsel %vm470, %v421, 0.0
      %v528 = vadd.f32 %v526, %v527
      %v529 = vsel %vm470, %v423, 0.0
      %v530 = vadd.f32 %v528, %v529
      %v531 = vsel %vm470, %v426, 0.0
      %v532 = vadd.f32 %v530, %v531
      %v533 = vsel %vm470, %v428, 0.0
      %v534 = vadd.f32 %v532, %v533
      %v535 = vsel %vm470, %v431, 0.0
      %v536 = vadd.f32 %v534, %v535
      %v537 = vsel %vm470, %v433, 0.0
      %v538 = vadd.f32 %v536, %v537
      %v539 = vsel %vm470, %v436, 0.0
      %v540 = vadd.f32 %v538, %v539
      %v541 = vsel %vm470, %v438, 0.0
      %v542 = vadd.f32 %v540, %v541
      %v543 = vsel %vm470, %v441, 0.0
      %v544 = vadd.f32 %v542, %v543
      %v545 = vsel %vm470, %v443, 0.0
      %v546 = vadd.f32 %v544, %v545
      %v547 = vsel %vm470, %v446, 0.0
      %v548 = vadd.f32 %v546, %v547
      %v549 = vsel %vm470, %v448, 0.0
      %v550 = vadd.f32 %v548, %v549
      %v551 = vsel %vm470, %v451, 0.0
      %v552 = vadd.f32 %v550, %v551
      %v553 = vsel %vm470, %v453, 0.0
      %v554 = vadd.f32 %v552, %v553
      %v555 = vsel %vm470, %v456, 0.0
      %v556 = vadd.f32 %v554, %v555
      %v557 = vsel %vm470, %v458, 0.0
      %v558 = vadd.f32 %v556, %v557
      %v559 = vsel %vm470, %v461, 0.0
      %v560 = vadd.f32 %v558, %v559
      %v561 = vsel %vm470, %v463, 0.0
      %v562 = vadd.f32 %v560, %v561
      %v563 = vsel %vm470, %v466, 0.0
      %v564 = vadd.f32 %v562, %v563
      %v565 = vsel %vm470, %v468, 0.0
      %v566 = vadd.f32 %v564, %v565
      %v567 = vrot.slane %v566, 4
      %v568 = vadd.f32 %v566, %v567
      %v569 = vrot.slane %v568, 2
      %v570 = vadd.f32 %v568, %v569
      %v571 = vrot.slane %v570, 1
      %v572 = vadd.f32 %v570, %v571
      %v573 = vadd.f32 %v503, %v572
      %vm574 = vcmask 8192
      %575 = vst.msk [vmem:[%s3] sm:$0x1] %vm574, %v573
      %v576 = vld [vmem:[%s4] sm:$0x1]
      %v577 = vmul.f32 %v391, %v391
      %v578 = vmul.f32 %v393, %v393
      %v579 = vmul.f32 %v396, %v396
      %v580 = vmul.f32 %v398, %v398
      %v581 = vmul.f32 %v401, %v401
      %v582 = vmul.f32 %v403, %v403
      %v583 = vmul.f32 %v406, %v406
      %v584 = vmul.f32 %v408, %v408
      %v585 = vmul.f32 %v411, %v411
      %v586 = vmul.f32 %v413, %v413
      %v587 = vmul.f32 %v416, %v416
      %v588 = vmul.f32 %v418, %v418
      %v589 = vmul.f32 %v421, %v421
      %v590 = vmul.f32 %v423, %v423
      %v591 = vmul.f32 %v426, %v426
      %v592 = vmul.f32 %v428, %v428
      %v593 = vmul.f32 %v431, %v431
      %v594 = vmul.f32 %v433, %v433
      %v595 = vmul.f32 %v436, %v436
      %v596 = vmul.f32 %v438, %v438
      %v597 = vmul.f32 %v441, %v441
      %v598 = vmul.f32 %v443, %v443
      %v599 = vmul.f32 %v446, %v446
      %v600 = vmul.f32 %v448, %v448
      %v601 = vmul.f32 %v451, %v451
      %v602 = vmul.f32 %v453, %v453
      %v603 = vmul.f32 %v456, %v456
      %v604 = vmul.f32 %v458, %v458
      %v605 = vmul.f32 %v461, %v461
      %v606 = vmul.f32 %v463, %v463
      %v607 = vmul.f32 %v466, %v466
      %v608 = vmul.f32 %v468, %v468
      %v609 = vsel %vm470, %v577, 0.0
      %v610 = vsel %vm470, %v578, 0.0
      %v611 = vadd.f32 %v609, %v610
      %v612 = vsel %vm470, %v579, 0.0
      %v613 = vadd.f32 %v611, %v612
      %v614 = vsel %vm470, %v580, 0.0
      %v615 = vadd.f32 %v613, %v614
      %v616 = vsel %vm470, %v581, 0.0
      %v617 = vadd.f32 %v615, %v616
      %v618 = vsel %vm470, %v582, 0.0
      %v619 = vadd.f32 %v617, %v618
      %v620 = vsel %vm470, %v583, 0.0
      %v621 = vadd.f32 %v619, %v620
      %v622 = vsel %vm470, %v584, 0.0
      %v623 = vadd.f32 %v621, %v622
      %v624 = vsel %vm470, %v585, 0.0
      %v625 = vadd.f32 %v623, %v624
      %v626 = vsel %vm470, %v586, 0.0
      %v627 = vadd.f32 %v625, %v626
      %v628 = vsel %vm470, %v587, 0.0
      %v629 = vadd.f32 %v627, %v628
      %v630 = vsel %vm470, %v588, 0.0
      %v631 = vadd.f32 %v629, %v630
      %v632 = vsel %vm470, %v589, 0.0
      %v633 = vadd.f32 %v631, %v632
      %v634 = vsel %vm470, %v590, 0.0
      %v635 = vadd.f32 %v633, %v634
      %v636 = vsel %vm470, %v591, 0.0
      %v637 = vadd.f32 %v635, %v636
      %v638 = vsel %vm470, %v592, 0.0
      %v639 = vadd.f32 %v637, %v638
      %v640 = vsel %vm470, %v593, 0.0
      %v641 = vadd.f32 %v639, %v640
      %v642 = vsel %vm470, %v594, 0.0
      %v643 = vadd.f32 %v641, %v642
      %v644 = vsel %vm470, %v595, 0.0
      %v645 = vadd.f32 %v643, %v644
      %v646 = vsel %vm470, %v596, 0.0
      %v647 = vadd.f32 %v645, %v646
      %v648 = vsel %vm470, %v597, 0.0
      %v649 = vadd.f32 %v647, %v648
      %v650 = vsel %vm470, %v598, 0.0
      %v651 = vadd.f32 %v649, %v650
      %v652 = vsel %vm470, %v599, 0.0
      %v653 = vadd.f32 %v651, %v652
      %v654 = vsel %vm470, %v600, 0.0
      %v655 = vadd.f32 %v653, %v654
      %v656 = vsel %vm470, %v601, 0.0
      %v657 = vadd.f32 %v655, %v656
      %v658 = vsel %vm470, %v602, 0.0
      %v659 = vadd.f32 %v657, %v658
      %v660 = vsel %vm470, %v603, 0.0
      %v661 = vadd.f32 %v659, %v660
      %v662 = vsel %vm470, %v604, 0.0
      %v663 = vadd.f32 %v661, %v662
      %v664 = vsel %vm470, %v605, 0.0
      %v665 = vadd.f32 %v663, %v664
      %v666 = vsel %vm470, %v606, 0.0
      %v667 = vadd.f32 %v665, %v666
      %v668 = vsel %vm470, %v607, 0.0
      %v669 = vadd.f32 %v667, %v668
      %v670 = vsel %vm470, %v608, 0.0
      %v671 = vadd.f32 %v669, %v670
      %v672 = vrot.slane %v671, 4
      %v673 = vadd.f32 %v671, %v672
      %v674 = vrot.slane %v673, 2
      %v675 = vadd.f32 %v673, %v674
      %v676 = vrot.slane %v675, 1
      %v677 = vadd.f32 %v675, %v676
      %v678 = vadd.f32 %v576, %v677
      %679 = vst.msk [vmem:[%s4] sm:$0x1] %vm574, %v678
      %s680 = smul.u32 32, %s16
      %p681 = scmp.lt.s32.totalorder %s680, 63
      %s682 = scalar_select %p681, %s680, 63
      %s683 = smul.addr %s682, 8
      %s684 = scalar_lea.vmem %s2, %s683
      // Predicated region
      $region33: #{cat_bottleneck_forward.10} parent=27 // pred_check
        %p685 = pneg %p81
      $region34: #{cat_bottleneck_forward.10} parent=27 // pred_check_branch
        %687 = sbr.rel (%p685) target = $region36
      $region35: #{cat_bottleneck_forward.10} parent=27 // pred_region
        %s688 = smul.u32 32, %s16
      $region36: #{cat_bottleneck_forward.10} parent=27 // pred_fallthru
        _
      // Predicated region
      $region37: #{cat_bottleneck_forward.10} parent=27 // pred_check
        %p689 = pneg %p102
      $region38: #{cat_bottleneck_forward.10} parent=27 // pred_check_branch
        %691 = sbr.rel (%p689) target = $region40
      $region39: #{cat_bottleneck_forward.10} parent=27 // pred_region
        _
      $region40: #{cat_bottleneck_forward.10} parent=27 // pred_fallthru
        _
      // Predicated region
      $region41: #{cat_bottleneck_forward.10} parent=27 // pred_check
        %p692 = pneg %p123
      $region42: #{cat_bottleneck_forward.10} parent=27 // pred_check_branch
        %694 = sbr.rel (%p692) target = $region44
      $region43: #{cat_bottleneck_forward.10} parent=27 // pred_region
        _
      $region44: #{cat_bottleneck_forward.10} parent=27 // pred_fallthru
        _
      // Predicated region
      $region45: #{cat_bottleneck_forward.10} parent=27 // pred_check
        %p695 = pneg %p102
      $region46: #{cat_bottleneck_forward.10} parent=27 // pred_check_branch
        %697 = sbr.rel (%p695) target = $region48
      $region47: #{cat_bottleneck_forward.10} parent=27 // pred_region
        _
      $region48: #{cat_bottleneck_forward.10} parent=27 // pred_fallthru
        _
      // Predicated region
      $region49: #{cat_bottleneck_forward.10} parent=27 // pred_check
        %p698 = pneg %p123
      $region50: #{cat_bottleneck_forward.10} parent=27 // pred_check_branch
        %700 = sbr.rel (%p698) target = $region52
      $region51: #{cat_bottleneck_forward.10} parent=27 // pred_region
        _
      $region52: #{cat_bottleneck_forward.10} parent=27 // pred_fallthru
        _
    $region28: #{cat_bottleneck_forward.10} parent=5 // pred_fallthru
      _
    %p701 = scmp.le.s32.totalorder 2, %s11
    // Predicated region
    $region53: #{cat_bottleneck_forward.10} parent=5 // pred_check
      %p702 = pneg %p701
    $region54: #{cat_bottleneck_forward.10} parent=5 // pred_check_branch
      %704 = sbr.rel (%p702) target = $region56
    $region55: #{cat_bottleneck_forward.10} parent=5 // pred_region
      %s705 = ssub.s32 %s11, 2
      // Predicated region
      $region57: #{cat_bottleneck_forward.10} parent=55 // pred_check
        %p706 = pneg %p87
      $region58: #{cat_bottleneck_forward.10} parent=55 // pred_check_branch
        %708 = sbr.rel (%p706) target = $region60
      $region59: #{cat_bottleneck_forward.10} parent=55 // pred_region
        %s709 = smul.u32 32, %s17
        %p710 = scmp.lt.s32.totalorder %s709, 63
        %s711 = scalar_select %p710, %s709, 63
        %s712 = smul.addr %s711, 8
        %s713 = scalar_lea.vmem %s2, %s712
      $region60: #{cat_bottleneck_forward.10} parent=55 // pred_fallthru
        _
    $region56: #{cat_bottleneck_forward.10} parent=5 // pred_fallthru
      _
  $region6: #{cat_bottleneck_forward.10} parent=0 // loop_footer
    %s15 = sadd.s32 1, %s11
  $region7: #{cat_bottleneck_forward.10} parent=0 // loop_footer_branch
    %10 = sbr.rel target = $region3
  $region8: #{cat_bottleneck_forward.10} parent=0 // loop_exit
    _

</llo_original>
